<compile_context>
chip_gen: v5e
topology: v5e:2x2
jax: 0.10.0
libtpu: 0.0.40
codegen_flags: <defaults>
</compile_context>

<pallas_src>
import functools

import numpy as np
import jax
import jax.numpy as jnp
from jax import lax
from jax.experimental import pallas as pl
from jax.experimental.pallas import tpu as pltpu

LEAKY_SLOPE = 0.01   # nn.LeakyReLU default
BN_EPS = 1e-5        # nn.BatchNorm2d default


def _leaky(x):
    return jnp.where(x >= 0, x, LEAKY_SLOPE * x)


# ----------------------------------------------------------------------------
# Pallas kernel: one batch element per grid step, full (C, H*W) image resident,
# H*W on the 128-lane axis (lane-dense loads/stores).
# ----------------------------------------------------------------------------
def dgff3_kernel(agent_idx_ref, ncav_ref,            # scalar prefetch (SMEM)
                 a0_ref, a1_ref,                     # ego / collaborator feats
                 wdown_ref,                          # [down_vehicle; down_inf]
                 w3pre_ref,                          # fused flow+gate 3x3
                 w3post_ref,                         # fused de1+se1 3x3 (BN folded)
                 w1post_ref,                         # fused de2+se2 1x1 (BN folded)
                 wde3_ref,                           # [de3; pswap@de3]
                 pswap_ref,                          # channel pair-swap perm
                 wdr_ref,                            # DimReduction (BN folded)
                 bias_ref,                           # packed bias slab (R,1) f32
                 const_ref,                          # (11,HW): 9 masks + base grid
                 o_ref,
                 *, C, H, W, P, bias_offs, dst_tile):
    HW = H * W
    C2 = 2 * C
    b = pl.program_id(0)
    ncav = ncav_ref[b]
    f32 = jnp.float32
    bf16 = jnp.bfloat16
    off_b3pre, off_b3post, off_b1post, off_bde3, off_bdr = bias_offs

    def mxu(w_bf, act):
        # bf16 x bf16 -> f32 accumulation on the MXU.
        return jnp.dot(w_bf, act.astype(bf16), preferred_element_type=f32)

    @pl.when(ncav > 1)
    def _fuse():
        a0 = a0_ref[0].astype(f32)                    # (C, HW) ego agent
        a1 = a1_ref[0].astype(f32)                    # (C, HW) collaborator

        cst = const_ref[...]                          # (11, HW) f32
        masks = cst[0:9]                              # (9, HW) 0/1 boundary masks
        base_gx = cst[9:10]                           # (1, HW)
        base_gy = cst[10:11]                          # (1, HW)

        # 1x1 "down" convolutions.
        x1 = mxu(wdown_ref[0:C, :], a0)               # (C, HW)
        x2 = mxu(wdown_ref[C:2 * C, :], a1)           # (C, HW)

        # Lane-axis im2col for 3x3 convs (zero padding): 9 XLU rolls + (1,HW)
        # masks; returns a (9C, HW) bf16 stack, row = k*C + ci.
        def im2col(x):
            pieces = []
            for k in range(9):
                dy, dx = k // 3 - 1, k % 3 - 1
                s = dy * W + dx
                shifted = pltpu.roll(x, shift=(-s) % HW, axis=1)
                pieces.append((shifted * masks[k:k + 1, :]).astype(bf16))
            return jnp.concatenate(pieces, axis=0)    # (9C, HW) bf16

        stack1 = im2col(x1)                           # reused for both 3x3 convs
        stack2 = im2col(x2)

        def conv3x3_fused(w2_ref, sa, sb, boff, nrows):
            bias = bias_ref[boff:boff + nrows, :]
            return (jnp.dot(w2_ref[0], sa, preferred_element_type=f32)
                    + jnp.dot(w2_ref[1], sb, preferred_element_type=f32)
                    + bias)

        # flow_make (rows 0..1) + gate (rows 2..3), one fused 3x3 pass.
        flow_gate = conv3x3_fused(w3pre_ref, stack1, stack2, off_b3pre, 4)
        gate = pl.reciprocal(1.0 + jnp.exp(-flow_gate[2:4]), approx=True)
        flow = flow_gate[0:2] * gate                  # (2, HW)

        # flow_warp == F.grid_sample(bilinear, zeros, align_corners=False).
        gx = base_gx + flow[0:1] * (1.0 / W)
        gy = base_gy + flow[1:2] * (1.0 / H)
        ix = ((gx + 1.0) * W - 1.0) * 0.5
        iy = ((gy + 1.0) * H - 1.0) * 0.5
        x0f = jnp.floor(ix)
        y0f = jnp.floor(iy)
        fx = ix - x0f
        fy = iy - y0f
        x0 = x0f.astype(jnp.int32)
        y0 = y0f.astype(jnp.int32)

        x2_bf = x2.astype(bf16)
        parts = []
        for t0 in range(0, HW, dst_tile):             # destination-lane tiles
            te = t0 + dst_tile
            qi = lax.broadcasted_iota(jnp.int32, (HW, dst_tile), 0)
            x0t = x0[:, t0:te]
            y0t = y0[:, t0:te]
            fxt = fx[:, t0:te]
            fyt = fy[:, t0:te]
            wt = None
            for ddx, ddy, wgt in ((0, 0, (1.0 - fxt) * (1.0 - fyt)),
                                  (1, 0, fxt * (1.0 - fyt)),
                                  (0, 1, (1.0 - fxt) * fyt),
                                  (1, 1, fxt * fyt)):
                cx = x0t + ddx
                cy = y0t + ddy
                ok = (cx >= 0) & (cx < W) & (cy >= 0) & (cy < H)
                wz = jnp.where(ok, wgt, 0.0)                         # (1, T)
                idx = jnp.clip(cy, 0, H - 1) * W + jnp.clip(cx, 0, W - 1)
                term = jnp.where(qi == idx, wz, 0.0)                 # (HW, T)
                wt = term if wt is None else wt + term
            parts.append(jnp.dot(x2_bf, wt.astype(bf16),
                                 preferred_element_type=f32))
        x2w = parts[0] if len(parts) == 1 else jnp.concatenate(parts, axis=1)

        stack2w = im2col(x2w)
        s_post = jnp.concatenate([x1, x2w], axis=0)   # (2C, HW) f32

        # DomainEncoder.conv1 (rows 0..P-1) + SpatialEncoder2.conv1 (row P).
        de1se1 = conv3x3_fused(w3post_ref, stack1, stack2w, off_b3post, P + 1)
        # DomainEncoder.conv2 (rows 0..P-1) + SpatialEncoder2.conv2 (row P).
        d2s2 = mxu(w1post_ref[...], s_post) + bias_ref[off_b1post:off_b1post + P + 1, :]

        dd = _leaky(de1se1[0:P] + d2s2[0:P])          # (P, HW)
        sa = (de1se1[P:P + 1] + d2s2[P:P + 1]
              + jnp.max(s_post, axis=0, keepdims=True))              # (1, HW)

        # [da; da_partner] in one matmul (pair-swap folded host-side).
        da_both = mxu(wde3_ref[...], dd) + bias_ref[off_bde3:off_bde3 + 2 * C2, :]
        da = da_both[0:C2]
        dap = da_both[C2:2 * C2]

        # Softmax over channel pairs (== .view(1, C, 2, H, W) softmax dim=2).
        m = jnp.maximum(da, dap)
        e = jnp.exp(da - m)
        denom = e + mxu(pswap_ref[...], e)
        att = e * pl.reciprocal(denom, approx=True)   # (2C, HW)

        fused = att * sa * s_post                     # (2C, HW)

        # DimReduction: folded conv1x1+BN, then LeakyReLU.
        outv = _leaky(mxu(wdr_ref[...], fused) + bias_ref[off_bdr:off_bdr + C, :])
        o_ref[0] = outv.astype(o_ref.dtype)

    @pl.when(ncav <= 1)
    def _passthrough():
        o_ref[0] = a0_ref[0].astype(o_ref.dtype)


# ----------------------------------------------------------------------------
# Host-side parameter folding / packing (inference-time conv+BN folding,
# conv stacking, im2col weight layout, bias slab, batch-invariant constants).
# ----------------------------------------------------------------------------
def _pack_weights(p, C, H, W):
    f32 = np.float32
    C2 = 2 * C
    P = C2 // 8
    HW = H * W

    def npa(a):
        return np.asarray(a, f32)

    def fold_bn(w, bn):
        gamma, beta, mean, var = [np.asarray(t, f32) for t in bn]
        s = gamma / np.sqrt(var + BN_EPS)
        return npa(w) * s[:, None, None, None], beta - mean * s

    def to_im2col(w):  # (Cout, Cin, 3, 3) -> (Cout, 9*Cin), column = k*Cin + ci
        cout, cin = w.shape[:2]
        return np.transpose(w, (0, 2, 3, 1)).reshape(cout, 9 * cin)

    # down_vehicle / down_inf packed into one (2C, C) matrix.
    wdown = np.concatenate([npa(p['down_vehicle_w'])[:, :, 0, 0],
                            npa(p['down_inf_w'])[:, :, 0, 0]], 0)

    # flow_make (Cout=2, input 2C) + gate (Cout=2, input C, bias) fused.
    flow_w = npa(p['flow_make_w'])                    # (2, 2C, 3, 3)
    gate_w = npa(p['gate_w'])                         # (2, C, 3, 3)
    w3pre_a = np.concatenate([flow_w[:, :C], gate_w], 0)
    w3pre_b = np.concatenate([flow_w[:, C:], np.zeros_like(gate_w)], 0)
    w3pre = np.stack([to_im2col(w3pre_a), to_im2col(w3pre_b)], 0)   # (2,4,9C)
    b3pre = np.concatenate([np.zeros(2, f32), npa(p['gate_b'])]).reshape(-1, 1)

    # DomainEncoder.conv1 + SpatialEncoder2.conv1 (both 3x3, BN folded) fused.
    de1w, de1b = fold_bn(p['de_conv1_w'], p['de_bn1'])
    se1w, se1b = fold_bn(p['se_conv1_w'], p['se_bn1'])
    w3post_full = np.concatenate([de1w, se1w], 0)                    # (P+1,2C,3,3)
    w3post = np.stack([to_im2col(w3post_full[:, :C]),
                       to_im2col(w3post_full[:, C:])], 0)            # (2,P+1,9C)
    b3post = np.concatenate([de1b, se1b]).reshape(-1, 1)

    # DomainEncoder.conv2 + SpatialEncoder2.conv2 (1x1, BN folded) fused.
    de2w, de2b = fold_bn(p['de_conv2_w'], p['de_bn2'])
    se2w, se2b = fold_bn(p['se_conv2_w'], p['se_bn2'])
    w1post = np.concatenate([de2w, se2w], 0)[:, :, 0, 0]             # (P+1, 2C)
    b1post = np.concatenate([de2b, se2b]).reshape(-1, 1)

    # DomainEncoder.conv3 with pair-swap folded in: [de3; pswap@de3].
    de3w = npa(p['de_conv3_w'])[:, :, 0, 0]                          # (2C, P)
    de3b = npa(p['de_conv3_b'])
    perm = np.arange(C2) ^ 1
    wde3 = np.concatenate([de3w, de3w[perm]], 0)                     # (4C, P)
    bde3 = np.concatenate([de3b, de3b[perm]]).reshape(-1, 1)
    pswap = np.eye(C2, dtype=f32)[perm]                              # (2C, 2C)

    # DimReduction conv1x1 + BN folded.
    drw, drb = fold_bn(p['dr_conv1_w'], p['dr_bn1'])
    wdr = drw[:, :, 0, 0]                                            # (C, 2C)
    bdr = drb.reshape(-1, 1)

    # One bias slab, each segment 8-row aligned (cheap, aligned ref slices).
    biases = [b3pre, b3post, b1post, bde3, bdr]
    offs, off = [], 0
    for bb in biases:
        offs.append(off)
        off += int(np.ceil(bb.shape[0] / 8)) * 8
    bias_slab = np.zeros((off, 1), f32)
    for o, bb in zip(offs, biases):
        bias_slab[o:o + bb.shape[0]] = bb

    # Batch-invariant constants: 9 conv boundary masks + base sampling grid.
    pidx = np.arange(HW)
    px, py = pidx % W, pidx // W
    masks = np.zeros((9, HW), f32)
    for k in range(9):
        dy, dx = k // 3 - 1, k % 3 - 1
        masks[k] = ((px + dx >= 0) & (px + dx < W)
                    & (py + dy >= 0) & (py + dy < H)).astype(f32)
    gx = 2.0 * px / max(W - 1, 1) - 1.0
    gy = 2.0 * py / max(H - 1, 1) - 1.0
    consts = np.concatenate([masks, gx[None], gy[None]], 0).astype(f32)

    bf = jnp.bfloat16
    weights = [
        jnp.asarray(wdown, bf),
        jnp.asarray(w3pre, bf),
        jnp.asarray(w3post, bf),
        jnp.asarray(w1post, bf),
        jnp.asarray(wde3, bf),
        jnp.asarray(pswap, bf),
        jnp.asarray(wdr, bf),
        jnp.asarray(bias_slab),     # f32
        jnp.asarray(consts),        # f32
    ]
    return weights, P, tuple(offs)


# ----------------------------------------------------------------------------
# Forward wrapper: ONE fused pallas_call over the whole batch (scalar-prefetch
# regroup via data-dependent index_maps).
# ----------------------------------------------------------------------------
def dgff3_forward(x, record_len, pairwise_t_matrix, params, vis_feats=False,
                  dst_tile=512):
    N, C, H, W = x.shape
    B = int(pairwise_t_matrix.shape[0])
    HW = H * W

    rl = np.asarray(record_len, dtype=np.int32)
    assert len(rl) == B
    starts = np.concatenate([[0], np.cumsum(rl)[:-1]]).astype(np.int32)
    # agent_idx[b] = (row of agent 0, row of agent 1 or agent 0 if single cav)
    agent_idx = np.stack([starts, starts + np.minimum(rl - 1, 1)],
                         axis=1).astype(np.int32)

    weights, P, bias_offs = _pack_weights(params, C, H, W)
    dst_tile = min(dst_tile, HW)
    if HW % dst_tile:
        dst_tile = HW

    x_flat = x.reshape(N, C, HW)   # lane-dense: H*W on the 128-lane axis

    def _whole(arr):
        nd = arr.ndim
        return pl.BlockSpec(arr.shape, lambda b, ai, nc, _nd=nd: (0,) * _nd)

    in_specs = [
        pl.BlockSpec((1, C, HW), lambda b, ai, nc: (ai[b, 0], 0, 0)),
        pl.BlockSpec((1, C, HW), lambda b, ai, nc: (ai[b, 1], 0, 0)),
    ] + [_whole(w) for w in weights]

    out = pl.pallas_call(
        functools.partial(dgff3_kernel, C=C, H=H, W=W, P=P,
                          bias_offs=bias_offs, dst_tile=dst_tile),
        out_shape=jax.ShapeDtypeStruct((B, C, HW), x.dtype),
        grid_spec=pltpu.PrefetchScalarGridSpec(
            num_scalar_prefetch=2,
            grid=(B,),
            in_specs=in_specs,
            out_specs=pl.BlockSpec((1, C, HW), lambda b, ai, nc: (b, 0, 0)),
        ),
        compiler_params=pltpu.CompilerParams(
            dimension_semantics=("parallel",),       # batches over both TCs (v7x)
            vmem_limit_bytes=32 * 1024 * 1024,
        ),
    )(jnp.asarray(agent_idx), jnp.asarray(rl), x_flat, x_flat, *weights)

    out = out.reshape(B, C, H, W)
    if vis_feats:
        return out, x[starts[0]:starts[0] + int(rl[0])]
    return out


# ----------------------------------------------------------------------------
# Pure-JAX reference (mirrors the PyTorch module op-by-op) for sanity check.
# ----------------------------------------------------------------------------
def _conv2d(x, w, padding=0):
    return lax.conv_general_dilated(
        x, w, window_strides=(1, 1),
        padding=((padding, padding), (padding, padding)),
        dimension_numbers=('NCHW', 'OIHW', 'NCHW'),
        precision=lax.Precision.HIGHEST)


def _bn(x, bn):
    gamma, beta, mean, var = bn
    s = gamma / jnp.sqrt(var + BN_EPS)
    return x * s[None, :, None, None] + (beta - mean * s)[None, :, None, None]


def _flow_warp_ref(img, flow):
    _, C, H, W = img.shape
    gx = jnp.tile(jnp.linspace(-1.0, 1.0, W)[None, :], (H, 1)) + flow[0, 0] / W
    gy = jnp.tile(jnp.linspace(-1.0, 1.0, H)[:, None], (1, W)) + flow[0, 1] / H
    ix = ((gx + 1.0) * W - 1.0) / 2.0
    iy = ((gy + 1.0) * H - 1.0) / 2.0
    x0 = jnp.floor(ix)
    y0 = jnp.floor(iy)
    fx = ix - x0
    fy = iy - y0
    out = jnp.zeros((C, H, W), jnp.float32)
    im = img[0]
    for ddx, ddy, wgt in ((0, 0, (1 - fx) * (1 - fy)),
                          (1, 0, fx * (1 - fy)),
                          (0, 1, (1 - fx) * fy),
                          (1, 1, fx * fy)):
        cx = (x0 + ddx).astype(jnp.int32)
        cy = (y0 + ddy).astype(jnp.int32)
        ok = (cx >= 0) & (cx < W) & (cy >= 0) & (cy < H)
        v = im[:, jnp.clip(cy, 0, H - 1), jnp.clip(cx, 0, W - 1)]
        out = out + jnp.where(ok, wgt, 0.0)[None] * v
    return out[None]


def dgff3_reference(x, record_len, pairwise_t_matrix, p):
    _, C, H, W = x.shape
    B = int(pairwise_t_matrix.shape[0])
    starts = np.concatenate([[0], np.cumsum(np.asarray(record_len))])
    outs = []
    for b in range(B):
        xb = x[starts[b]:starts[b + 1]]
        if xb.shape[0] > 1:
            x1 = _conv2d(xb[0:1], p['down_vehicle_w'])
            x2 = _conv2d(xb[1:2], p['down_inf_w'])
            flow = _conv2d(jnp.concatenate([x1, x2], axis=1), p['flow_make_w'], 1)
            g = jax.nn.sigmoid(_conv2d(x1, p['gate_w'], 1)
                               + p['gate_b'][None, :, None, None])
            flow = flow * g
            x2 = _flow_warp_ref(x2, flow)
            concat = jnp.concatenate([x1, x2], axis=1)          # (1, 2C, H, W)
            d1 = _bn(_conv2d(concat, p['de_conv1_w'], 1), p['de_bn1'])
            d2 = _bn(_conv2d(concat, p['de_conv2_w']), p['de_bn2'])
            dd = _leaky(d1 + d2)
            da = _conv2d(dd, p['de_conv3_w']) + p['de_conv3_b'][None, :, None, None]
            da = jax.nn.softmax(da.reshape(1, C, 2, H, W), axis=2)
            s1 = _bn(_conv2d(concat, p['se_conv1_w'], 1), p['se_bn1'])
            s2 = _bn(_conv2d(concat, p['se_conv2_w']), p['se_bn2'])
            s3 = jnp.max(concat, axis=1, keepdims=True)
            sa = (s1 + s2 + s3).reshape(1, 1, 1, H, W)
            fused = (da * sa * concat.reshape(1, C, 2, H, W)).reshape(1, 2 * C, H, W)
            xb = _leaky(_bn(_conv2d(fused, p['dr_conv1_w']), p['dr_bn1']))
        outs.append(xb[0])
    return jnp.stack(outs)


# ----------------------------------------------------------------------------
# Deterministic parameters + demo
# ----------------------------------------------------------------------------
def make_params(key, C):
    F2 = 2 * C
    P = F2 // 8
    ks = jax.random.split(key, 20)

    def w(k, shape, fan_in):
        return jax.random.normal(k, shape, jnp.float32) / float(np.sqrt(fan_in))

    def bn(k, n):
        k1, k2, k3, k4 = jax.random.split(k, 4)
        return (1.0 + 0.1 * jax.random.normal(k1, (n,), jnp.float32),
                0.1 * jax.random.normal(k2, (n,), jnp.float32),
                0.1 * jax.random.normal(k3, (n,), jnp.float32),
                jax.random.uniform(k4, (n,), jnp.float32, 0.5, 1.5))

    return dict(
        down_vehicle_w=w(ks[0], (C, C, 1, 1), C),
        down_inf_w=w(ks[1], (C, C, 1, 1), C),
        flow_make_w=w(ks[2], (2, F2, 3, 3), 9 * F2),
        gate_w=w(ks[3], (2, C, 3, 3), 9 * C),
        gate_b=0.1 * jax.random.normal(ks[4], (2,), jnp.float32),
        de_conv1_w=w(ks[5], (P, F2, 3, 3), 9 * F2),
        de_bn1=bn(ks[6], P),
        de_conv2_w=w(ks[7], (P, F2, 1, 1), F2),
        de_bn2=bn(ks[8], P),
        de_conv3_w=w(ks[9], (F2, P, 1, 1), P),
        de_conv3_b=0.1 * jax.random.normal(ks[10], (F2,), jnp.float32),
        se_conv1_w=w(ks[11], (1, F2, 3, 3), 9 * F2),
        se_bn1=bn(ks[12], 1),
        se_conv2_w=w(ks[13], (1, F2, 1, 1), F2),
        se_bn2=bn(ks[14], 1),
        dr_conv1_w=w(ks[15], (C, F2, 1, 1), F2),
        dr_bn1=bn(ks[16], C),
    )


if __name__ == "__main__":
    key = jax.random.PRNGKey(0)
    k_feat, k_t, k_par = jax.random.split(key, 3)

    # single_dims=16, H=W=16; batch 0 has 2 CAVs (fusion path), batch 1 has 1
    # CAV (pass-through path).
    C, H, W = 16, 16, 16
    record_len = [2, 1]
    B, L = len(record_len), 5
    N = int(sum(record_len))

    x = jax.random.normal(k_feat, (N, C, H, W), jnp.float32)
    pairwise_t_matrix = jax.random.normal(k_t, (B, L, L, 4, 4), jnp.float32)
    params = make_params(k_par, C)

    out = dgff3_forward(x, record_len, pairwise_t_matrix, params)
    out = jax.block_until_ready(out)
    assert out.shape == (B, C, H, W)

    ref = jax.block_until_ready(
        dgff3_reference(x, record_len, pairwise_t_matrix, params))

    out_np = np.asarray(out, np.float32)
    ref_np = np.asarray(ref, np.float32)

    # Fused batch: kernel uses bf16 MXU operands + approx EUP reciprocals, so
    # expect ~1% relative error vs the full-f32 reference.
    rel_fused = (np.linalg.norm(out_np[0] - ref_np[0])
                 / np.linalg.norm(ref_np[0]))
    maxabs_fused = np.max(np.abs(out_np[0] - ref_np[0]))
    assert rel_fused < 5e-2, f"fused-batch relative L2 error too large: {rel_fused}"
    assert maxabs_fused < 5e-1, f"fused-batch max abs error too large: {maxabs_fused}"

    # Pass-through batch must be an exact copy.
    maxabs_pass = np.max(np.abs(out_np[1] - ref_np[1]))
    assert maxabs_pass < 1e-5, f"pass-through batch not exact: {maxabs_pass}"

    print("KERNEL_OK")
</pallas_src>

<mosaic_0001>
module attributes {stable_mosaic.version = 11 : i64} {
  func.func @dgff3_kernel(%arg0: i32, %arg1: memref<2x2xi32, #tpu.memory_space<smem>>, %arg2: memref<2xi32, #tpu.memory_space<smem>>, %arg3: memref<1x16x256xf32, #tpu.memory_space<vmem>>, %arg4: memref<1x16x256xf32, #tpu.memory_space<vmem>>, %arg5: memref<32x16xbf16, #tpu.memory_space<vmem>>, %arg6: memref<2x4x144xbf16, #tpu.memory_space<vmem>>, %arg7: memref<2x5x144xbf16, #tpu.memory_space<vmem>>, %arg8: memref<5x32xbf16, #tpu.memory_space<vmem>>, %arg9: memref<64x4xbf16, #tpu.memory_space<vmem>>, %arg10: memref<32x32xbf16, #tpu.memory_space<vmem>>, %arg11: memref<16x32xbf16, #tpu.memory_space<vmem>>, %arg12: memref<104x1xf32, #tpu.memory_space<vmem>>, %arg13: memref<11x256xf32, #tpu.memory_space<vmem>>, %arg14: memref<1x16x256xf32, #tpu.memory_space<vmem>>) attributes {dimension_semantics = [#tpu.dimension_semantics<parallel>], iteration_bounds = array<i64: 2>, scalar_prefetch = 2 : i64, scratch_operands = 0 : i64, tpu.core_type = #tpu.core_type<tc>, window_params = [{transform_indices = @transform_0, window_bounds = array<i64: 1, 16, 256>}, {transform_indices = @transform_1, window_bounds = array<i64: 1, 16, 256>}, {pipeline_mode = #tpu.pipeline_mode<synchronous>, transform_indices = @transform_2, window_bounds = array<i64: 32, 16>}, {pipeline_mode = #tpu.pipeline_mode<synchronous>, transform_indices = @transform_3, window_bounds = array<i64: 2, 4, 144>}, {pipeline_mode = #tpu.pipeline_mode<synchronous>, transform_indices = @transform_4, window_bounds = array<i64: 2, 5, 144>}, {pipeline_mode = #tpu.pipeline_mode<synchronous>, transform_indices = @transform_5, window_bounds = array<i64: 5, 32>}, {pipeline_mode = #tpu.pipeline_mode<synchronous>, transform_indices = @transform_6, window_bounds = array<i64: 64, 4>}, {pipeline_mode = #tpu.pipeline_mode<synchronous>, transform_indices = @transform_7, window_bounds = array<i64: 32, 32>}, {pipeline_mode = #tpu.pipeline_mode<synchronous>, transform_indices = @transform_8, window_bounds = array<i64: 16, 32>}, {pipeline_mode = #tpu.pipeline_mode<synchronous>, transform_indices = @transform_9, window_bounds = array<i64: 104, 1>}, {pipeline_mode = #tpu.pipeline_mode<synchronous>, transform_indices = @transform_10, window_bounds = array<i64: 11, 256>}, {transform_indices = @transform_11, window_bounds = array<i64: 1, 16, 256>}]} {
    %0 = arith.index_cast %arg0 : i32 to index
    %1 = memref.load %arg2[%0] : memref<2xi32, #tpu.memory_space<smem>>
    %c1_i32 = arith.constant 1 : i32
    %2 = arith.cmpi sgt, %1, %c1_i32 : i32
    %3 = arith.extui %2 : i1 to i32
    %c0_i32 = arith.constant 0 : i32
    %4 = arith.cmpi ne, %3, %c0_i32 : i32
    scf.if %4 {
      %c0 = arith.constant 0 : index
      %c0_2 = arith.constant 0 : index
      %c0_3 = arith.constant 0 : index
      %8 = vector.load %arg3[%c0, %c0_2, %c0_3] : memref<1x16x256xf32, #tpu.memory_space<vmem>>, vector<1x16x256xf32>
      %9 = vector.shape_cast %8 : vector<1x16x256xf32> to vector<16x256xf32>
      %c0_4 = arith.constant 0 : index
      %c0_5 = arith.constant 0 : index
      %c0_6 = arith.constant 0 : index
      %10 = vector.load %arg4[%c0_4, %c0_5, %c0_6] : memref<1x16x256xf32, #tpu.memory_space<vmem>>, vector<1x16x256xf32>
      %11 = vector.shape_cast %10 : vector<1x16x256xf32> to vector<16x256xf32>
      %c0_7 = arith.constant 0 : index
      %c0_8 = arith.constant 0 : index
      %12 = vector.load %arg13[%c0_7, %c0_8] : memref<11x256xf32, #tpu.memory_space<vmem>>, vector<11x256xf32>
      %13 = vector.extract_strided_slice %12 {offsets = [0, 0], sizes = [9, 256], strides = [1, 1]} : vector<11x256xf32> to vector<9x256xf32>
      %14 = vector.extract_strided_slice %12 {offsets = [9, 0], sizes = [1, 256], strides = [1, 1]} : vector<11x256xf32> to vector<1x256xf32>
      %15 = vector.extract_strided_slice %12 {offsets = [10, 0], sizes = [1, 256], strides = [1, 1]} : vector<11x256xf32> to vector<1x256xf32>
      %c0_9 = arith.constant 0 : index
      %c0_10 = arith.constant 0 : index
      %16 = vector.load %arg5[%c0_9, %c0_10] : memref<32x16xbf16, #tpu.memory_space<vmem>>, vector<16x16xbf16>
      %17 = arith.truncf %9 : vector<16x256xf32> to vector<16x256xbf16>
      %cst = arith.constant dense<0.000000e+00> : vector<16x256xf32>
      %18 = tpu.matmul %16, %17, %cst {dimension_numbers = #tpu.dot_dimension_numbers<[1], [0], [0], [1], [0, 0, 1, 1], [], []>} : vector<16x16xbf16>, vector<16x256xbf16>, vector<16x256xf32> -> vector<16x256xf32>
      %c16 = arith.constant 16 : index
      %c0_11 = arith.constant 0 : index
      %19 = vector.load %arg5[%c16, %c0_11] : memref<32x16xbf16, #tpu.memory_space<vmem>>, vector<16x16xbf16>
      %20 = arith.truncf %11 : vector<16x256xf32> to vector<16x256xbf16>
      %cst_12 = arith.constant dense<0.000000e+00> : vector<16x256xf32>
      %21 = tpu.matmul %19, %20, %cst_12 {dimension_numbers = #tpu.dot_dimension_numbers<[1], [0], [0], [1], [0, 0, 1, 1], [], []>} : vector<16x16xbf16>, vector<16x256xbf16>, vector<16x256xf32> -> vector<16x256xf32>
      %c17_i32 = arith.constant 17 : i32
      %22 = tpu.dynamic_rotate %18 by %c17_i32 dim 1 : vector<16x256xf32>, i32 -> vector<16x256xf32>
      %23 = vector.extract_strided_slice %13 {offsets = [0, 0], sizes = [1, 256], strides = [1, 1]} : vector<9x256xf32> to vector<1x256xf32>
      %24 = vector.broadcast %23 : vector<1x256xf32> to vector<16x256xf32>
      %25 = arith.mulf %22, %24 : vector<16x256xf32>
      %26 = arith.truncf %25 : vector<16x256xf32> to vector<16x256xbf16>
      %c16_i32 = arith.constant 16 : i32
      %27 = tpu.dynamic_rotate %18 by %c16_i32 dim 1 : vector<16x256xf32>, i32 -> vector<16x256xf32>
      %28 = vector.extract_strided_slice %13 {offsets = [1, 0], sizes = [1, 256], strides = [1, 1]} : vector<9x256xf32> to vector<1x256xf32>
      %29 = vector.broadcast %28 : vector<1x256xf32> to vector<16x256xf32>
      %30 = arith.mulf %27, %29 : vector<16x256xf32>
      %31 = arith.truncf %30 : vector<16x256xf32> to vector<16x256xbf16>
      %c15_i32 = arith.constant 15 : i32
      %32 = tpu.dynamic_rotate %18 by %c15_i32 dim 1 : vector<16x256xf32>, i32 -> vector<16x256xf32>
      %33 = vector.extract_strided_slice %13 {offsets = [2, 0], sizes = [1, 256], strides = [1, 1]} : vector<9x256xf32> to vector<1x256xf32>
      %34 = vector.broadcast %33 : vector<1x256xf32> to vector<16x256xf32>
      %35 = arith.mulf %32, %34 : vector<16x256xf32>
      %36 = arith.truncf %35 : vector<16x256xf32> to vector<16x256xbf16>
      %c1_i32_13 = arith.constant 1 : i32
      %37 = tpu.dynamic_rotate %18 by %c1_i32_13 dim 1 : vector<16x256xf32>, i32 -> vector<16x256xf32>
      %38 = vector.extract_strided_slice %13 {offsets = [3, 0], sizes = [1, 256], strides = [1, 1]} : vector<9x256xf32> to vector<1x256xf32>
      %39 = vector.broadcast %38 : vector<1x256xf32> to vector<16x256xf32>
      %40 = arith.mulf %37, %39 : vector<16x256xf32>
      %41 = arith.truncf %40 : vector<16x256xf32> to vector<16x256xbf16>
      %c0_i32_14 = arith.constant 0 : i32
      %42 = tpu.dynamic_rotate %18 by %c0_i32_14 dim 1 : vector<16x256xf32>, i32 -> vector<16x256xf32>
      %43 = vector.extract_strided_slice %13 {offsets = [4, 0], sizes = [1, 256], strides = [1, 1]} : vector<9x256xf32> to vector<1x256xf32>
      %44 = vector.broadcast %43 : vector<1x256xf32> to vector<16x256xf32>
      %45 = arith.mulf %42, %44 : vector<16x256xf32>
      %46 = arith.truncf %45 : vector<16x256xf32> to vector<16x256xbf16>
      %c255_i32 = arith.constant 255 : i32
      %47 = tpu.dynamic_rotate %18 by %c255_i32 dim 1 : vector<16x256xf32>, i32 -> vector<16x256xf32>
      %48 = vector.extract_strided_slice %13 {offsets = [5, 0], sizes = [1, 256], strides = [1, 1]} : vector<9x256xf32> to vector<1x256xf32>
      %49 = vector.broadcast %48 : vector<1x256xf32> to vector<16x256xf32>
      %50 = arith.mulf %47, %49 : vector<16x256xf32>
      %51 = arith.truncf %50 : vector<16x256xf32> to vector<16x256xbf16>
      %c241_i32 = arith.constant 241 : i32
      %52 = tpu.dynamic_rotate %18 by %c241_i32 dim 1 : vector<16x256xf32>, i32 -> vector<16x256xf32>
      %53 = vector.extract_strided_slice %13 {offsets = [6, 0], sizes = [1, 256], strides = [1, 1]} : vector<9x256xf32> to vector<1x256xf32>
      %54 = vector.broadcast %53 : vector<1x256xf32> to vector<16x256xf32>
      %55 = arith.mulf %52, %54 : vector<16x256xf32>
      %56 = arith.truncf %55 : vector<16x256xf32> to vector<16x256xbf16>
      %c240_i32 = arith.constant 240 : i32
      %57 = tpu.dynamic_rotate %18 by %c240_i32 dim 1 : vector<16x256xf32>, i32 -> vector<16x256xf32>
      %58 = vector.extract_strided_slice %13 {offsets = [7, 0], sizes = [1, 256], strides = [1, 1]} : vector<9x256xf32> to vector<1x256xf32>
      %59 = vector.broadcast %58 : vector<1x256xf32> to vector<16x256xf32>
      %60 = arith.mulf %57, %59 : vector<16x256xf32>
      %61 = arith.truncf %60 : vector<16x256xf32> to vector<16x256xbf16>
      %c239_i32 = arith.constant 239 : i32
      %62 = tpu.dynamic_rotate %18 by %c239_i32 dim 1 : vector<16x256xf32>, i32 -> vector<16x256xf32>
      %63 = vector.extract_strided_slice %13 {offsets = [8, 0], sizes = [1, 256], strides = [1, 1]} : vector<9x256xf32> to vector<1x256xf32>
      %64 = vector.broadcast %63 : vector<1x256xf32> to vector<16x256xf32>
      %65 = arith.mulf %62, %64 : vector<16x256xf32>
      %66 = arith.truncf %65 : vector<16x256xf32> to vector<16x256xbf16>
      %67 = tpu.concatenate %26, %31, %36, %41, %46, %51, %56, %61, %66 in 0 : vector<16x256xbf16>, vector<16x256xbf16>, vector<16x256xbf16>, vector<16x256xbf16>, vector<16x256xbf16>, vector<16x256xbf16>, vector<16x256xbf16>, vector<16x256xbf16>, vector<16x256xbf16> -> vector<144x256xbf16>
      %c17_i32_15 = arith.constant 17 : i32
      %68 = tpu.dynamic_rotate %21 by %c17_i32_15 dim 1 : vector<16x256xf32>, i32 -> vector<16x256xf32>
      %69 = vector.extract_strided_slice %13 {offsets = [0, 0], sizes = [1, 256], strides = [1, 1]} : vector<9x256xf32> to vector<1x256xf32>
      %70 = vector.broadcast %69 : vector<1x256xf32> to vector<16x256xf32>
      %71 = arith.mulf %68, %70 : vector<16x256xf32>
      %72 = arith.truncf %71 : vector<16x256xf32> to vector<16x256xbf16>
      %c16_i32_16 = arith.constant 16 : i32
      %73 = tpu.dynamic_rotate %21 by %c16_i32_16 dim 1 : vector<16x256xf32>, i32 -> vector<16x256xf32>
      %74 = vector.extract_strided_slice %13 {offsets = [1, 0], sizes = [1, 256], strides = [1, 1]} : vector<9x256xf32> to vector<1x256xf32>
      %75 = vector.broadcast %74 : vector<1x256xf32> to vector<16x256xf32>
      %76 = arith.mulf %73, %75 : vector<16x256xf32>
      %77 = arith.truncf %76 : vector<16x256xf32> to vector<16x256xbf16>
      %c15_i32_17 = arith.constant 15 : i32
      %78 = tpu.dynamic_rotate %21 by %c15_i32_17 dim 1 : vector<16x256xf32>, i32 -> vector<16x256xf32>
      %79 = vector.extract_strided_slice %13 {offsets = [2, 0], sizes = [1, 256], strides = [1, 1]} : vector<9x256xf32> to vector<1x256xf32>
      %80 = vector.broadcast %79 : vector<1x256xf32> to vector<16x256xf32>
      %81 = arith.mulf %78, %80 : vector<16x256xf32>
      %82 = arith.truncf %81 : vector<16x256xf32> to vector<16x256xbf16>
      %c1_i32_18 = arith.constant 1 : i32
      %83 = tpu.dynamic_rotate %21 by %c1_i32_18 dim 1 : vector<16x256xf32>, i32 -> vector<16x256xf32>
      %84 = vector.extract_strided_slice %13 {offsets = [3, 0], sizes = [1, 256], strides = [1, 1]} : vector<9x256xf32> to vector<1x256xf32>
      %85 = vector.broadcast %84 : vector<1x256xf32> to vector<16x256xf32>
      %86 = arith.mulf %83, %85 : vector<16x256xf32>
      %87 = arith.truncf %86 : vector<16x256xf32> to vector<16x256xbf16>
      %c0_i32_19 = arith.constant 0 : i32
      %88 = tpu.dynamic_rotate %21 by %c0_i32_19 dim 1 : vector<16x256xf32>, i32 -> vector<16x256xf32>
      %89 = vector.extract_strided_slice %13 {offsets = [4, 0], sizes = [1, 256], strides = [1, 1]} : vector<9x256xf32> to vector<1x256xf32>
      %90 = vector.broadcast %89 : vector<1x256xf32> to vector<16x256xf32>
      %91 = arith.mulf %88, %90 : vector<16x256xf32>
      %92 = arith.truncf %91 : vector<16x256xf32> to vector<16x256xbf16>
      %c255_i32_20 = arith.constant 255 : i32
      %93 = tpu.dynamic_rotate %21 by %c255_i32_20 dim 1 : vector<16x256xf32>, i32 -> vector<16x256xf32>
      %94 = vector.extract_strided_slice %13 {offsets = [5, 0], sizes = [1, 256], strides = [1, 1]} : vector<9x256xf32> to vector<1x256xf32>
      %95 = vector.broadcast %94 : vector<1x256xf32> to vector<16x256xf32>
      %96 = arith.mulf %93, %95 : vector<16x256xf32>
      %97 = arith.truncf %96 : vector<16x256xf32> to vector<16x256xbf16>
      %c241_i32_21 = arith.constant 241 : i32
      %98 = tpu.dynamic_rotate %21 by %c241_i32_21 dim 1 : vector<16x256xf32>, i32 -> vector<16x256xf32>
      %99 = vector.extract_strided_slice %13 {offsets = [6, 0], sizes = [1, 256], strides = [1, 1]} : vector<9x256xf32> to vector<1x256xf32>
      %100 = vector.broadcast %99 : vector<1x256xf32> to vector<16x256xf32>
      %101 = arith.mulf %98, %100 : vector<16x256xf32>
      %102 = arith.truncf %101 : vector<16x256xf32> to vector<16x256xbf16>
      %c240_i32_22 = arith.constant 240 : i32
      %103 = tpu.dynamic_rotate %21 by %c240_i32_22 dim 1 : vector<16x256xf32>, i32 -> vector<16x256xf32>
      %104 = vector.extract_strided_slice %13 {offsets = [7, 0], sizes = [1, 256], strides = [1, 1]} : vector<9x256xf32> to vector<1x256xf32>
      %105 = vector.broadcast %104 : vector<1x256xf32> to vector<16x256xf32>
      %106 = arith.mulf %103, %105 : vector<16x256xf32>
      %107 = arith.truncf %106 : vector<16x256xf32> to vector<16x256xbf16>
      %c239_i32_23 = arith.constant 239 : i32
      %108 = tpu.dynamic_rotate %21 by %c239_i32_23 dim 1 : vector<16x256xf32>, i32 -> vector<16x256xf32>
      %109 = vector.extract_strided_slice %13 {offsets = [8, 0], sizes = [1, 256], strides = [1, 1]} : vector<9x256xf32> to vector<1x256xf32>
      %110 = vector.broadcast %109 : vector<1x256xf32> to vector<16x256xf32>
      %111 = arith.mulf %108, %110 : vector<16x256xf32>
      %112 = arith.truncf %111 : vector<16x256xf32> to vector<16x256xbf16>
      %113 = tpu.concatenate %72, %77, %82, %87, %92, %97, %102, %107, %112 in 0 : vector<16x256xbf16>, vector<16x256xbf16>, vector<16x256xbf16>, vector<16x256xbf16>, vector<16x256xbf16>, vector<16x256xbf16>, vector<16x256xbf16>, vector<16x256xbf16>, vector<16x256xbf16> -> vector<144x256xbf16>
      %c0_24 = arith.constant 0 : index
      %c0_25 = arith.constant 0 : index
      %114 = vector.load %arg12[%c0_24, %c0_25] : memref<104x1xf32, #tpu.memory_space<vmem>>, vector<4x1xf32>
      %c0_26 = arith.constant 0 : index
      %c0_27 = arith.constant 0 : index
      %c0_28 = arith.constant 0 : index
      %115 = vector.load %arg6[%c0_26, %c0_27, %c0_28] : memref<2x4x144xbf16, #tpu.memory_space<vmem>>, vector<1x4x144xbf16>
      %116 = vector.shape_cast %115 : vector<1x4x144xbf16> to vector<4x144xbf16>
      %cst_29 = arith.constant dense<0.000000e+00> : vector<4x256xf32>
      %117 = tpu.matmul %116, %67, %cst_29 {dimension_numbers = #tpu.dot_dimension_numbers<[1], [0], [0], [1], [0, 0, 1, 1], [], []>} : vector<4x144xbf16>, vector<144x256xbf16>, vector<4x256xf32> -> vector<4x256xf32>
      %c1 = arith.constant 1 : index
      %c0_30 = arith.constant 0 : index
      %c0_31 = arith.constant 0 : index
      %118 = vector.load %arg6[%c1, %c0_30, %c0_31] : memref<2x4x144xbf16, #tpu.memory_space<vmem>>, vector<1x4x144xbf16>
      %119 = vector.shape_cast %118 : vector<1x4x144xbf16> to vector<4x144xbf16>
      %cst_32 = arith.constant dense<0.000000e+00> : vector<4x256xf32>
      %120 = tpu.matmul %119, %113, %cst_32 {dimension_numbers = #tpu.dot_dimension_numbers<[1], [0], [0], [1], [0, 0, 1, 1], [], []>} : vector<4x144xbf16>, vector<144x256xbf16>, vector<4x256xf32> -> vector<4x256xf32>
      %121 = arith.addf %117, %120 : vector<4x256xf32>
      %122 = vector.broadcast %114 : vector<4x1xf32> to vector<4x256xf32>
      %123 = arith.addf %121, %122 : vector<4x256xf32>
      %124 = vector.extract_strided_slice %123 {offsets = [2, 0], sizes = [2, 256], strides = [1, 1]} : vector<4x256xf32> to vector<2x256xf32>
      %cst_33 = arith.constant 0.000000e+00 : f32
      %125 = vector.broadcast %cst_33 : f32 to vector<2x256xf32>
      %126 = arith.subf %125, %124 : vector<2x256xf32>
      %127 = math.exp %126 : vector<2x256xf32>
      %cst_34 = arith.constant 1.000000e+00 : f32
      %128 = vector.broadcast %cst_34 : f32 to vector<2x256xf32>
      %129 = arith.addf %128, %127 : vector<2x256xf32>
      %130 = tpu.reciprocal %129 {approx = true} : vector<2x256xf32> -> vector<2x256xf32>
      %131 = vector.extract_strided_slice %123 {offsets = [0, 0], sizes = [2, 256], strides = [1, 1]} : vector<4x256xf32> to vector<2x256xf32>
      %132 = arith.mulf %131, %130 : vector<2x256xf32>
      %133 = vector.extract_strided_slice %132 {offsets = [0, 0], sizes = [1, 256], strides = [1, 1]} : vector<2x256xf32> to vector<1x256xf32>
      %cst_35 = arith.constant 6.250000e-02 : f32
      %134 = vector.broadcast %cst_35 : f32 to vector<1x256xf32>
      %135 = arith.mulf %133, %134 : vector<1x256xf32>
      %136 = arith.addf %14, %135 : vector<1x256xf32>
      %137 = vector.extract_strided_slice %132 {offsets = [1, 0], sizes = [1, 256], strides = [1, 1]} : vector<2x256xf32> to vector<1x256xf32>
      %cst_36 = arith.constant 6.250000e-02 : f32
      %138 = vector.broadcast %cst_36 : f32 to vector<1x256xf32>
      %139 = arith.mulf %137, %138 : vector<1x256xf32>
      %140 = arith.addf %15, %139 : vector<1x256xf32>
      %cst_37 = arith.constant 1.000000e+00 : f32
      %141 = vector.broadcast %cst_37 : f32 to vector<1x256xf32>
      %142 = arith.addf %136, %141 : vector<1x256xf32>
      %cst_38 = arith.constant 1.600000e+01 : f32
      %143 = vector.broadcast %cst_38 : f32 to vector<1x256xf32>
      %144 = arith.mulf %142, %143 : vector<1x256xf32>
      %cst_39 = arith.constant 1.000000e+00 : f32
      %145 = vector.broadcast %cst_39 : f32 to vector<1x256xf32>
      %146 = arith.subf %144, %145 : vector<1x256xf32>
      %cst_40 = arith.constant 5.000000e-01 : f32
      %147 = vector.broadcast %cst_40 : f32 to vector<1x256xf32>
      %148 = arith.mulf %146, %147 : vector<1x256xf32>
      %cst_41 = arith.constant 1.000000e+00 : f32
      %149 = vector.broadcast %cst_41 : f32 to vector<1x256xf32>
      %150 = arith.addf %140, %149 : vector<1x256xf32>
      %cst_42 = arith.constant 1.600000e+01 : f32
      %151 = vector.broadcast %cst_42 : f32 to vector<1x256xf32>
      %152 = arith.mulf %150, %151 : vector<1x256xf32>
      %cst_43 = arith.constant 1.000000e+00 : f32
      %153 = vector.broadcast %cst_43 : f32 to vector<1x256xf32>
      %154 = arith.subf %152, %153 : vector<1x256xf32>
      %cst_44 = arith.constant 5.000000e-01 : f32
      %155 = vector.broadcast %cst_44 : f32 to vector<1x256xf32>
      %156 = arith.mulf %154, %155 : vector<1x256xf32>
      %157 = math.floor %148 : vector<1x256xf32>
      %158 = math.floor %156 : vector<1x256xf32>
      %159 = arith.subf %148, %157 : vector<1x256xf32>
      %160 = arith.subf %156, %158 : vector<1x256xf32>
      %161 = arith.fptosi %157 : vector<1x256xf32> to vector<1x256xi32>
      %162 = arith.fptosi %158 : vector<1x256xf32> to vector<1x256xi32>
      %163 = arith.truncf %21 : vector<16x256xf32> to vector<16x256xbf16>
      %164 = tpu.iota {dimensions = array<i32: 0>} : vector<256x256xi32>
      %cst_45 = arith.constant 1.000000e+00 : f32
      %165 = vector.broadcast %cst_45 : f32 to vector<1x256xf32>
      %166 = arith.subf %165, %159 : vector<1x256xf32>
      %cst_46 = arith.constant 1.000000e+00 : f32
      %167 = vector.broadcast %cst_46 : f32 to vector<1x256xf32>
      %168 = arith.subf %167, %160 : vector<1x256xf32>
      %169 = arith.mulf %166, %168 : vector<1x256xf32>
      %cst_47 = arith.constant 1.000000e+00 : f32
      %170 = vector.broadcast %cst_47 : f32 to vector<1x256xf32>
      %171 = arith.subf %170, %160 : vector<1x256xf32>
      %172 = arith.mulf %159, %171 : vector<1x256xf32>
      %cst_48 = arith.constant 1.000000e+00 : f32
      %173 = vector.broadcast %cst_48 : f32 to vector<1x256xf32>
      %174 = arith.subf %173, %159 : vector<1x256xf32>
      %175 = arith.mulf %174, %160 : vector<1x256xf32>
      %176 = arith.mulf %159, %160 : vector<1x256xf32>
      %c0_i32_49 = arith.constant 0 : i32
      %177 = vector.broadcast %c0_i32_49 : i32 to vector<1x256xi32>
      %178 = arith.addi %161, %177 : vector<1x256xi32>
      %c0_i32_50 = arith.constant 0 : i32
      %179 = vector.broadcast %c0_i32_50 : i32 to vector<1x256xi32>
      %180 = arith.addi %162, %179 : vector<1x256xi32>
      %c0_i32_51 = arith.constant 0 : i32
      %181 = vector.broadcast %c0_i32_51 : i32 to vector<1x256xi32>
      %182 = arith.cmpi sge, %178, %181 : vector<1x256xi32>
      %c16_i32_52 = arith.constant 16 : i32
      %183 = vector.broadcast %c16_i32_52 : i32 to vector<1x256xi32>
      %184 = arith.cmpi slt, %178, %183 : vector<1x256xi32>
      %185 = arith.andi %182, %184 : vector<1x256xi1>
      %c0_i32_53 = arith.constant 0 : i32
      %186 = vector.broadcast %c0_i32_53 : i32 to vector<1x256xi32>
      %187 = arith.cmpi sge, %180, %186 : vector<1x256xi32>
      %188 = arith.andi %185, %187 : vector<1x256xi1>
      %c16_i32_54 = arith.constant 16 : i32
      %189 = vector.broadcast %c16_i32_54 : i32 to vector<1x256xi32>
      %190 = arith.cmpi slt, %180, %189 : vector<1x256xi32>
      %191 = arith.andi %188, %190 : vector<1x256xi1>
      %cst_55 = arith.constant 0.000000e+00 : f32
      %192 = vector.broadcast %cst_55 : f32 to vector<1x256xf32>
      %193 = arith.select %191, %169, %192 : vector<1x256xi1>, vector<1x256xf32>
      %c0_i32_56 = arith.constant 0 : i32
      %c15_i32_57 = arith.constant 15 : i32
      %194 = vector.broadcast %c0_i32_56 : i32 to vector<1x256xi32>
      %195 = arith.maxsi %194, %180 : vector<1x256xi32>
      %196 = vector.broadcast %c15_i32_57 : i32 to vector<1x256xi32>
      %197 = arith.minsi %196, %195 : vector<1x256xi32>
      %c16_i32_58 = arith.constant 16 : i32
      %198 = vector.broadcast %c16_i32_58 : i32 to vector<1x256xi32>
      %199 = arith.muli %197, %198 : vector<1x256xi32>
      %c0_i32_59 = arith.constant 0 : i32
      %c15_i32_60 = arith.constant 15 : i32
      %200 = vector.broadcast %c0_i32_59 : i32 to vector<1x256xi32>
      %201 = arith.maxsi %200, %178 : vector<1x256xi32>
      %202 = vector.broadcast %c15_i32_60 : i32 to vector<1x256xi32>
      %203 = arith.minsi %202, %201 : vector<1x256xi32>
      %204 = arith.addi %199, %203 : vector<1x256xi32>
      %205 = vector.broadcast %204 : vector<1x256xi32> to vector<256x256xi32>
      %206 = arith.cmpi eq, %164, %205 : vector<256x256xi32>
      %cst_61 = arith.constant 0.000000e+00 : f32
      %207 = vector.shape_cast %193 : vector<1x256xf32> to vector<1x256xf32>
      %208 = vector.broadcast %207 : vector<1x256xf32> to vector<256x256xf32>
      %209 = vector.broadcast %cst_61 : f32 to vector<256x256xf32>
      %210 = arith.select %206, %208, %209 : vector<256x256xi1>, vector<256x256xf32>
      %c1_i32_62 = arith.constant 1 : i32
      %211 = vector.broadcast %c1_i32_62 : i32 to vector<1x256xi32>
      %212 = arith.addi %161, %211 : vector<1x256xi32>
      %c0_i32_63 = arith.constant 0 : i32
      %213 = vector.broadcast %c0_i32_63 : i32 to vector<1x256xi32>
      %214 = arith.addi %162, %213 : vector<1x256xi32>
      %c0_i32_64 = arith.constant 0 : i32
      %215 = vector.broadcast %c0_i32_64 : i32 to vector<1x256xi32>
      %216 = arith.cmpi sge, %212, %215 : vector<1x256xi32>
      %c16_i32_65 = arith.constant 16 : i32
      %217 = vector.broadcast %c16_i32_65 : i32 to vector<1x256xi32>
      %218 = arith.cmpi slt, %212, %217 : vector<1x256xi32>
      %219 = arith.andi %216, %218 : vector<1x256xi1>
      %c0_i32_66 = arith.constant 0 : i32
      %220 = vector.broadcast %c0_i32_66 : i32 to vector<1x256xi32>
      %221 = arith.cmpi sge, %214, %220 : vector<1x256xi32>
      %222 = arith.andi %219, %221 : vector<1x256xi1>
      %c16_i32_67 = arith.constant 16 : i32
      %223 = vector.broadcast %c16_i32_67 : i32 to vector<1x256xi32>
      %224 = arith.cmpi slt, %214, %223 : vector<1x256xi32>
      %225 = arith.andi %222, %224 : vector<1x256xi1>
      %cst_68 = arith.constant 0.000000e+00 : f32
      %226 = vector.broadcast %cst_68 : f32 to vector<1x256xf32>
      %227 = arith.select %225, %172, %226 : vector<1x256xi1>, vector<1x256xf32>
      %c0_i32_69 = arith.constant 0 : i32
      %c15_i32_70 = arith.constant 15 : i32
      %228 = vector.broadcast %c0_i32_69 : i32 to vector<1x256xi32>
      %229 = arith.maxsi %228, %214 : vector<1x256xi32>
      %230 = vector.broadcast %c15_i32_70 : i32 to vector<1x256xi32>
      %231 = arith.minsi %230, %229 : vector<1x256xi32>
      %c16_i32_71 = arith.constant 16 : i32
      %232 = vector.broadcast %c16_i32_71 : i32 to vector<1x256xi32>
      %233 = arith.muli %231, %232 : vector<1x256xi32>
      %c0_i32_72 = arith.constant 0 : i32
      %c15_i32_73 = arith.constant 15 : i32
      %234 = vector.broadcast %c0_i32_72 : i32 to vector<1x256xi32>
      %235 = arith.maxsi %234, %212 : vector<1x256xi32>
      %236 = vector.broadcast %c15_i32_73 : i32 to vector<1x256xi32>
      %237 = arith.minsi %236, %235 : vector<1x256xi32>
      %238 = arith.addi %233, %237 : vector<1x256xi32>
      %239 = vector.broadcast %238 : vector<1x256xi32> to vector<256x256xi32>
      %240 = arith.cmpi eq, %164, %239 : vector<256x256xi32>
      %cst_74 = arith.constant 0.000000e+00 : f32
      %241 = vector.shape_cast %227 : vector<1x256xf32> to vector<1x256xf32>
      %242 = vector.broadcast %241 : vector<1x256xf32> to vector<256x256xf32>
      %243 = vector.broadcast %cst_74 : f32 to vector<256x256xf32>
      %244 = arith.select %240, %242, %243 : vector<256x256xi1>, vector<256x256xf32>
      %245 = arith.addf %210, %244 : vector<256x256xf32>
      %c0_i32_75 = arith.constant 0 : i32
      %246 = vector.broadcast %c0_i32_75 : i32 to vector<1x256xi32>
      %247 = arith.addi %161, %246 : vector<1x256xi32>
      %c1_i32_76 = arith.constant 1 : i32
      %248 = vector.broadcast %c1_i32_76 : i32 to vector<1x256xi32>
      %249 = arith.addi %162, %248 : vector<1x256xi32>
      %c0_i32_77 = arith.constant 0 : i32
      %250 = vector.broadcast %c0_i32_77 : i32 to vector<1x256xi32>
      %251 = arith.cmpi sge, %247, %250 : vector<1x256xi32>
      %c16_i32_78 = arith.constant 16 : i32
      %252 = vector.broadcast %c16_i32_78 : i32 to vector<1x256xi32>
      %253 = arith.cmpi slt, %247, %252 : vector<1x256xi32>
      %254 = arith.andi %251, %253 : vector<1x256xi1>
      %c0_i32_79 = arith.constant 0 : i32
      %255 = vector.broadcast %c0_i32_79 : i32 to vector<1x256xi32>
      %256 = arith.cmpi sge, %249, %255 : vector<1x256xi32>
      %257 = arith.andi %254, %256 : vector<1x256xi1>
      %c16_i32_80 = arith.constant 16 : i32
      %258 = vector.broadcast %c16_i32_80 : i32 to vector<1x256xi32>
      %259 = arith.cmpi slt, %249, %258 : vector<1x256xi32>
      %260 = arith.andi %257, %259 : vector<1x256xi1>
      %cst_81 = arith.constant 0.000000e+00 : f32
      %261 = vector.broadcast %cst_81 : f32 to vector<1x256xf32>
      %262 = arith.select %260, %175, %261 : vector<1x256xi1>, vector<1x256xf32>
      %c0_i32_82 = arith.constant 0 : i32
      %c15_i32_83 = arith.constant 15 : i32
      %263 = vector.broadcast %c0_i32_82 : i32 to vector<1x256xi32>
      %264 = arith.maxsi %263, %249 : vector<1x256xi32>
      %265 = vector.broadcast %c15_i32_83 : i32 to vector<1x256xi32>
      %266 = arith.minsi %265, %264 : vector<1x256xi32>
      %c16_i32_84 = arith.constant 16 : i32
      %267 = vector.broadcast %c16_i32_84 : i32 to vector<1x256xi32>
      %268 = arith.muli %266, %267 : vector<1x256xi32>
      %c0_i32_85 = arith.constant 0 : i32
      %c15_i32_86 = arith.constant 15 : i32
      %269 = vector.broadcast %c0_i32_85 : i32 to vector<1x256xi32>
      %270 = arith.maxsi %269, %247 : vector<1x256xi32>
      %271 = vector.broadcast %c15_i32_86 : i32 to vector<1x256xi32>
      %272 = arith.minsi %271, %270 : vector<1x256xi32>
      %273 = arith.addi %268, %272 : vector<1x256xi32>
      %274 = vector.broadcast %273 : vector<1x256xi32> to vector<256x256xi32>
      %275 = arith.cmpi eq, %164, %274 : vector<256x256xi32>
      %cst_87 = arith.constant 0.000000e+00 : f32
      %276 = vector.shape_cast %262 : vector<1x256xf32> to vector<1x256xf32>
      %277 = vector.broadcast %276 : vector<1x256xf32> to vector<256x256xf32>
      %278 = vector.broadcast %cst_87 : f32 to vector<256x256xf32>
      %279 = arith.select %275, %277, %278 : vector<256x256xi1>, vector<256x256xf32>
      %280 = arith.addf %245, %279 : vector<256x256xf32>
      %c1_i32_88 = arith.constant 1 : i32
      %281 = vector.broadcast %c1_i32_88 : i32 to vector<1x256xi32>
      %282 = arith.addi %161, %281 : vector<1x256xi32>
      %c1_i32_89 = arith.constant 1 : i32
      %283 = vector.broadcast %c1_i32_89 : i32 to vector<1x256xi32>
      %284 = arith.addi %162, %283 : vector<1x256xi32>
      %c0_i32_90 = arith.constant 0 : i32
      %285 = vector.broadcast %c0_i32_90 : i32 to vector<1x256xi32>
      %286 = arith.cmpi sge, %282, %285 : vector<1x256xi32>
      %c16_i32_91 = arith.constant 16 : i32
      %287 = vector.broadcast %c16_i32_91 : i32 to vector<1x256xi32>
      %288 = arith.cmpi slt, %282, %287 : vector<1x256xi32>
      %289 = arith.andi %286, %288 : vector<1x256xi1>
      %c0_i32_92 = arith.constant 0 : i32
      %290 = vector.broadcast %c0_i32_92 : i32 to vector<1x256xi32>
      %291 = arith.cmpi sge, %284, %290 : vector<1x256xi32>
      %292 = arith.andi %289, %291 : vector<1x256xi1>
      %c16_i32_93 = arith.constant 16 : i32
      %293 = vector.broadcast %c16_i32_93 : i32 to vector<1x256xi32>
      %294 = arith.cmpi slt, %284, %293 : vector<1x256xi32>
      %295 = arith.andi %292, %294 : vector<1x256xi1>
      %cst_94 = arith.constant 0.000000e+00 : f32
      %296 = vector.broadcast %cst_94 : f32 to vector<1x256xf32>
      %297 = arith.select %295, %176, %296 : vector<1x256xi1>, vector<1x256xf32>
      %c0_i32_95 = arith.constant 0 : i32
      %c15_i32_96 = arith.constant 15 : i32
      %298 = vector.broadcast %c0_i32_95 : i32 to vector<1x256xi32>
      %299 = arith.maxsi %298, %284 : vector<1x256xi32>
      %300 = vector.broadcast %c15_i32_96 : i32 to vector<1x256xi32>
      %301 = arith.minsi %300, %299 : vector<1x256xi32>
      %c16_i32_97 = arith.constant 16 : i32
      %302 = vector.broadcast %c16_i32_97 : i32 to vector<1x256xi32>
      %303 = arith.muli %301, %302 : vector<1x256xi32>
      %c0_i32_98 = arith.constant 0 : i32
      %c15_i32_99 = arith.constant 15 : i32
      %304 = vector.broadcast %c0_i32_98 : i32 to vector<1x256xi32>
      %305 = arith.maxsi %304, %282 : vector<1x256xi32>
      %306 = vector.broadcast %c15_i32_99 : i32 to vector<1x256xi32>
      %307 = arith.minsi %306, %305 : vector<1x256xi32>
      %308 = arith.addi %303, %307 : vector<1x256xi32>
      %309 = vector.broadcast %308 : vector<1x256xi32> to vector<256x256xi32>
      %310 = arith.cmpi eq, %164, %309 : vector<256x256xi32>
      %cst_100 = arith.constant 0.000000e+00 : f32
      %311 = vector.shape_cast %297 : vector<1x256xf32> to vector<1x256xf32>
      %312 = vector.broadcast %311 : vector<1x256xf32> to vector<256x256xf32>
      %313 = vector.broadcast %cst_100 : f32 to vector<256x256xf32>
      %314 = arith.select %310, %312, %313 : vector<256x256xi1>, vector<256x256xf32>
      %315 = arith.addf %280, %314 : vector<256x256xf32>
      %316 = arith.truncf %315 : vector<256x256xf32> to vector<256x256xbf16>
      %cst_101 = arith.constant dense<0.000000e+00> : vector<16x256xf32>
      %317 = tpu.matmul %163, %316, %cst_101 {dimension_numbers = #tpu.dot_dimension_numbers<[1], [0], [0], [1], [0, 0, 1, 1], [], []>} : vector<16x256xbf16>, vector<256x256xbf16>, vector<16x256xf32> -> vector<16x256xf32>
      %c17_i32_102 = arith.constant 17 : i32
      %318 = tpu.dynamic_rotate %317 by %c17_i32_102 dim 1 : vector<16x256xf32>, i32 -> vector<16x256xf32>
      %319 = vector.extract_strided_slice %13 {offsets = [0, 0], sizes = [1, 256], strides = [1, 1]} : vector<9x256xf32> to vector<1x256xf32>
      %320 = vector.broadcast %319 : vector<1x256xf32> to vector<16x256xf32>
      %321 = arith.mulf %318, %320 : vector<16x256xf32>
      %322 = arith.truncf %321 : vector<16x256xf32> to vector<16x256xbf16>
      %c16_i32_103 = arith.constant 16 : i32
      %323 = tpu.dynamic_rotate %317 by %c16_i32_103 dim 1 : vector<16x256xf32>, i32 -> vector<16x256xf32>
      %324 = vector.extract_strided_slice %13 {offsets = [1, 0], sizes = [1, 256], strides = [1, 1]} : vector<9x256xf32> to vector<1x256xf32>
      %325 = vector.broadcast %324 : vector<1x256xf32> to vector<16x256xf32>
      %326 = arith.mulf %323, %325 : vector<16x256xf32>
      %327 = arith.truncf %326 : vector<16x256xf32> to vector<16x256xbf16>
      %c15_i32_104 = arith.constant 15 : i32
      %328 = tpu.dynamic_rotate %317 by %c15_i32_104 dim 1 : vector<16x256xf32>, i32 -> vector<16x256xf32>
      %329 = vector.extract_strided_slice %13 {offsets = [2, 0], sizes = [1, 256], strides = [1, 1]} : vector<9x256xf32> to vector<1x256xf32>
      %330 = vector.broadcast %329 : vector<1x256xf32> to vector<16x256xf32>
      %331 = arith.mulf %328, %330 : vector<16x256xf32>
      %332 = arith.truncf %331 : vector<16x256xf32> to vector<16x256xbf16>
      %c1_i32_105 = arith.constant 1 : i32
      %333 = tpu.dynamic_rotate %317 by %c1_i32_105 dim 1 : vector<16x256xf32>, i32 -> vector<16x256xf32>
      %334 = vector.extract_strided_slice %13 {offsets = [3, 0], sizes = [1, 256], strides = [1, 1]} : vector<9x256xf32> to vector<1x256xf32>
      %335 = vector.broadcast %334 : vector<1x256xf32> to vector<16x256xf32>
      %336 = arith.mulf %333, %335 : vector<16x256xf32>
      %337 = arith.truncf %336 : vector<16x256xf32> to vector<16x256xbf16>
      %c0_i32_106 = arith.constant 0 : i32
      %338 = tpu.dynamic_rotate %317 by %c0_i32_106 dim 1 : vector<16x256xf32>, i32 -> vector<16x256xf32>
      %339 = vector.extract_strided_slice %13 {offsets = [4, 0], sizes = [1, 256], strides = [1, 1]} : vector<9x256xf32> to vector<1x256xf32>
      %340 = vector.broadcast %339 : vector<1x256xf32> to vector<16x256xf32>
      %341 = arith.mulf %338, %340 : vector<16x256xf32>
      %342 = arith.truncf %341 : vector<16x256xf32> to vector<16x256xbf16>
      %c255_i32_107 = arith.constant 255 : i32
      %343 = tpu.dynamic_rotate %317 by %c255_i32_107 dim 1 : vector<16x256xf32>, i32 -> vector<16x256xf32>
      %344 = vector.extract_strided_slice %13 {offsets = [5, 0], sizes = [1, 256], strides = [1, 1]} : vector<9x256xf32> to vector<1x256xf32>
      %345 = vector.broadcast %344 : vector<1x256xf32> to vector<16x256xf32>
      %346 = arith.mulf %343, %345 : vector<16x256xf32>
      %347 = arith.truncf %346 : vector<16x256xf32> to vector<16x256xbf16>
      %c241_i32_108 = arith.constant 241 : i32
      %348 = tpu.dynamic_rotate %317 by %c241_i32_108 dim 1 : vector<16x256xf32>, i32 -> vector<16x256xf32>
      %349 = vector.extract_strided_slice %13 {offsets = [6, 0], sizes = [1, 256], strides = [1, 1]} : vector<9x256xf32> to vector<1x256xf32>
      %350 = vector.broadcast %349 : vector<1x256xf32> to vector<16x256xf32>
      %351 = arith.mulf %348, %350 : vector<16x256xf32>
      %352 = arith.truncf %351 : vector<16x256xf32> to vector<16x256xbf16>
      %c240_i32_109 = arith.constant 240 : i32
      %353 = tpu.dynamic_rotate %317 by %c240_i32_109 dim 1 : vector<16x256xf32>, i32 -> vector<16x256xf32>
      %354 = vector.extract_strided_slice %13 {offsets = [7, 0], sizes = [1, 256], strides = [1, 1]} : vector<9x256xf32> to vector<1x256xf32>
      %355 = vector.broadcast %354 : vector<1x256xf32> to vector<16x256xf32>
      %356 = arith.mulf %353, %355 : vector<16x256xf32>
      %357 = arith.truncf %356 : vector<16x256xf32> to vector<16x256xbf16>
      %c239_i32_110 = arith.constant 239 : i32
      %358 = tpu.dynamic_rotate %317 by %c239_i32_110 dim 1 : vector<16x256xf32>, i32 -> vector<16x256xf32>
      %359 = vector.extract_strided_slice %13 {offsets = [8, 0], sizes = [1, 256], strides = [1, 1]} : vector<9x256xf32> to vector<1x256xf32>
      %360 = vector.broadcast %359 : vector<1x256xf32> to vector<16x256xf32>
      %361 = arith.mulf %358, %360 : vector<16x256xf32>
      %362 = arith.truncf %361 : vector<16x256xf32> to vector<16x256xbf16>
      %363 = tpu.concatenate %322, %327, %332, %337, %342, %347, %352, %357, %362 in 0 : vector<16x256xbf16>, vector<16x256xbf16>, vector<16x256xbf16>, vector<16x256xbf16>, vector<16x256xbf16>, vector<16x256xbf16>, vector<16x256xbf16>, vector<16x256xbf16>, vector<16x256xbf16> -> vector<144x256xbf16>
      %364 = tpu.concatenate %18, %317 in 0 : vector<16x256xf32>, vector<16x256xf32> -> vector<32x256xf32>
      %c8 = arith.constant 8 : index
      %c0_111 = arith.constant 0 : index
      %365 = vector.load %arg12[%c8, %c0_111] : memref<104x1xf32, #tpu.memory_space<vmem>>, vector<5x1xf32>
      %c0_112 = arith.constant 0 : index
      %c0_113 = arith.constant 0 : index
      %c0_114 = arith.constant 0 : index
      %366 = vector.load %arg7[%c0_112, %c0_113, %c0_114] : memref<2x5x144xbf16, #tpu.memory_space<vmem>>, vector<1x5x144xbf16>
      %367 = vector.shape_cast %366 : vector<1x5x144xbf16> to vector<5x144xbf16>
      %cst_115 = arith.constant dense<0.000000e+00> : vector<5x256xf32>
      %368 = tpu.matmul %367, %67, %cst_115 {dimension_numbers = #tpu.dot_dimension_numbers<[1], [0], [0], [1], [0, 0, 1, 1], [], []>} : vector<5x144xbf16>, vector<144x256xbf16>, vector<5x256xf32> -> vector<5x256xf32>
      %c1_116 = arith.constant 1 : index
      %c0_117 = arith.constant 0 : index
      %c0_118 = arith.constant 0 : index
      %369 = vector.load %arg7[%c1_116, %c0_117, %c0_118] : memref<2x5x144xbf16, #tpu.memory_space<vmem>>, vector<1x5x144xbf16>
      %370 = vector.shape_cast %369 : vector<1x5x144xbf16> to vector<5x144xbf16>
      %cst_119 = arith.constant dense<0.000000e+00> : vector<5x256xf32>
      %371 = tpu.matmul %370, %363, %cst_119 {dimension_numbers = #tpu.dot_dimension_numbers<[1], [0], [0], [1], [0, 0, 1, 1], [], []>} : vector<5x144xbf16>, vector<144x256xbf16>, vector<5x256xf32> -> vector<5x256xf32>
      %372 = arith.addf %368, %371 : vector<5x256xf32>
      %373 = vector.broadcast %365 : vector<5x1xf32> to vector<5x256xf32>
      %374 = arith.addf %372, %373 : vector<5x256xf32>
      %c0_120 = arith.constant 0 : index
      %c0_121 = arith.constant 0 : index
      %375 = vector.load %arg8[%c0_120, %c0_121] : memref<5x32xbf16, #tpu.memory_space<vmem>>, vector<5x32xbf16>
      %376 = arith.truncf %364 : vector<32x256xf32> to vector<32x256xbf16>
      %cst_122 = arith.constant dense<0.000000e+00> : vector<5x256xf32>
      %377 = tpu.matmul %375, %376, %cst_122 {dimension_numbers = #tpu.dot_dimension_numbers<[1], [0], [0], [1], [0, 0, 1, 1], [], []>} : vector<5x32xbf16>, vector<32x256xbf16>, vector<5x256xf32> -> vector<5x256xf32>
      %c16_123 = arith.constant 16 : index
      %c0_124 = arith.constant 0 : index
      %378 = vector.load %arg12[%c16_123, %c0_124] : memref<104x1xf32, #tpu.memory_space<vmem>>, vector<5x1xf32>
      %379 = vector.broadcast %378 : vector<5x1xf32> to vector<5x256xf32>
      %380 = arith.addf %377, %379 : vector<5x256xf32>
      %381 = vector.extract_strided_slice %374 {offsets = [0, 0], sizes = [4, 256], strides = [1, 1]} : vector<5x256xf32> to vector<4x256xf32>
      %382 = vector.extract_strided_slice %380 {offsets = [0, 0], sizes = [4, 256], strides = [1, 1]} : vector<5x256xf32> to vector<4x256xf32>
      %383 = arith.addf %381, %382 : vector<4x256xf32>
      %cst_125 = arith.constant 0.000000e+00 : f32
      %384 = vector.broadcast %cst_125 : f32 to vector<4x256xf32>
      %385 = arith.cmpf oge, %383, %384 : vector<4x256xf32>
      %cst_126 = arith.constant 0.00999999977 : f32
      %386 = vector.broadcast %cst_126 : f32 to vector<4x256xf32>
      %387 = arith.mulf %386, %383 : vector<4x256xf32>
      %388 = arith.select %385, %383, %387 : vector<4x256xi1>, vector<4x256xf32>
      %389 = vector.extract_strided_slice %374 {offsets = [4, 0], sizes = [1, 256], strides = [1, 1]} : vector<5x256xf32> to vector<1x256xf32>
      %390 = vector.extract_strided_slice %380 {offsets = [4, 0], sizes = [1, 256], strides = [1, 1]} : vector<5x256xf32> to vector<1x256xf32>
      %391 = arith.addf %389, %390 : vector<1x256xf32>
      %cst_127 = arith.constant dense<0xFF800000> : vector<256xf32>
      %392 = vector.multi_reduction <maximumf>, %364, %cst_127 [0] : vector<32x256xf32> to vector<256xf32>
      %393 = vector.shape_cast %392 : vector<256xf32> to vector<1x256xf32>
      %394 = arith.addf %391, %393 : vector<1x256xf32>
      %c0_128 = arith.constant 0 : index
      %c0_129 = arith.constant 0 : index
      %395 = vector.load %arg9[%c0_128, %c0_129] : memref<64x4xbf16, #tpu.memory_space<vmem>>, vector<64x4xbf16>
      %396 = arith.truncf %388 : vector<4x256xf32> to vector<4x256xbf16>
      %cst_130 = arith.constant dense<0.000000e+00> : vector<64x256xf32>
      %397 = tpu.matmul %395, %396, %cst_130 {dimension_numbers = #tpu.dot_dimension_numbers<[1], [0], [0], [1], [0, 0, 1, 1], [], []>} : vector<64x4xbf16>, vector<4x256xbf16>, vector<64x256xf32> -> vector<64x256xf32>
      %c24 = arith.constant 24 : index
      %c0_131 = arith.constant 0 : index
      %398 = vector.load %arg12[%c24, %c0_131] : memref<104x1xf32, #tpu.memory_space<vmem>>, vector<64x1xf32>
      %399 = vector.broadcast %398 : vector<64x1xf32> to vector<64x256xf32>
      %400 = arith.addf %397, %399 : vector<64x256xf32>
      %401 = vector.extract_strided_slice %400 {offsets = [0, 0], sizes = [32, 256], strides = [1, 1]} : vector<64x256xf32> to vector<32x256xf32>
      %402 = vector.extract_strided_slice %400 {offsets = [32, 0], sizes = [32, 256], strides = [1, 1]} : vector<64x256xf32> to vector<32x256xf32>
      %403 = arith.maximumf %401, %402 : vector<32x256xf32>
      %404 = arith.subf %401, %403 : vector<32x256xf32>
      %405 = math.exp %404 : vector<32x256xf32>
      %c0_132 = arith.constant 0 : index
      %c0_133 = arith.constant 0 : index
      %406 = vector.load %arg10[%c0_132, %c0_133] : memref<32x32xbf16, #tpu.memory_space<vmem>>, vector<32x32xbf16>
      %407 = arith.truncf %405 : vector<32x256xf32> to vector<32x256xbf16>
      %cst_134 = arith.constant dense<0.000000e+00> : vector<32x256xf32>
      %408 = tpu.matmul %406, %407, %cst_134 {dimension_numbers = #tpu.dot_dimension_numbers<[1], [0], [0], [1], [0, 0, 1, 1], [], []>} : vector<32x32xbf16>, vector<32x256xbf16>, vector<32x256xf32> -> vector<32x256xf32>
      %409 = arith.addf %405, %408 : vector<32x256xf32>
      %410 = tpu.reciprocal %409 {approx = true} : vector<32x256xf32> -> vector<32x256xf32>
      %411 = arith.mulf %405, %410 : vector<32x256xf32>
      %412 = vector.broadcast %394 : vector<1x256xf32> to vector<32x256xf32>
      %413 = arith.mulf %411, %412 : vector<32x256xf32>
      %414 = arith.mulf %413, %364 : vector<32x256xf32>
      %c0_135 = arith.constant 0 : index
      %c0_136 = arith.constant 0 : index
      %415 = vector.load %arg11[%c0_135, %c0_136] : memref<16x32xbf16, #tpu.memory_space<vmem>>, vector<16x32xbf16>
      %416 = arith.truncf %414 : vector<32x256xf32> to vector<32x256xbf16>
      %cst_137 = arith.constant dense<0.000000e+00> : vector<16x256xf32>
      %417 = tpu.matmul %415, %416, %cst_137 {dimension_numbers = #tpu.dot_dimension_numbers<[1], [0], [0], [1], [0, 0, 1, 1], [], []>} : vector<16x32xbf16>, vector<32x256xbf16>, vector<16x256xf32> -> vector<16x256xf32>
      %c88 = arith.constant 88 : index
      %c0_138 = arith.constant 0 : index
      %418 = vector.load %arg12[%c88, %c0_138] : memref<104x1xf32, #tpu.memory_space<vmem>>, vector<16x1xf32>
      %419 = vector.broadcast %418 : vector<16x1xf32> to vector<16x256xf32>
      %420 = arith.addf %417, %419 : vector<16x256xf32>
      %cst_139 = arith.constant 0.000000e+00 : f32
      %421 = vector.broadcast %cst_139 : f32 to vector<16x256xf32>
      %422 = arith.cmpf oge, %420, %421 : vector<16x256xf32>
      %cst_140 = arith.constant 0.00999999977 : f32
      %423 = vector.broadcast %cst_140 : f32 to vector<16x256xf32>
      %424 = arith.mulf %423, %420 : vector<16x256xf32>
      %425 = arith.select %422, %420, %424 : vector<16x256xi1>, vector<16x256xf32>
      %c0_141 = arith.constant 0 : index
      %c0_142 = arith.constant 0 : index
      %c0_143 = arith.constant 0 : index
      %426 = vector.load %arg14[%c0_141, %c0_142, %c0_143] : memref<1x16x256xf32, #tpu.memory_space<vmem>>, vector<1x16x256xf32>
      %427 = vector.shape_cast %426 : vector<1x16x256xf32> to vector<16x256xf32>
      %428 = vector.shape_cast %425 : vector<16x256xf32> to vector<1x16x256xf32>
      tpu.vector_store %arg14[%c0_141, %c0_142, %c0_143], %428 {strides = array<i32>} : memref<1x16x256xf32, #tpu.memory_space<vmem>>, vector<1x16x256xf32>,
    } else {
    }
    %c1_i32_0 = arith.constant 1 : i32
    %5 = arith.cmpi sle, %1, %c1_i32_0 : i32
    %6 = arith.extui %5 : i1 to i32
    %c0_i32_1 = arith.constant 0 : i32
    %7 = arith.cmpi ne, %6, %c0_i32_1 : i32
    scf.if %7 {
      %c0 = arith.constant 0 : index
      %c0_2 = arith.constant 0 : index
      %c0_3 = arith.constant 0 : index
      %8 = vector.load %arg3[%c0, %c0_2, %c0_3] : memref<1x16x256xf32, #tpu.memory_space<vmem>>, vector<1x16x256xf32>
      %9 = vector.shape_cast %8 : vector<1x16x256xf32> to vector<16x256xf32>
      %c0_4 = arith.constant 0 : index
      %c0_5 = arith.constant 0 : index
      %c0_6 = arith.constant 0 : index
      %10 = vector.load %arg14[%c0_4, %c0_5, %c0_6] : memref<1x16x256xf32, #tpu.memory_space<vmem>>, vector<1x16x256xf32>
      %11 = vector.shape_cast %10 : vector<1x16x256xf32> to vector<16x256xf32>
      %12 = vector.shape_cast %9 : vector<16x256xf32> to vector<1x16x256xf32>
      tpu.vector_store %arg14[%c0_4, %c0_5, %c0_6], %12 {strides = array<i32>} : memref<1x16x256xf32, #tpu.memory_space<vmem>>, vector<1x16x256xf32>,
    } else {
    }
    return
  }
  func.func @transform_0(%arg0: i32, %arg1: memref<2x2xi32, #tpu.memory_space<smem>>, %arg2: memref<2xi32, #tpu.memory_space<smem>>) -> (i32, i32, i32) {
    %0 = arith.index_cast %arg0 : i32 to index
    %c0 = arith.constant 0 : index
    %1 = memref.load %arg1[%0, %c0] : memref<2x2xi32, #tpu.memory_space<smem>>
    %c0_i32 = arith.constant 0 : i32
    %c0_i32_0 = arith.constant 0 : i32
    %c0_i32_1 = arith.constant 0 : i32
    return %1, %c0_i32, %c0_i32_0 : i32, i32, i32
  }
  func.func @transform_1(%arg0: i32, %arg1: memref<2x2xi32, #tpu.memory_space<smem>>, %arg2: memref<2xi32, #tpu.memory_space<smem>>) -> (i32, i32, i32) {
    %0 = arith.index_cast %arg0 : i32 to index
    %c1 = arith.constant 1 : index
    %1 = memref.load %arg1[%0, %c1] : memref<2x2xi32, #tpu.memory_space<smem>>
    %c0_i32 = arith.constant 0 : i32
    %c0_i32_0 = arith.constant 0 : i32
    %c0_i32_1 = arith.constant 0 : i32
    return %1, %c0_i32, %c0_i32_0 : i32, i32, i32
  }
  func.func @transform_2(%arg0: i32, %arg1: memref<2x2xi32, #tpu.memory_space<smem>>, %arg2: memref<2xi32, #tpu.memory_space<smem>>) -> (i32, i32) {
    %c0_i32 = arith.constant 0 : i32
    %c0_i32_0 = arith.constant 0 : i32
    %c0_i32_1 = arith.constant 0 : i32
    return %c0_i32, %c0_i32_0 : i32, i32
  }
  func.func @transform_3(%arg0: i32, %arg1: memref<2x2xi32, #tpu.memory_space<smem>>, %arg2: memref<2xi32, #tpu.memory_space<smem>>) -> (i32, i32, i32) {
    %c0_i32 = arith.constant 0 : i32
    %c0_i32_0 = arith.constant 0 : i32
    %c0_i32_1 = arith.constant 0 : i32
    %c0_i32_2 = arith.constant 0 : i32
    return %c0_i32, %c0_i32_0, %c0_i32_1 : i32, i32, i32
  }
  func.func @transform_4(%arg0: i32, %arg1: memref<2x2xi32, #tpu.memory_space<smem>>, %arg2: memref<2xi32, #tpu.memory_space<smem>>) -> (i32, i32, i32) {
    %c0_i32 = arith.constant 0 : i32
    %c0_i32_0 = arith.constant 0 : i32
    %c0_i32_1 = arith.constant 0 : i32
    %c0_i32_2 = arith.constant 0 : i32
    return %c0_i32, %c0_i32_0, %c0_i32_1 : i32, i32, i32
  }
  func.func @transform_5(%arg0: i32, %arg1: memref<2x2xi32, #tpu.memory_space<smem>>, %arg2: memref<2xi32, #tpu.memory_space<smem>>) -> (i32, i32) {
    %c0_i32 = arith.constant 0 : i32
    %c0_i32_0 = arith.constant 0 : i32
    %c0_i32_1 = arith.constant 0 : i32
    return %c0_i32, %c0_i32_0 : i32, i32
  }
  func.func @transform_6(%arg0: i32, %arg1: memref<2x2xi32, #tpu.memory_space<smem>>, %arg2: memref<2xi32, #tpu.memory_space<smem>>) -> (i32, i32) {
    %c0_i32 = arith.constant 0 : i32
    %c0_i32_0 = arith.constant 0 : i32
    %c0_i32_1 = arith.constant 0 : i32
    return %c0_i32, %c0_i32_0 : i32, i32
  }
  func.func @transform_7(%arg0: i32, %arg1: memref<2x2xi32, #tpu.memory_space<smem>>, %arg2: memref<2xi32, #tpu.memory_space<smem>>) -> (i32, i32) {
    %c0_i32 = arith.constant 0 : i32
    %c0_i32_0 = arith.constant 0 : i32
    %c0_i32_1 = arith.constant 0 : i32
    return %c0_i32, %c0_i32_0 : i32, i32
  }
  func.func @transform_8(%arg0: i32, %arg1: memref<2x2xi32, #tpu.memory_space<smem>>, %arg2: memref<2xi32, #tpu.memory_space<smem>>) -> (i32, i32) {
    %c0_i32 = arith.constant 0 : i32
    %c0_i32_0 = arith.constant 0 : i32
    %c0_i32_1 = arith.constant 0 : i32
    return %c0_i32, %c0_i32_0 : i32, i32
  }
  func.func @transform_9(%arg0: i32, %arg1: memref<2x2xi32, #tpu.memory_space<smem>>, %arg2: memref<2xi32, #tpu.memory_space<smem>>) -> (i32, i32) {
    %c0_i32 = arith.constant 0 : i32
    %c0_i32_0 = arith.constant 0 : i32
    %c0_i32_1 = arith.constant 0 : i32
    return %c0_i32, %c0_i32_0 : i32, i32
  }
  func.func @transform_10(%arg0: i32, %arg1: memref<2x2xi32, #tpu.memory_space<smem>>, %arg2: memref<2xi32, #tpu.memory_space<smem>>) -> (i32, i32) {
    %c0_i32 = arith.constant 0 : i32
    %c0_i32_0 = arith.constant 0 : i32
    %c0_i32_1 = arith.constant 0 : i32
    return %c0_i32, %c0_i32_0 : i32, i32
  }
  func.func @transform_11(%arg0: i32, %arg1: memref<2x2xi32, #tpu.memory_space<smem>>, %arg2: memref<2xi32, #tpu.memory_space<smem>>) -> (i32, i32, i32) {
    %c0_i32 = arith.constant 0 : i32
    %c0_i32_0 = arith.constant 0 : i32
    %c0_i32_1 = arith.constant 0 : i32
    return %arg0, %c0_i32, %c0_i32_0 : i32, i32, i32
  }
}

</mosaic_0001>

<llo_original>
// kernel: tpu_custom_call.1
$region0: #{tpu_custom_call.1}
  #allocation0 [shape = 'u32[]', space=smem, size = 0x4, offset = 0x4, fixed_abs, tag = 'smem constant byte address 0x4 - core index']
  #allocation1 [shape = 'u32[72,128]{1,0:T(1,128)}', space=vmem, size = 0x9000, scoped, tag = 'internal scratch']
  #allocation2 [shape = 's32[1]{0}', space=sflag, size = 0x4, scoped, tag = 'scoped memory for tpu_custom_call.1']
  #allocation3 [shape = 'u8[1024]{0}', space=smem, size = 0x400, scoped, tag = 'prefetched SMEM operand 0']
  #allocation4 [shape = 'u8[512]{0}', space=smem, size = 0x200, scoped, tag = 'prefetched SMEM operand 1']
  %s0 = inlined_call_operand.vmem [shape: s32[2,2], index: 0, kind: input, shape index: {}]
  %s1 = inlined_call_operand.vmem [shape: s32[2], index: 1, kind: input, shape index: {}]
  %s2 = inlined_call_operand.vmem [shape: f32[3,16,256], index: 2, kind: input, shape index: {}]
  %s3 = inlined_call_operand.hbm [shape: f32[3,16,256], index: 3, kind: input, shape index: {}]
  %s4 = inlined_call_operand.vmem [shape: bf16[32,16], index: 4, kind: input, shape index: {}]
  %s5 = inlined_call_operand.vmem [shape: bf16[2,4,144], index: 5, kind: input, shape index: {}]
  %s6 = inlined_call_operand.vmem [shape: bf16[2,5,144], index: 6, kind: input, shape index: {}]
  %s7 = inlined_call_operand.vmem [shape: bf16[5,32], index: 7, kind: input, shape index: {}]
  %s8 = inlined_call_operand.vmem [shape: bf16[64,4], index: 8, kind: input, shape index: {}]
  %s9 = inlined_call_operand.vmem [shape: bf16[32,32], index: 9, kind: input, shape index: {}]
  %s10 = inlined_call_operand.vmem [shape: bf16[16,32], index: 10, kind: input, shape index: {}]
  %s11 = inlined_call_operand.vmem [shape: f32[104,1], index: 11, kind: input, shape index: {}]
  %s12 = inlined_call_operand.vmem [shape: f32[11,256], index: 12, kind: input, shape index: {}]
  %s13 = inlined_call_operand.hbm [shape: f32[2,16,256], index: 13, kind: output, shape index: {}]
  %s14 = sld [smem:[#allocation0]]
  $region89: #{tpu_custom_call.1} parent=0
    _
  %s16 = ssub.s32 1, %s14
  %s17 = scalar_select 0, %s16, %s14
  %s19 = sshll.u32 %s0, 4
  %s20 = int_to_ptr.vmem [resolvable:$true] %s19
  %22 = dma.vmem_to_smem %s20, 32, [#allocation3], [#allocation2]
  %s24 = sshll.u32 %s1, 4
  %s25 = int_to_ptr.vmem [resolvable:$true] %s24
  %27 = dma.vmem_to_smem %s25, 16, [#allocation4], [#allocation2]
  %29 = dma.done [#allocation2], 48
  %30 = sfence
  $region1: #{tpu_custom_call.1} parent=0
    #allocation5 [shape = 'u8[32768]{0}', space=vmem, size = 0x8000, scoped, tag = 'input window, operand 3']
    #allocation6 [shape = 's32[2]{0}', space=sflag, size = 0x8, scoped, tag = 'scoped memory for tpu_custom_call.1']
    #allocation7 [shape = 's32[2]{0}', space=sflag, size = 0x8, scoped, tag = 'scoped memory for tpu_custom_call.1']
    #allocation8 [shape = 'u8[32768]{0}', space=vmem, size = 0x8000, scoped, tag = 'output window, operand 0']
    %31 = vsyncpa [#allocation6], 0
    %s32 = scalar_lea.sflag [#allocation6], 1
    %33 = vsyncpa %s32, 0
    %34 = vsyncpa [#allocation7], 0
    %s35 = scalar_lea.sflag [#allocation7], 1
    %36 = vsyncpa %s35, 0
    loop: start=0, step=1, limit=4
    $region2: #{tpu_custom_call.1} parent=1 // loop_pre_header
      _
    $region3: #{tpu_custom_call.1} parent=1 // loop_header
      %s38 = sphi 0, %s42
      %p39 = scmp.ge.s32.totalorder %s38, 4
      %s52 = sphi 0, %s54
      %s55 = sphi 0, %s52
      %s56 = sphi 0, %s55
      %s72 = sphi 0, %s56
      %s84 = sphi 0, %s86
      %s87 = sphi 0, %s84
      %s88 = sphi 0, %s87
      %s104 = sphi 0, %s88
      %s108 = sphi 0, %s108
      %s110 = sphi 0, %s108
      %s111 = sphi 0, %s110
      %s125 = sphi 0, %s111
      %s129 = sphi 0, %s129
      %s131 = sphi 0, %s129
      %s132 = sphi 0, %s131
      %s146 = sphi 0, %s132
      %s150 = sphi 0, %s150
      %s152 = sphi 0, %s150
      %s153 = sphi 0, %s152
      %s167 = sphi 0, %s153
      %s171 = sphi 0, %s171
      %s173 = sphi 0, %s171
      %s174 = sphi 0, %s173
      %s188 = sphi 0, %s174
      %s192 = sphi 0, %s192
      %s194 = sphi 0, %s192
      %s195 = sphi 0, %s194
      %s209 = sphi 0, %s195
      %s213 = sphi 0, %s213
      %s215 = sphi 0, %s213
      %s216 = sphi 0, %s215
      %s230 = sphi 0, %s216
      %s234 = sphi 0, %s234
      %s236 = sphi 0, %s234
      %s237 = sphi 0, %s236
      %s251 = sphi 0, %s237
      %s255 = sphi 0, %s255
      %s257 = sphi 0, %s255
      %s258 = sphi 0, %s257
      %s272 = sphi 0, %s258
      %s276 = sphi 0, %s276
      %s278 = sphi 0, %s276
      %s279 = sphi 0, %s278
      %s293 = sphi 0, %s279
      %s299 = sphi 0, %s301
      %s302 = sphi 0, %s299
      %s303 = sphi 0, %s302
      %s319 = sphi 0, %s303
    $region4: #{tpu_custom_call.1} parent=1 // loop_header_branch
      %41 = sbr.rel (%p39) target = $region8
    $region5: #{tpu_custom_call.1} parent=1 // loop_body
      %s43 = ssub.s32 %s38, 1
      %s44 = ssub.s32 %s38, 2
      %s45 = sadd.s32 %s38, 1
      %s46 = smul.u32 %s38, 128
      %s47 = sld [smem:[#allocation3 + %s46]]
      %s48 = smul.u32 %s45, 128
      %s49 = sld [smem:[#allocation3 + %s48]]
      %s50 = ssub.s32 %s47, %s49
      %p51 = scmp.eq.s32.totalorder %s50, 0
      %s53 = sadd.s32 %s52, 1
      %s54 = scalar_select %p51, %s52, %s53
      %p57 = pneg %p51
      %p58 = scmp.eq.s32.totalorder %s38, 1
      %p59 = por %p57, %p58
      %p60 = scmp.ne.s32.totalorder %s52, %s55
      %p61 = scmp.eq.s32.totalorder %s38, 0
      %p62 = por %p60, %p61
      %p63 = scmp.ne.s32.totalorder %s52, %s55
      %p64 = scmp.eq.s32.totalorder %s43, 1
      %p65 = por %p63, %p64
      %p66 = scmp.ne.s32.totalorder %s55, %s56
      %p67 = scmp.eq.s32.totalorder %s43, 0
      %p68 = por %p66, %p67
      %p69 = scmp.ne.s32.totalorder %s55, %s56
      %p70 = scmp.eq.s32.totalorder %s44, 1
      %p71 = por %p69, %p70
      %p73 = scmp.ne.s32.totalorder %s56, %s72
      %p74 = scmp.eq.s32.totalorder %s44, 0
      %p75 = por %p73, %p74
      %s76 = smul.u32 %s38, 128
      %s77 = sadd.s32 %s76, 1
      %s78 = sld [smem:[#allocation3 + %s77]]
      %s79 = smul.u32 %s45, 128
      %s80 = sadd.s32 %s79, 1
      %s81 = sld [smem:[#allocation3 + %s80]]
      %s82 = ssub.s32 %s78, %s81
      %p83 = scmp.eq.s32.totalorder %s82, 0
      %s85 = sadd.s32 %s84, 1
      %s86 = scalar_select %p83, %s84, %s85
      %p89 = pneg %p83
      %p90 = scmp.eq.s32.totalorder %s38, 1
      %p91 = por %p89, %p90
      %p92 = scmp.ne.s32.totalorder %s84, %s87
      %p93 = scmp.eq.s32.totalorder %s38, 0
      %p94 = por %p92, %p93
      %p95 = scmp.ne.s32.totalorder %s84, %s87
      %p96 = scmp.eq.s32.totalorder %s43, 1
      %p97 = por %p95, %p96
      %p98 = scmp.ne.s32.totalorder %s87, %s88
      %p99 = scmp.eq.s32.totalorder %s43, 0
      %p100 = por %p98, %p99
      %p101 = scmp.ne.s32.totalorder %s87, %s88
      %p102 = scmp.eq.s32.totalorder %s44, 1
      %p103 = por %p101, %p102
      %p105 = scmp.ne.s32.totalorder %s88, %s104
      %p106 = scmp.eq.s32.totalorder %s44, 0
      %p107 = por %p105, %p106
      %s109 = sadd.s32 %s108, 1
      %p112 = scmp.eq.s32.totalorder %s38, 1
      %p113 = scmp.ne.s32.totalorder %s108, %s110
      %p114 = scmp.eq.s32.totalorder %s38, 0
      %p115 = por %p113, %p114
      %p116 = scmp.ne.s32.totalorder %s108, %s110
      %p117 = scmp.eq.s32.totalorder %s43, 1
      %p118 = por %p116, %p117
      %p119 = scmp.ne.s32.totalorder %s110, %s111
      %p120 = scmp.eq.s32.totalorder %s43, 0
      %p121 = por %p119, %p120
      %p122 = scmp.ne.s32.totalorder %s110, %s111
      %p123 = scmp.eq.s32.totalorder %s44, 1
      %p124 = por %p122, %p123
      %p126 = scmp.ne.s32.totalorder %s111, %s125
      %p127 = scmp.eq.s32.totalorder %s44, 0
      %p128 = por %p126, %p127
      %s130 = sadd.s32 %s129, 1
      %p133 = scmp.eq.s32.totalorder %s38, 1
      %p134 = scmp.ne.s32.totalorder %s129, %s131
      %p135 = scmp.eq.s32.totalorder %s38, 0
      %p136 = por %p134, %p135
      %p137 = scmp.ne.s32.totalorder %s129, %s131
      %p138 = scmp.eq.s32.totalorder %s43, 1
      %p139 = por %p137, %p138
      %p140 = scmp.ne.s32.totalorder %s131, %s132
      %p141 = scmp.eq.s32.totalorder %s43, 0
      %p142 = por %p140, %p141
      %p143 = scmp.ne.s32.totalorder %s131, %s132
      %p144 = scmp.eq.s32.totalorder %s44, 1
      %p145 = por %p143, %p144
      %p147 = scmp.ne.s32.totalorder %s132, %s146
      %p148 = scmp.eq.s32.totalorder %s44, 0
      %p149 = por %p147, %p148
      %s151 = sadd.s32 %s150, 1
      %p154 = scmp.eq.s32.totalorder %s38, 1
      %p155 = scmp.ne.s32.totalorder %s150, %s152
      %p156 = scmp.eq.s32.totalorder %s38, 0
      %p157 = por %p155, %p156
      %p158 = scmp.ne.s32.totalorder %s150, %s152
      %p159 = scmp.eq.s32.totalorder %s43, 1
      %p160 = por %p158, %p159
      %p161 = scmp.ne.s32.totalorder %s152, %s153
      %p162 = scmp.eq.s32.totalorder %s43, 0
      %p163 = por %p161, %p162
      %p164 = scmp.ne.s32.totalorder %s152, %s153
      %p165 = scmp.eq.s32.totalorder %s44, 1
      %p166 = por %p164, %p165
      %p168 = scmp.ne.s32.totalorder %s153, %s167
      %p169 = scmp.eq.s32.totalorder %s44, 0
      %p170 = por %p168, %p169
      %s172 = sadd.s32 %s171, 1
      %p175 = scmp.eq.s32.totalorder %s38, 1
      %p176 = scmp.ne.s32.totalorder %s171, %s173
      %p177 = scmp.eq.s32.totalorder %s38, 0
      %p178 = por %p176, %p177
      %p179 = scmp.ne.s32.totalorder %s171, %s173
      %p180 = scmp.eq.s32.totalorder %s43, 1
      %p181 = por %p179, %p180
      %p182 = scmp.ne.s32.totalorder %s173, %s174
      %p183 = scmp.eq.s32.totalorder %s43, 0
      %p184 = por %p182, %p183
      %p185 = scmp.ne.s32.totalorder %s173, %s174
      %p186 = scmp.eq.s32.totalorder %s44, 1
      %p187 = por %p185, %p186
      %p189 = scmp.ne.s32.totalorder %s174, %s188
      %p190 = scmp.eq.s32.totalorder %s44, 0
      %p191 = por %p189, %p190
      %s193 = sadd.s32 %s192, 1
      %p196 = scmp.eq.s32.totalorder %s38, 1
      %p197 = scmp.ne.s32.totalorder %s192, %s194
      %p198 = scmp.eq.s32.totalorder %s38, 0
      %p199 = por %p197, %p198
      %p200 = scmp.ne.s32.totalorder %s192, %s194
      %p201 = scmp.eq.s32.totalorder %s43, 1
      %p202 = por %p200, %p201
      %p203 = scmp.ne.s32.totalorder %s194, %s195
      %p204 = scmp.eq.s32.totalorder %s43, 0
      %p205 = por %p203, %p204
      %p206 = scmp.ne.s32.totalorder %s194, %s195
      %p207 = scmp.eq.s32.totalorder %s44, 1
      %p208 = por %p206, %p207
      %p210 = scmp.ne.s32.totalorder %s195, %s209
      %p211 = scmp.eq.s32.totalorder %s44, 0
      %p212 = por %p210, %p211
      %s214 = sadd.s32 %s213, 1
      %p217 = scmp.eq.s32.totalorder %s38, 1
      %p218 = scmp.ne.s32.totalorder %s213, %s215
      %p219 = scmp.eq.s32.totalorder %s38, 0
      %p220 = por %p218, %p219
      %p221 = scmp.ne.s32.totalorder %s213, %s215
      %p222 = scmp.eq.s32.totalorder %s43, 1
      %p223 = por %p221, %p222
      %p224 = scmp.ne.s32.totalorder %s215, %s216
      %p225 = scmp.eq.s32.totalorder %s43, 0
      %p226 = por %p224, %p225
      %p227 = scmp.ne.s32.totalorder %s215, %s216
      %p228 = scmp.eq.s32.totalorder %s44, 1
      %p229 = por %p227, %p228
      %p231 = scmp.ne.s32.totalorder %s216, %s230
      %p232 = scmp.eq.s32.totalorder %s44, 0
      %p233 = por %p231, %p232
      %s235 = sadd.s32 %s234, 1
      %p238 = scmp.eq.s32.totalorder %s38, 1
      %p239 = scmp.ne.s32.totalorder %s234, %s236
      %p240 = scmp.eq.s32.totalorder %s38, 0
      %p241 = por %p239, %p240
      %p242 = scmp.ne.s32.totalorder %s234, %s236
      %p243 = scmp.eq.s32.totalorder %s43, 1
      %p244 = por %p242, %p243
      %p245 = scmp.ne.s32.totalorder %s236, %s237
      %p246 = scmp.eq.s32.totalorder %s43, 0
      %p247 = por %p245, %p246
      %p248 = scmp.ne.s32.totalorder %s236, %s237
      %p249 = scmp.eq.s32.totalorder %s44, 1
      %p250 = por %p248, %p249
      %p252 = scmp.ne.s32.totalorder %s237, %s251
      %p253 = scmp.eq.s32.totalorder %s44, 0
      %p254 = por %p252, %p253
      %s256 = sadd.s32 %s255, 1
      %p259 = scmp.eq.s32.totalorder %s38, 1
      %p260 = scmp.ne.s32.totalorder %s255, %s257
      %p261 = scmp.eq.s32.totalorder %s38, 0
      %p262 = por %p260, %p261
      %p263 = scmp.ne.s32.totalorder %s255, %s257
      %p264 = scmp.eq.s32.totalorder %s43, 1
      %p265 = por %p263, %p264
      %p266 = scmp.ne.s32.totalorder %s257, %s258
      %p267 = scmp.eq.s32.totalorder %s43, 0
      %p268 = por %p266, %p267
      %p269 = scmp.ne.s32.totalorder %s257, %s258
      %p270 = scmp.eq.s32.totalorder %s44, 1
      %p271 = por %p269, %p270
      %p273 = scmp.ne.s32.totalorder %s258, %s272
      %p274 = scmp.eq.s32.totalorder %s44, 0
      %p275 = por %p273, %p274
      %s277 = sadd.s32 %s276, 1
      %p280 = scmp.eq.s32.totalorder %s38, 1
      %p281 = scmp.ne.s32.totalorder %s276, %s278
      %p282 = scmp.eq.s32.totalorder %s38, 0
      %p283 = por %p281, %p282
      %p284 = scmp.ne.s32.totalorder %s276, %s278
      %p285 = scmp.eq.s32.totalorder %s43, 1
      %p286 = por %p284, %p285
      %p287 = scmp.ne.s32.totalorder %s278, %s279
      %p288 = scmp.eq.s32.totalorder %s43, 0
      %p289 = por %p287, %p288
      %p290 = scmp.ne.s32.totalorder %s278, %s279
      %p291 = scmp.eq.s32.totalorder %s44, 1
      %p292 = por %p290, %p291
      %p294 = scmp.ne.s32.totalorder %s279, %s293
      %p295 = scmp.eq.s32.totalorder %s44, 0
      %p296 = por %p294, %p295
      %s297 = ssub.s32 %s38, %s45
      %p298 = scmp.eq.s32.totalorder %s297, 0
      %s300 = sadd.s32 %s299, 1
      %s301 = scalar_select %p298, %s299, %s300
      %p304 = pneg %p298
      %p305 = scmp.eq.s32.totalorder %s38, 1
      %p306 = por %p304, %p305
      %p307 = scmp.ne.s32.totalorder %s299, %s302
      %p308 = scmp.eq.s32.totalorder %s38, 0
      %p309 = por %p307, %p308
      %p310 = scmp.ne.s32.totalorder %s299, %s302
      %p311 = scmp.eq.s32.totalorder %s43, 1
      %p312 = por %p310, %p311
      %p313 = scmp.ne.s32.totalorder %s302, %s303
      %p314 = scmp.eq.s32.totalorder %s43, 0
      %p315 = por %p313, %p314
      %p316 = scmp.ne.s32.totalorder %s302, %s303
      %p317 = scmp.eq.s32.totalorder %s44, 1
      %p318 = por %p316, %p317
      %p320 = scmp.ne.s32.totalorder %s303, %s319
      %p321 = scmp.eq.s32.totalorder %s44, 0
      %p322 = por %p320, %p321
      %p323 = scmp.le.s32.totalorder 1, %s38
      %p324 = scmp.lt.s32.totalorder %s38, 3
      %p325 = pnand %p323, %p324
      %p326 = pneg %p325
      // Predicated region
      $region9: #{tpu_custom_call.1} parent=5 // pred_check
        _
      $region10: #{tpu_custom_call.1} parent=5 // pred_check_branch
        %328 = sbr.rel (%p325) target = $region12
      $region11: #{tpu_custom_call.1} parent=5 // pred_region
        %s329 = ssub.s32 %s38, 1
        // Predicated region
        $region13: #{tpu_custom_call.1} parent=11 // pred_check
          %p330 = pneg %p121
        $region14: #{tpu_custom_call.1} parent=11 // pred_check_branch
          %332 = sbr.rel (%p330) target = $region16
        $region15: #{tpu_custom_call.1} parent=11 // pred_region
          _
        $region16: #{tpu_custom_call.1} parent=11 // pred_fallthru
          _
        // Predicated region
        $region17: #{tpu_custom_call.1} parent=11 // pred_check
          %p333 = pneg %p142
        $region18: #{tpu_custom_call.1} parent=11 // pred_check_branch
          %335 = sbr.rel (%p333) target = $region20
        $region19: #{tpu_custom_call.1} parent=11 // pred_region
          _
        $region20: #{tpu_custom_call.1} parent=11 // pred_fallthru
          _
        // Predicated region
        $region21: #{tpu_custom_call.1} parent=11 // pred_check
          %p336 = pneg %p163
        $region22: #{tpu_custom_call.1} parent=11 // pred_check_branch
          %338 = sbr.rel (%p336) target = $region24
        $region23: #{tpu_custom_call.1} parent=11 // pred_region
          _
        $region24: #{tpu_custom_call.1} parent=11 // pred_fallthru
          _
        // Predicated region
        $region25: #{tpu_custom_call.1} parent=11 // pred_check
          %p339 = pneg %p184
        $region26: #{tpu_custom_call.1} parent=11 // pred_check_branch
          %341 = sbr.rel (%p339) target = $region28
        $region27: #{tpu_custom_call.1} parent=11 // pred_region
          _
        $region28: #{tpu_custom_call.1} parent=11 // pred_fallthru
          _
        // Predicated region
        $region29: #{tpu_custom_call.1} parent=11 // pred_check
          %p342 = pneg %p205
        $region30: #{tpu_custom_call.1} parent=11 // pred_check_branch
          %344 = sbr.rel (%p342) target = $region32
        $region31: #{tpu_custom_call.1} parent=11 // pred_region
          _
        $region32: #{tpu_custom_call.1} parent=11 // pred_fallthru
          _
        // Predicated region
        $region33: #{tpu_custom_call.1} parent=11 // pred_check
          %p345 = pneg %p226
        $region34: #{tpu_custom_call.1} parent=11 // pred_check_branch
          %347 = sbr.rel (%p345) target = $region36
        $region35: #{tpu_custom_call.1} parent=11 // pred_region
          _
        $region36: #{tpu_custom_call.1} parent=11 // pred_fallthru
          _
        // Predicated region
        $region37: #{tpu_custom_call.1} parent=11 // pred_check
          %p348 = pneg %p247
        $region38: #{tpu_custom_call.1} parent=11 // pred_check_branch
          %350 = sbr.rel (%p348) target = $region40
        $region39: #{tpu_custom_call.1} parent=11 // pred_region
          _
        $region40: #{tpu_custom_call.1} parent=11 // pred_fallthru
          _
        // Predicated region
        $region41: #{tpu_custom_call.1} parent=11 // pred_check
          %p351 = pneg %p268
        $region42: #{tpu_custom_call.1} parent=11 // pred_check_branch
          %353 = sbr.rel (%p351) target = $region44
        $region43: #{tpu_custom_call.1} parent=11 // pred_region
          _
        $region44: #{tpu_custom_call.1} parent=11 // pred_fallthru
          _
        // Predicated region
        $region45: #{tpu_custom_call.1} parent=11 // pred_check
          %p354 = pneg %p289
        $region46: #{tpu_custom_call.1} parent=11 // pred_check_branch
          %356 = sbr.rel (%p354) target = $region48
        $region47: #{tpu_custom_call.1} parent=11 // pred_region
          _
        $region48: #{tpu_custom_call.1} parent=11 // pred_fallthru
          _
      $region12: #{tpu_custom_call.1} parent=5 // pred_fallthru
        _
      %p357 = scmp.lt.s32.totalorder %s38, 2
      // Predicated region
      $region49: #{tpu_custom_call.1} parent=5 // pred_check
        %p358 = pneg %p357
      $region50: #{tpu_custom_call.1} parent=5 // pred_check_branch
        %360 = sbr.rel (%p358) target = $region52
      $region51: #{tpu_custom_call.1} parent=5 // pred_region
        // Predicated region
        $region53: #{tpu_custom_call.1} parent=51 // pred_check
          %p361 = pneg %p62
        $region54: #{tpu_custom_call.1} parent=51 // pred_check_branch
          %363 = sbr.rel (%p361) target = $region56
        $region55: #{tpu_custom_call.1} parent=51 // pred_region
          %s364 = smul.u32 %s38, 128
          %s365 = sld [smem:[#allocation3 + %s364]]
          %p366 = scmp.lt.s32.totalorder %s365, 2
          %s367 = scalar_select %p366, %s365, 2
          %s368 = smul.addr %s367, 4
          %s369 = smul.addr %s368, 8
          %s370 = scalar_lea.vmem %s2, %s369
          %s371 = smul.u32 %s38, 128
          %s372 = sld [smem:[#allocation3 + %s371]]
        $region56: #{tpu_custom_call.1} parent=51 // pred_fallthru
          _
        // Predicated region
        $region57: #{tpu_custom_call.1} parent=51 // pred_check
          %p373 = pneg %p94
        $region58: #{tpu_custom_call.1} parent=51 // pred_check_branch
          %375 = sbr.rel (%p373) target = $region60
        $region59: #{tpu_custom_call.1} parent=51 // pred_region
          %s376 = sand.u32 %s84, 1
          %s377 = scalar_lea.sflag [#allocation6], %s376
          %s378 = sand.u32 %s84, 1
          %s379 = smul.addr %s378, 32
          %s380 = scalar_lea.vmem [#allocation5], %s379
          %s381 = smul.u32 %s38, 128
          %s382 = sadd.s32 %s381, 1
          %s383 = sld [smem:[#allocation3 + %s382]]
          %385 = vsyncadd %s377, 0
          %s386 = smul.addr %s383, 4
          %s387 = smul.addr %s386, 8
          %s388 = scalar_lea.hbm %s3, %s387
          %s389 = sshll.u32 %s388, 4
          %s390 = int_to_ptr.hbm [resolvable:$true] %s389
          %s391 = sshll.u32 %s380, 4
          %s392 = int_to_ptr.vmem [resolvable:$true] %s391
          %397 = dma.hbm_to_vmem [thread:$0]  %s390, 512, %s392, %s377, 256, 256, 16
        $region60: #{tpu_custom_call.1} parent=51 // pred_fallthru
          _
      $region52: #{tpu_custom_call.1} parent=5 // pred_fallthru
        _
      %p398 = scmp.le.s32.totalorder 1, %s38
      %p399 = scmp.lt.s32.totalorder %s38, 3
      %p400 = pnand %p398, %p399
      %p401 = pneg %p400
      // Predicated region
      $region61: #{tpu_custom_call.1} parent=5 // pred_check
        _
      $region62: #{tpu_custom_call.1} parent=5 // pred_check_branch
        %403 = sbr.rel (%p400) target = $region64
      $region63: #{tpu_custom_call.1} parent=5 // pred_region
        %s404 = ssub.s32 %s38, 1
        %s405 = sand.u32 %s87, 1
        %s406 = scalar_lea.sflag [#allocation6], %s405
        %s407 = sand.u32 %s87, 1
        %s408 = smul.addr %s407, 32
        %s409 = scalar_lea.vmem [#allocation5], %s408
        // Predicated region
        $region65: #{tpu_custom_call.1} parent=63 // pred_check
          %p410 = pneg %p100
        $region66: #{tpu_custom_call.1} parent=63 // pred_check_branch
          %412 = sbr.rel (%p410) target = $region68
        $region67: #{tpu_custom_call.1} parent=63 // pred_region
          %414 = dma.done %s406, 512
        $region68: #{tpu_custom_call.1} parent=63 // pred_fallthru
          _
        %s415 = smul.u32 %s43, 128
        %s416 = sld [smem:[#allocation3 + %s415]]
        %p417 = scmp.lt.s32.totalorder %s416, 2
        %s418 = scalar_select %p417, %s416, 2
        %s419 = smul.addr %s418, 4
        %s420 = smul.addr %s419, 8
        %s421 = scalar_lea.vmem %s2, %s420
        %p422 = pneg %p68
        %p423 = pneg %p65
        %s424 = sand.u32 %s87, 1
        %s425 = scalar_lea.sflag [#allocation6], %s424
        %s426 = sand.u32 %s87, 1
        %s427 = smul.addr %s426, 32
        %s428 = scalar_lea.vmem [#allocation5], %s427
        %p429 = pneg %p100
        %p430 = pneg %p97
        %p431 = pneg %p121
        %p432 = pneg %p118
        %p433 = pneg %p142
        %p434 = pneg %p139
        %p435 = pneg %p163
        %p436 = pneg %p160
        %p437 = pneg %p184
        %p438 = pneg %p181
        %p439 = pneg %p205
        %p440 = pneg %p202
        %p441 = pneg %p226
        %p442 = pneg %p223
        %p443 = pneg %p247
        %p444 = pneg %p244
        %p445 = pneg %p268
        %p446 = pneg %p265
        %p447 = pneg %p289
        %p448 = pneg %p286
        %p449 = pneg %p315
        %p450 = pneg %p312
        %s451 = sand.u32 %s302, 1
        %s452 = scalar_lea.sflag [#allocation7], %s451
        %s453 = sand.u32 %s302, 1
        %s454 = smul.addr %s453, 32
        %s455 = scalar_lea.vmem [#allocation8], %s454
        %s456 = smul.u32 %s43, 128
        %s457 = sld [smem:[#allocation3 + %s456]]
        %p458 = scmp.lt.s32.totalorder %s457, 2
        %s459 = scalar_select %p458, %s457, 2
        %s460 = smul.addr %s459, 4
        %s461 = smul.addr %s460, 8
        %s462 = scalar_lea.vmem %s2, %s461
        %s463 = smul.u32 %s43, 128
        %s464 = sld [smem:[#allocation3 + %s463]]
        %s465 = smul.u32 %s43, 128
        %s466 = sadd.s32 %s465, 1
        %s467 = sld [smem:[#allocation3 + %s466]]
        %s469 = sld [smem:[#allocation4 + %s43]]
        %p470 = scmp.gt.s32.totalorder %s469, 1
        // Predicated region
        $region69: #{tpu_custom_call.1} parent=63 // pred_check
          %p471 = pneg %p470
        $region70: #{tpu_custom_call.1} parent=63 // pred_check_branch
          %473 = sbr.rel (%p471) target = $region72
        $region71: #{tpu_custom_call.1} parent=63 // pred_region
          %v474 = vld [vmem:[%s462] sm:$0xff]
          %v475 = vld [vmem:[%s462 + $0x8] sm:$0xff]
          %v476 = vld [vmem:[%s462 + $0x10] sm:$0xff]
          %v477 = vld [vmem:[%s462 + $0x18] sm:$0xff]
          %v478 = vld [vmem:[%s409] sm:$0xff]
          %v479 = vld [vmem:[%s409 + $0x8] sm:$0xff]
          %v480 = vld [vmem:[%s409 + $0x10] sm:$0xff]
          %v481 = vld [vmem:[%s409 + $0x18] sm:$0xff]
          %v482 = vld [vmem:[%s12] sm:$0xff]
          %v483 = vld [vmem:[%s12 + $0x8] sm:$0xff]
          %v484 = vld [vmem:[%s12 + $0x10] sm:$0x7]
          %v485 = vld [vmem:[%s12 + $0x18] sm:$0x7]
          %v486 = vld [vmem:[%s4] sm:$0xf]
          %v487 = vld [vmem:[%s4 + $0x4] sm:$0xf]
          %v488 = vpack.c.bf16 %v476, %v474
          %v489 = vpack.c.bf16 %v477, %v475
          %v492 = vunpack.c.l.b16 %v486
          %v493 = vunpack.c.l.b16 %v487
          %v494 = vpack.c.b16 %v493, %v492
          %vm495 = vcmask 130048
          %v497 = vsel %vm495, %v494, 0
          %499 = vmatpush.bf16.msra.mxu0 0
          %500 = vmatpush.bf16.msra.mxu0 0
          %501 = vmatpush.bf16.msra.mxu0 0
          %502 = vmatpush.bf16.msra.mxu0 0
          %503 = vmatpush.bf16.msra.mxu0 0
          %504 = vmatpush.bf16.msra.mxu0 0
          %505 = vmatpush.bf16.msra.mxu0 0
          %506 = vmatpush.bf16.msra.mxu0 %v488
          %507 = vmatmul.bf16.gmra.mxu0 %v497
          %v508 = vpop.f32.mrf.mxu0
          %v509 = vadd.f32 0.0, %v508
          %v510 = vpop.f32.mrf.mxu0
          %v511 = vadd.f32 0.0, %v510
          %512 = vdwg.mxu0
          %513 = vmatpush.bf16.msra.mxu0 0
          %514 = vmatpush.bf16.msra.mxu0 0
          %515 = vmatpush.bf16.msra.mxu0 0
          %516 = vmatpush.bf16.msra.mxu0 0
          %517 = vmatpush.bf16.msra.mxu0 0
          %518 = vmatpush.bf16.msra.mxu0 0
          %519 = vmatpush.bf16.msra.mxu0 0
          %520 = vmatpush.bf16.msra.mxu0 %v489
          %521 = vmatmul.bf16.gmra.mxu0 %v497
          %v522 = vpop.f32.mrf.mxu0
          %v523 = vadd.f32 0.0, %v522
          %v524 = vpop.f32.mrf.mxu0
          %v525 = vadd.f32 0.0, %v524
          %526 = vdwg.mxu0
          %v527 = vld [vmem:[%s4 + $0x8] sm:$0xf]
          %v528 = vld [vmem:[%s4 + $0xc] sm:$0xf]
          %v529 = vpack.c.bf16 %v480, %v478
          %v530 = vpack.c.bf16 %v481, %v479
          %v533 = vunpack.c.l.b16 %v527
          %v534 = vunpack.c.l.b16 %v528
          %v535 = vpack.c.b16 %v534, %v533
          %v537 = vsel %vm495, %v535, 0
          %539 = vmatpush.bf16.msra.mxu0 0
          %540 = vmatpush.bf16.msra.mxu0 0
          %541 = vmatpush.bf16.msra.mxu0 0
          %542 = vmatpush.bf16.msra.mxu0 0
          %543 = vmatpush.bf16.msra.mxu0 0
          %544 = vmatpush.bf16.msra.mxu0 0
          %545 = vmatpush.bf16.msra.mxu0 0
          %546 = vmatpush.bf16.msra.mxu0 %v529
          %547 = vmatmul.bf16.gmra.mxu0 %v537
          %v548 = vpop.f32.mrf.mxu0
          %v549 = vadd.f32 0.0, %v548
          %v550 = vpop.f32.mrf.mxu0
          %v551 = vadd.f32 0.0, %v550
          %552 = vdwg.mxu0
          %553 = vmatpush.bf16.msra.mxu0 0
          %554 = vmatpush.bf16.msra.mxu0 0
          %555 = vmatpush.bf16.msra.mxu0 0
          %556 = vmatpush.bf16.msra.mxu0 0
          %557 = vmatpush.bf16.msra.mxu0 0
          %558 = vmatpush.bf16.msra.mxu0 0
          %559 = vmatpush.bf16.msra.mxu0 0
          %560 = vmatpush.bf16.msra.mxu0 %v530
          %561 = vmatmul.bf16.gmra.mxu0 %v537
          %v562 = vpop.f32.mrf.mxu0
          %v563 = vadd.f32 0.0, %v562
          %v564 = vpop.f32.mrf.mxu0
          %v565 = vadd.f32 0.0, %v564
          %566 = vdwg.mxu0
          %567 = vrot.lane.b32.xlu0 %v509, 17
          %v568 = vpop.permute.xlu0 %567
          %569 = vrot.lane.b32.xlu0 %v511, 17
          %v570 = vpop.permute.xlu0 %569
          %571 = vrot.lane.b32.xlu0 %v523, 17
          %v572 = vpop.permute.xlu0 %571
          %573 = vrot.lane.b32.xlu0 %v525, 17
          %v574 = vpop.permute.xlu0 %573
          %v575 = vlaneseq
          %v576 = vand.u32 %v575, 127
          %vm577 = vcmp.lt.s32.totalorder %v576, 17
          %v578 = vsel %vm577, %v568, %v572
          %v579 = vsel %vm577, %v570, %v574
          %v580 = vsel %vm577, %v572, %v568
          %v581 = vsel %vm577, %v574, %v570
          %v582 = vperm.slane %v482, 0
          %v583 = vperm.slane %v483, 0
          %v584 = vmul.f32 %v580, %v582
          %v585 = vmul.f32 %v578, %v583
          %v586 = vmul.f32 %v581, %v582
          %v587 = vmul.f32 %v579, %v583
          %v588 = vpack.c.bf16 %v585, %v584
          %v589 = vpack.c.bf16 %v587, %v586
          %590 = vrot.lane.b32.xlu0 %v509, 16
          %v591 = vpop.permute.xlu0 %590
          %592 = vrot.lane.b32.xlu0 %v511, 16
          %v593 = vpop.permute.xlu0 %592
          %594 = vrot.lane.b32.xlu0 %v523, 16
          %v595 = vpop.permute.xlu0 %594
          %596 = vrot.lane.b32.xlu0 %v525, 16
          %v597 = vpop.permute.xlu0 %596
          %vm598 = vcmp.lt.s32.totalorder %v576, 16
          %v599 = vsel %vm598, %v591, %v595
          %v600 = vsel %vm598, %v593, %v597
          %v601 = vsel %vm598, %v595, %v591
          %v602 = vsel %vm598, %v597, %v593
          %v603 = vperm.slane %v482, 1
          %v604 = vperm.slane %v483, 1
          %v605 = vmul.f32 %v601, %v603
          %v606 = vmul.f32 %v599, %v604
          %v607 = vmul.f32 %v602, %v603
          %v608 = vmul.f32 %v600, %v604
          %v609 = vpack.c.bf16 %v606, %v605
          %v610 = vpack.c.bf16 %v608, %v607
          %611 = vrot.lane.b32.xlu0 %v509, 15
          %v612 = vpop.permute.xlu0 %611
          %613 = vrot.lane.b32.xlu0 %v511, 15
          %v614 = vpop.permute.xlu0 %613
          %615 = vrot.lane.b32.xlu0 %v523, 15
          %v616 = vpop.permute.xlu0 %615
          %617 = vrot.lane.b32.xlu0 %v525, 15
          %v618 = vpop.permute.xlu0 %617
          %vm619 = vcmp.lt.s32.totalorder %v576, 15
          %v620 = vsel %vm619, %v612, %v616
          %v621 = vsel %vm619, %v614, %v618
          %v622 = vsel %vm619, %v616, %v612
          %v623 = vsel %vm619, %v618, %v614
          %v624 = vperm.slane %v482, 2
          %v625 = vperm.slane %v483, 2
          %v626 = vmul.f32 %v622, %v624
          %v627 = vmul.f32 %v620, %v625
          %v628 = vmul.f32 %v623, %v624
          %v629 = vmul.f32 %v621, %v625
          %v630 = vpack.c.bf16 %v627, %v626
          %v631 = vpack.c.bf16 %v629, %v628
          %632 = vrot.lane.b32.xlu0 %v509, 1
          %v633 = vpop.permute.xlu0 %632
          %634 = vrot.lane.b32.xlu0 %v511, 1
          %v635 = vpop.permute.xlu0 %634
          %636 = vrot.lane.b32.xlu0 %v523, 1
          %v637 = vpop.permute.xlu0 %636
          %638 = vrot.lane.b32.xlu0 %v525, 1
          %v639 = vpop.permute.xlu0 %638
          %vm640 = vcmp.lt.s32.totalorder %v576, 1
          %v641 = vsel %vm640, %v633, %v637
          %v642 = vsel %vm640, %v635, %v639
          %v643 = vsel %vm640, %v637, %v633
          %v644 = vsel %vm640, %v639, %v635
          %v645 = vperm.slane %v482, 3
          %v646 = vperm.slane %v483, 3
          %v647 = vmul.f32 %v643, %v645
          %v648 = vmul.f32 %v641, %v646
          %v649 = vmul.f32 %v644, %v645
          %v650 = vmul.f32 %v642, %v646
          %v651 = vpack.c.bf16 %v648, %v647
          %v652 = vpack.c.bf16 %v650, %v649
          %v653 = vperm.slane %v482, 4
          %v654 = vperm.slane %v483, 4
          %v655 = vmul.f32 %v509, %v653
          %v656 = vmul.f32 %v523, %v654
          %v657 = vmul.f32 %v511, %v653
          %v658 = vmul.f32 %v525, %v654
          %v659 = vpack.c.bf16 %v656, %v655
          %v660 = vpack.c.bf16 %v658, %v657
          %661 = vrot.lane.b32.xlu0 %v509, 127
          %v662 = vpop.permute.xlu0 %661
          %663 = vrot.lane.b32.xlu0 %v511, 127
          %v664 = vpop.permute.xlu0 %663
          %665 = vrot.lane.b32.xlu0 %v523, 127
          %v666 = vpop.permute.xlu0 %665
          %667 = vrot.lane.b32.xlu0 %v525, 127
          %v668 = vpop.permute.xlu0 %667
          %vm669 = vcmp.lt.s32.totalorder %v576, 127
          %v670 = vsel %vm669, %v662, %v666
          %v671 = vsel %vm669, %v664, %v668
          %v672 = vsel %vm669, %v666, %v662
          %v673 = vsel %vm669, %v668, %v664
          %v674 = vperm.slane %v482, 5
          %v675 = vperm.slane %v483, 5
          %v676 = vmul.f32 %v670, %v674
          %v677 = vmul.f32 %v672, %v675
          %v678 = vmul.f32 %v671, %v674
          %v679 = vmul.f32 %v673, %v675
          %v680 = vpack.c.bf16 %v677, %v676
          %v681 = vpack.c.bf16 %v679, %v678
          %682 = vrot.lane.b32.xlu0 %v509, 113
          %v683 = vpop.permute.xlu0 %682
          %684 = vrot.lane.b32.xlu0 %v511, 113
          %v685 = vpop.permute.xlu0 %684
          %686 = vrot.lane.b32.xlu0 %v523, 113
          %v687 = vpop.permute.xlu0 %686
          %688 = vrot.lane.b32.xlu0 %v525, 113
          %v689 = vpop.permute.xlu0 %688
          %vm690 = vcmp.lt.s32.totalorder %v576, 113
          %v691 = vsel %vm690, %v683, %v687
          %v692 = vsel %vm690, %v685, %v689
          %v693 = vsel %vm690, %v687, %v683
          %v694 = vsel %vm690, %v689, %v685
          %v695 = vperm.slane %v482, 6
          %v696 = vperm.slane %v483, 6
          %v697 = vmul.f32 %v691, %v695
          %v698 = vmul.f32 %v693, %v696
          %v699 = vmul.f32 %v692, %v695
          %v700 = vmul.f32 %v694, %v696
          %v701 = vpack.c.bf16 %v698, %v697
          %v702 = vpack.c.bf16 %v700, %v699
          %703 = vrot.lane.b32.xlu0 %v509, 112
          %v704 = vpop.permute.xlu0 %703
          %705 = vrot.lane.b32.xlu0 %v511, 112
          %v706 = vpop.permute.xlu0 %705
          %707 = vrot.lane.b32.xlu0 %v523, 112
          %v708 = vpop.permute.xlu0 %707
          %709 = vrot.lane.b32.xlu0 %v525, 112
          %v710 = vpop.permute.xlu0 %709
          %vm711 = vcmp.lt.s32.totalorder %v576, 112
          %v712 = vsel %vm711, %v704, %v708
          %v713 = vsel %vm711, %v706, %v710
          %v714 = vsel %vm711, %v708, %v704
          %v715 = vsel %vm711, %v710, %v706
          %v716 = vperm.slane %v482, 7
          %v717 = vperm.slane %v483, 7
          %v718 = vmul.f32 %v712, %v716
          %v719 = vmul.f32 %v714, %v717
          %v720 = vmul.f32 %v713, %v716
          %v721 = vmul.f32 %v715, %v717
          %v722 = vpack.c.bf16 %v719, %v718
          %v723 = vpack.c.bf16 %v721, %v720
          %724 = vrot.lane.b32.xlu0 %v509, 111
          %v725 = vpop.permute.xlu0 %724
          %726 = vrot.lane.b32.xlu0 %v511, 111
          %v727 = vpop.permute.xlu0 %726
          %728 = vrot.lane.b32.xlu0 %v523, 111
          %v729 = vpop.permute.xlu0 %728
          %730 = vrot.lane.b32.xlu0 %v525, 111
          %v731 = vpop.permute.xlu0 %730
          %vm732 = vcmp.lt.s32.totalorder %v576, 111
          %v733 = vsel %vm732, %v725, %v729
          %v734 = vsel %vm732, %v727, %v731
          %v735 = vsel %vm732, %v729, %v725
          %v736 = vsel %vm732, %v731, %v727
          %v737 = vperm.slane %v484, 0
          %v738 = vperm.slane %v485, 0
          %v739 = vmul.f32 %v733, %v737
          %v740 = vmul.f32 %v735, %v738
          %v741 = vmul.f32 %v734, %v737
          %v742 = vmul.f32 %v736, %v738
          %v743 = vpack.c.bf16 %v740, %v739
          %v744 = vpack.c.bf16 %v742, %v741
          %v747 = vunpack.c.l.b16 %v588
          %v748 = vunpack.c.h.b16 %v588
          %v749 = vunpack.c.l.b16 %v589
          %v750 = vunpack.c.h.b16 %v589
          %v751 = vpack.c.b16 %v749, %v747
          %v752 = vpack.c.b16 %v750, %v748
          %v757 = vunpack.c.l.b16 %v609
          %v758 = vunpack.c.h.b16 %v609
          %v759 = vunpack.c.l.b16 %v610
          %v760 = vunpack.c.h.b16 %v610
          %v761 = vpack.c.b16 %v759, %v757
          %v762 = vpack.c.b16 %v760, %v758
          %v767 = vunpack.c.l.b16 %v630
          %v768 = vunpack.c.h.b16 %v630
          %v769 = vunpack.c.l.b16 %v631
          %v770 = vunpack.c.h.b16 %v631
          %v771 = vpack.c.b16 %v769, %v767
          %v772 = vpack.c.b16 %v770, %v768
          %v777 = vunpack.c.l.b16 %v651
          %v778 = vunpack.c.h.b16 %v651
          %v779 = vunpack.c.l.b16 %v652
          %v780 = vunpack.c.h.b16 %v652
          %v781 = vpack.c.b16 %v779, %v777
          %v782 = vpack.c.b16 %v780, %v778
          %v787 = vunpack.c.l.b16 %v659
          %v788 = vunpack.c.h.b16 %v659
          %v789 = vunpack.c.l.b16 %v660
          %v790 = vunpack.c.h.b16 %v660
          %v791 = vpack.c.b16 %v789, %v787
          %v792 = vpack.c.b16 %v790, %v788
          %v797 = vunpack.c.l.b16 %v680
          %v798 = vunpack.c.h.b16 %v680
          %v799 = vunpack.c.l.b16 %v681
          %v800 = vunpack.c.h.b16 %v681
          %v801 = vpack.c.b16 %v799, %v797
          %v802 = vpack.c.b16 %v800, %v798
          %v807 = vunpack.c.l.b16 %v701
          %v808 = vunpack.c.h.b16 %v701
          %v809 = vunpack.c.l.b16 %v702
          %v810 = vunpack.c.h.b16 %v702
          %v811 = vpack.c.b16 %v809, %v807
          %v812 = vpack.c.b16 %v810, %v808
          %v817 = vunpack.c.l.b16 %v722
          %v818 = vunpack.c.h.b16 %v722
          %v819 = vunpack.c.l.b16 %v723
          %v820 = vunpack.c.h.b16 %v723
          %v821 = vpack.c.b16 %v819, %v817
          %v822 = vpack.c.b16 %v820, %v818
          %v827 = vunpack.c.l.b16 %v743
          %v828 = vunpack.c.h.b16 %v743
          %v829 = vunpack.c.l.b16 %v744
          %v830 = vunpack.c.h.b16 %v744
          %v831 = vpack.c.b16 %v829, %v827
          %v832 = vpack.c.b16 %v830, %v828
          %835 = vrot.lane.b32.xlu0 %v549, 17
          %v836 = vpop.permute.xlu0 %835
          %837 = vrot.lane.b32.xlu0 %v551, 17
          %v838 = vpop.permute.xlu0 %837
          %839 = vrot.lane.b32.xlu0 %v563, 17
          %v840 = vpop.permute.xlu0 %839
          %841 = vrot.lane.b32.xlu0 %v565, 17
          %v842 = vpop.permute.xlu0 %841
          %v843 = vsel %vm577, %v836, %v840
          %v844 = vsel %vm577, %v838, %v842
          %v845 = vsel %vm577, %v840, %v836
          %v846 = vsel %vm577, %v842, %v838
          %v847 = vmul.f32 %v845, %v582
          %v848 = vmul.f32 %v843, %v583
          %v849 = vmul.f32 %v846, %v582
          %v850 = vmul.f32 %v844, %v583
          %v851 = vpack.c.bf16 %v848, %v847
          %v852 = vpack.c.bf16 %v850, %v849
          %853 = vrot.lane.b32.xlu0 %v549, 16
          %v854 = vpop.permute.xlu0 %853
          %855 = vrot.lane.b32.xlu0 %v551, 16
          %v856 = vpop.permute.xlu0 %855
          %857 = vrot.lane.b32.xlu0 %v563, 16
          %v858 = vpop.permute.xlu0 %857
          %859 = vrot.lane.b32.xlu0 %v565, 16
          %v860 = vpop.permute.xlu0 %859
          %v861 = vsel %vm598, %v854, %v858
          %v862 = vsel %vm598, %v856, %v860
          %v863 = vsel %vm598, %v858, %v854
          %v864 = vsel %vm598, %v860, %v856
          %v865 = vmul.f32 %v863, %v603
          %v866 = vmul.f32 %v861, %v604
          %v867 = vmul.f32 %v864, %v603
          %v868 = vmul.f32 %v862, %v604
          %v869 = vpack.c.bf16 %v866, %v865
          %v870 = vpack.c.bf16 %v868, %v867
          %871 = vrot.lane.b32.xlu0 %v549, 15
          %v872 = vpop.permute.xlu0 %871
          %873 = vrot.lane.b32.xlu0 %v551, 15
          %v874 = vpop.permute.xlu0 %873
          %875 = vrot.lane.b32.xlu0 %v563, 15
          %v876 = vpop.permute.xlu0 %875
          %877 = vrot.lane.b32.xlu0 %v565, 15
          %v878 = vpop.permute.xlu0 %877
          %v879 = vsel %vm619, %v872, %v876
          %v880 = vsel %vm619, %v874, %v878
          %v881 = vsel %vm619, %v876, %v872
          %v882 = vsel %vm619, %v878, %v874
          %v883 = vmul.f32 %v881, %v624
          %v884 = vmul.f32 %v879, %v625
          %v885 = vmul.f32 %v882, %v624
          %v886 = vmul.f32 %v880, %v625
          %v887 = vpack.c.bf16 %v884, %v883
          %v888 = vpack.c.bf16 %v886, %v885
          %889 = vrot.lane.b32.xlu0 %v549, 1
          %v890 = vpop.permute.xlu0 %889
          %891 = vrot.lane.b32.xlu0 %v551, 1
          %v892 = vpop.permute.xlu0 %891
          %893 = vrot.lane.b32.xlu0 %v563, 1
          %v894 = vpop.permute.xlu0 %893
          %895 = vrot.lane.b32.xlu0 %v565, 1
          %v896 = vpop.permute.xlu0 %895
          %v897 = vsel %vm640, %v890, %v894
          %v898 = vsel %vm640, %v892, %v896
          %v899 = vsel %vm640, %v894, %v890
          %v900 = vsel %vm640, %v896, %v892
          %v901 = vmul.f32 %v899, %v645
          %v902 = vmul.f32 %v897, %v646
          %v903 = vmul.f32 %v900, %v645
          %v904 = vmul.f32 %v898, %v646
          %v905 = vpack.c.bf16 %v902, %v901
          %v906 = vpack.c.bf16 %v904, %v903
          %v907 = vmul.f32 %v549, %v653
          %v908 = vmul.f32 %v563, %v654
          %v909 = vmul.f32 %v551, %v653
          %v910 = vmul.f32 %v565, %v654
          %v911 = vpack.c.bf16 %v908, %v907
          %v912 = vpack.c.bf16 %v910, %v909
          %913 = vrot.lane.b32.xlu0 %v549, 127
          %v914 = vpop.permute.xlu0 %913
          %915 = vrot.lane.b32.xlu0 %v551, 127
          %v916 = vpop.permute.xlu0 %915
          %917 = vrot.lane.b32.xlu0 %v563, 127
          %v918 = vpop.permute.xlu0 %917
          %919 = vrot.lane.b32.xlu0 %v565, 127
          %v920 = vpop.permute.xlu0 %919
          %v921 = vsel %vm669, %v914, %v918
          %v922 = vsel %vm669, %v916, %v920
          %v923 = vsel %vm669, %v918, %v914
          %v924 = vsel %vm669, %v920, %v916
          %v925 = vmul.f32 %v921, %v674
          %v926 = vmul.f32 %v923, %v675
          %v927 = vmul.f32 %v922, %v674
          %v928 = vmul.f32 %v924, %v675
          %v929 = vpack.c.bf16 %v926, %v925
          %v930 = vpack.c.bf16 %v928, %v927
          %931 = vrot.lane.b32.xlu0 %v549, 113
          %v932 = vpop.permute.xlu0 %931
          %933 = vrot.lane.b32.xlu0 %v551, 113
          %v934 = vpop.permute.xlu0 %933
          %935 = vrot.lane.b32.xlu0 %v563, 113
          %v936 = vpop.permute.xlu0 %935
          %937 = vrot.lane.b32.xlu0 %v565, 113
          %v938 = vpop.permute.xlu0 %937
          %v939 = vsel %vm690, %v932, %v936
          %v940 = vsel %vm690, %v934, %v938
          %v941 = vsel %vm690, %v936, %v932
          %v942 = vsel %vm690, %v938, %v934
          %v943 = vmul.f32 %v939, %v695
          %v944 = vmul.f32 %v941, %v696
          %v945 = vmul.f32 %v940, %v695
          %v946 = vmul.f32 %v942, %v696
          %v947 = vpack.c.bf16 %v944, %v943
          %v948 = vpack.c.bf16 %v946, %v945
          %949 = vrot.lane.b32.xlu0 %v549, 112
          %v950 = vpop.permute.xlu0 %949
          %951 = vrot.lane.b32.xlu0 %v551, 112
          %v952 = vpop.permute.xlu0 %951
          %953 = vrot.lane.b32.xlu0 %v563, 112
          %v954 = vpop.permute.xlu0 %953
          %955 = vrot.lane.b32.xlu0 %v565, 112
          %v956 = vpop.permute.xlu0 %955
          %v957 = vsel %vm711, %v950, %v954
          %v958 = vsel %vm711, %v952, %v956
          %v959 = vsel %vm711, %v954, %v950
          %v960 = vsel %vm711, %v956, %v952
          %v961 = vmul.f32 %v957, %v716
          %v962 = vmul.f32 %v959, %v717
          %v963 = vmul.f32 %v958, %v716
          %v964 = vmul.f32 %v960, %v717
          %v965 = vpack.c.bf16 %v962, %v961
          %v966 = vpack.c.bf16 %v964, %v963
          %967 = vrot.lane.b32.xlu0 %v549, 111
          %v968 = vpop.permute.xlu0 %967
          %969 = vrot.lane.b32.xlu0 %v551, 111
          %v970 = vpop.permute.xlu0 %969
          %971 = vrot.lane.b32.xlu0 %v563, 111
          %v972 = vpop.permute.xlu0 %971
          %973 = vrot.lane.b32.xlu0 %v565, 111
          %v974 = vpop.permute.xlu0 %973
          %v975 = vsel %vm732, %v968, %v972
          %v976 = vsel %vm732, %v970, %v974
          %v977 = vsel %vm732, %v972, %v968
          %v978 = vsel %vm732, %v974, %v970
          %v979 = vmul.f32 %v975, %v737
          %v980 = vmul.f32 %v977, %v738
          %v981 = vmul.f32 %v976, %v737
          %v982 = vmul.f32 %v978, %v738
          %v983 = vpack.c.bf16 %v980, %v979
          %v984 = vpack.c.bf16 %v982, %v981
          %v987 = vunpack.c.l.b16 %v851
          %v988 = vunpack.c.h.b16 %v851
          %v989 = vunpack.c.l.b16 %v852
          %v990 = vunpack.c.h.b16 %v852
          %v991 = vpack.c.b16 %v989, %v987
          %v992 = vpack.c.b16 %v990, %v988
          %v997 = vunpack.c.l.b16 %v869
          %v998 = vunpack.c.h.b16 %v869
          %v999 = vunpack.c.l.b16 %v870
          %v1000 = vunpack.c.h.b16 %v870
          %v1001 = vpack.c.b16 %v999, %v997
          %v1002 = vpack.c.b16 %v1000, %v998
          %v1007 = vunpack.c.l.b16 %v887
          %v1008 = vunpack.c.h.b16 %v887
          %v1009 = vunpack.c.l.b16 %v888
          %v1010 = vunpack.c.h.b16 %v888
          %v1011 = vpack.c.b16 %v1009, %v1007
          %v1012 = vpack.c.b16 %v1010, %v1008
          %v1017 = vunpack.c.l.b16 %v905
          %v1018 = vunpack.c.h.b16 %v905
          %v1019 = vunpack.c.l.b16 %v906
          %v1020 = vunpack.c.h.b16 %v906
          %v1021 = vpack.c.b16 %v1019, %v1017
          %v1022 = vpack.c.b16 %v1020, %v1018
          %v1027 = vunpack.c.l.b16 %v911
          %v1028 = vunpack.c.h.b16 %v911
          %v1029 = vunpack.c.l.b16 %v912
          %v1030 = vunpack.c.h.b16 %v912
          %v1031 = vpack.c.b16 %v1029, %v1027
          %v1032 = vpack.c.b16 %v1030, %v1028
          %v1037 = vunpack.c.l.b16 %v929
          %v1038 = vunpack.c.h.b16 %v929
          %v1039 = vunpack.c.l.b16 %v930
          %v1040 = vunpack.c.h.b16 %v930
          %v1041 = vpack.c.b16 %v1039, %v1037
          %v1042 = vpack.c.b16 %v1040, %v1038
          %v1047 = vunpack.c.l.b16 %v947
          %v1048 = vunpack.c.h.b16 %v947
          %v1049 = vunpack.c.l.b16 %v948
          %v1050 = vunpack.c.h.b16 %v948
          %v1051 = vpack.c.b16 %v1049, %v1047
          %v1052 = vpack.c.b16 %v1050, %v1048
          %v1057 = vunpack.c.l.b16 %v965
          %v1058 = vunpack.c.h.b16 %v965
          %v1059 = vunpack.c.l.b16 %v966
          %v1060 = vunpack.c.h.b16 %v966
          %v1061 = vpack.c.b16 %v1059, %v1057
          %v1062 = vpack.c.b16 %v1060, %v1058
          %v1067 = vunpack.c.l.b16 %v983
          %v1068 = vunpack.c.h.b16 %v983
          %v1069 = vunpack.c.l.b16 %v984
          %v1070 = vunpack.c.h.b16 %v984
          %v1071 = vpack.c.b16 %v1069, %v1067
          %v1072 = vpack.c.b16 %v1070, %v1068
          %v1075 = vld [vmem:[%s11] sm:$0xf]
          %v1076 = vld [vmem:[%s5] sm:$0xf]
          %s1077 = scalar_lea.vmem %s5, 4
          %v1078 = vld [vmem:[%s1077] sm:$0xf]
          %1080 = vst [vmem:[#allocation1] ss:$4 sm:$0xff] %v1078
          %v1081 = vld.sshfl [vmem:[#allocation1] sm:$0xff pattern:$0x73625140]
          %v1082 = vld.sshfl [vmem:[#allocation1 + $0x8] sm:$0xff pattern:$0x73625140]
          %v1084 = vsel %vm495, %v1082, 0
          %1086 = vmatpush.bf16.msra.mxu0 %v1061
          %1087 = vmatpush.bf16.msra.mxu0 %v1051
          %1088 = vmatpush.bf16.msra.mxu0 %v1041
          %1089 = vmatpush.bf16.msra.mxu0 %v1031
          %1090 = vmatpush.bf16.msra.mxu0 %v1021
          %1091 = vmatpush.bf16.msra.mxu0 %v1011
          %1092 = vmatpush.bf16.msra.mxu0 %v1001
          %1093 = vmatpush.bf16.msra.mxu0 %v991
          %1094 = vmatmul.bf16.gmra.mxu0 %v1081
          %v1095 = vpop.f32.mrf.mxu0
          %v1096 = vadd.f32 0.0, %v1095
          %v1097 = vpop.f32.mrf.mxu0
          %1098 = vdwg.mxu0
          %1099 = vmatpush.bf16.msra.mxu0 0
          %1100 = vmatpush.bf16.msra.mxu0 0
          %1101 = vmatpush.bf16.msra.mxu0 0
          %1102 = vmatpush.bf16.msra.mxu0 0
          %1103 = vmatpush.bf16.msra.mxu0 0
          %1104 = vmatpush.bf16.msra.mxu0 0
          %1105 = vmatpush.bf16.msra.mxu0 0
          %1106 = vmatpush.bf16.msra.mxu0 %v1071
          %1107 = vmatmul.bf16.gmra.mxu0 %v1084
          %v1108 = vpop.f32.mrf.mxu0
          %v1109 = vadd.f32 %v1096, %v1108
          %v1110 = vpop.f32.mrf.mxu0
          %1111 = vdwg.mxu0
          %1112 = vmatpush.bf16.msra.mxu0 %v1062
          %1113 = vmatpush.bf16.msra.mxu0 %v1052
          %1114 = vmatpush.bf16.msra.mxu0 %v1042
          %1115 = vmatpush.bf16.msra.mxu0 %v1032
          %1116 = vmatpush.bf16.msra.mxu0 %v1022
          %1117 = vmatpush.bf16.msra.mxu0 %v1012
          %1118 = vmatpush.bf16.msra.mxu0 %v1002
          %1119 = vmatpush.bf16.msra.mxu0 %v992
          %1120 = vmatmul.bf16.gmra.mxu0 %v1081
          %v1121 = vpop.f32.mrf.mxu0
          %v1122 = vadd.f32 0.0, %v1121
          %v1123 = vpop.f32.mrf.mxu0
          %1124 = vdwg.mxu0
          %1125 = vmatpush.bf16.msra.mxu0 0
          %1126 = vmatpush.bf16.msra.mxu0 0
          %1127 = vmatpush.bf16.msra.mxu0 0
          %1128 = vmatpush.bf16.msra.mxu0 0
          %1129 = vmatpush.bf16.msra.mxu0 0
          %1130 = vmatpush.bf16.msra.mxu0 0
          %1131 = vmatpush.bf16.msra.mxu0 0
          %1132 = vmatpush.bf16.msra.mxu0 %v1072
          %1133 = vmatmul.bf16.gmra.mxu0 %v1084
          %v1134 = vpop.f32.mrf.mxu0
          %v1135 = vadd.f32 %v1122, %v1134
          %v1136 = vpop.f32.mrf.mxu0
          %1137 = vdwg.mxu0
          %1139 = vst [vmem:[#allocation1] ss:$4 sm:$0xff] %v1076
          %v1140 = vld.sshfl [vmem:[#allocation1] sm:$0xff pattern:$0x73625140]
          %v1141 = vld.sshfl [vmem:[#allocation1 + $0x8] sm:$0xff pattern:$0x73625140]
          %v1143 = vsel %vm495, %v1141, 0
          %1145 = vmatpush.bf16.msra.mxu0 %v821
          %1146 = vmatpush.bf16.msra.mxu0 %v811
          %1147 = vmatpush.bf16.msra.mxu0 %v801
          %1148 = vmatpush.bf16.msra.mxu0 %v791
          %1149 = vmatpush.bf16.msra.mxu0 %v781
          %1150 = vmatpush.bf16.msra.mxu0 %v771
          %1151 = vmatpush.bf16.msra.mxu0 %v761
          %1152 = vmatpush.bf16.msra.mxu0 %v751
          %1153 = vmatmul.bf16.gmra.mxu0 %v1140
          %v1154 = vpop.f32.mrf.mxu0
          %v1155 = vadd.f32 %v1109, %v1154
          %v1156 = vpop.f32.mrf.mxu0
          %1157 = vdwg.mxu0
          %1158 = vmatpush.bf16.msra.mxu0 0
          %1159 = vmatpush.bf16.msra.mxu0 0
          %1160 = vmatpush.bf16.msra.mxu0 0
          %1161 = vmatpush.bf16.msra.mxu0 0
          %1162 = vmatpush.bf16.msra.mxu0 0
          %1163 = vmatpush.bf16.msra.mxu0 0
          %1164 = vmatpush.bf16.msra.mxu0 0
          %1165 = vmatpush.bf16.msra.mxu0 %v831
          %1166 = vmatmul.bf16.gmra.mxu0 %v1143
          %v1167 = vpop.f32.mrf.mxu0
          %v1168 = vadd.f32 %v1155, %v1167
          %v1169 = vpop.f32.mrf.mxu0
          %1170 = vdwg.mxu0
          %1171 = vmatpush.bf16.msra.mxu0 %v822
          %1172 = vmatpush.bf16.msra.mxu0 %v812
          %1173 = vmatpush.bf16.msra.mxu0 %v802
          %1174 = vmatpush.bf16.msra.mxu0 %v792
          %1175 = vmatpush.bf16.msra.mxu0 %v782
          %1176 = vmatpush.bf16.msra.mxu0 %v772
          %1177 = vmatpush.bf16.msra.mxu0 %v762
          %1178 = vmatpush.bf16.msra.mxu0 %v752
          %1179 = vmatmul.bf16.gmra.mxu0 %v1140
          %v1180 = vpop.f32.mrf.mxu0
          %v1181 = vadd.f32 %v1135, %v1180
          %v1182 = vpop.f32.mrf.mxu0
          %1183 = vdwg.mxu0
          %1184 = vmatpush.bf16.msra.mxu0 0
          %1185 = vmatpush.bf16.msra.mxu0 0
          %1186 = vmatpush.bf16.msra.mxu0 0
          %1187 = vmatpush.bf16.msra.mxu0 0
          %1188 = vmatpush.bf16.msra.mxu0 0
          %1189 = vmatpush.bf16.msra.mxu0 0
          %1190 = vmatpush.bf16.msra.mxu0 0
          %1191 = vmatpush.bf16.msra.mxu0 %v832
          %1192 = vmatmul.bf16.gmra.mxu0 %v1143
          %v1193 = vpop.f32.mrf.mxu0
          %v1194 = vadd.f32 %v1181, %v1193
          %v1195 = vpop.f32.mrf.mxu0
          %1196 = vdwg.mxu0
          %1198 = vset.pattern.permute.xlu0 0
          %1199 = vperm.xlu0 %1198, %v1075
          %v1200 = vpop.permute.xlu0 %1199
          %v1202 = vadd.f32 %v1168, %v1200
          %v1203 = vadd.f32 %v1194, %v1200
          %v1204 = vsub.f32 0.0, %v1202
          %v1205 = vsub.f32 0.0, %v1203
          %v1206 = vmul.f32 %v1204, 1.442695
          %v1207 = vpow.pop %v1206
          %v1208 = vmul.f32 %v1205, 1.442695
          %v1209 = vpow.pop %v1208
          %v1210 = vadd.f32 %v1207, 1.0
          %v1211 = vadd.f32 %v1209, 1.0
          %v1212 = vrcp.pop %v1210
          %v1213 = vrcp.pop %v1211
          %v1216 = vrot.slane %v1212, 2
          %v1217 = vrot.slane %v1213, 2
          %v1220 = vmul.f32 %v1202, %v1216
          %v1221 = vmul.f32 %v1203, %v1217
          %v1222 = vmul.f32 %v1220, 0.0625
          %v1223 = vmul.f32 %v1221, 0.0625
          %v1226 = vrot.slane %v1222, 7
          %v1227 = vrot.slane %v1223, 7
          %v1230 = vadd.f32 %v484, %v1226
          %v1231 = vadd.f32 %v485, %v1227
          %v1232 = vadd.f32 %v1230, 1.0
          %v1233 = vadd.f32 %v1231, 1.0
          %v1234 = vmul.f32 %v1232, 16.0
          %v1235 = vmul.f32 %v1233, 16.0
          %v1236 = vsub.f32 %v1234, 1.0
          %v1237 = vsub.f32 %v1235, 1.0
          %v1238 = vmul.f32 %v1236, 0.5
          %v1239 = vmul.f32 %v1237, 0.5
          %v1240 = vfloor.f32 %v1238
          %v1241 = vfloor.f32 %v1239
          %v1242 = vsub.f32 %v1238, %v1240
          %v1243 = vsub.f32 %v1239, %v1241
          %v1244 = vcvt.f32.s32.to.zero.pseudo %v1240
          %v1245 = vcvt.f32.s32.to.zero.pseudo %v1241
          %v1246 = vpack.c.bf16 %v551, %v549
          %v1247 = vpack.c.bf16 %v565, %v563
          %v1248 = vlaneseq
          %v1249 = vshrl.u32 %v1248, 7
          %v1250 = vadd.s32 %v1249, 8
          %v1251 = vadd.s32 %v1249, 16
          %v1252 = vadd.s32 %v1249, 24
          %v1253 = vadd.s32 %v1249, 32
          %v1254 = vadd.s32 %v1249, 40
          %v1255 = vadd.s32 %v1249, 48
          %v1256 = vadd.s32 %v1249, 56
          %v1257 = vadd.s32 %v1249, 64
          %v1258 = vadd.s32 %v1249, 72
          %v1259 = vadd.s32 %v1249, 80
          %v1260 = vadd.s32 %v1249, 88
          %v1261 = vadd.s32 %v1249, 96
          %v1262 = vadd.s32 %v1249, 104
          %v1263 = vadd.s32 %v1249, 112
          %v1264 = vadd.s32 %v1249, 120
          %v1265 = vadd.s32 %v1249, 128
          %v1266 = vadd.s32 %v1249, 136
          %v1267 = vadd.s32 %v1249, 144
          %v1268 = vadd.s32 %v1249, 152
          %v1269 = vadd.s32 %v1249, 160
          %v1270 = vadd.s32 %v1249, 168
          %v1271 = vadd.s32 %v1249, 176
          %v1272 = vadd.s32 %v1249, 184
          %v1273 = vadd.s32 %v1249, 192
          %v1274 = vadd.s32 %v1249, 200
          %v1275 = vadd.s32 %v1249, 208
          %v1276 = vadd.s32 %v1249, 216
          %v1277 = vadd.s32 %v1249, 224
          %v1278 = vadd.s32 %v1249, 232
          %v1279 = vadd.s32 %v1249, 240
          %v1280 = vadd.s32 %v1249, 248
          %v1281 = vsub.f32 1.0, %v1242
          %v1282 = vsub.f32 1.0, %v1243
          %v1285 = vrot.slane %v1281, 1
          %v1286 = vrot.slane %v1282, 1
          %v1289 = vmul.f32 %v1281, %v1285
          %v1290 = vmul.f32 %v1282, %v1286
          %v1291 = vmul.f32 %v1242, %v1285
          %v1292 = vmul.f32 %v1243, %v1286
          %v1295 = vrot.slane %v1242, 1
          %v1296 = vrot.slane %v1243, 1
          %v1299 = vmul.f32 %v1281, %v1295
          %v1300 = vmul.f32 %v1282, %v1296
          %v1301 = vmul.f32 %v1242, %v1295
          %v1302 = vmul.f32 %v1243, %v1296
          %vm1303 = vcmp.ge.s32.totalorder %v1244, 0
          %vm1304 = vcmp.ge.s32.totalorder %v1245, 0
          %vm1305 = vcmp.lt.s32.totalorder %v1244, 16
          %vm1306 = vcmp.lt.s32.totalorder %v1245, 16
          %vm1307 = vmand %vm1303, %vm1305
          %vm1308 = vmand %vm1304, %vm1306
          %v1309 = vsel %vm1303, 1, 0
          %v1310 = vsel %vm1304, 1, 0
          %v1311 = vrot.slane %v1309, 1
          %v1312 = vrot.slane %v1310, 1
          %vm1313 = vcmp.ne.s32.totalorder %v1311, 0
          %vm1314 = vcmp.ne.s32.totalorder %v1312, 0
          %vm1315 = vmand %vm1307, %vm1313
          %vm1316 = vmand %vm1308, %vm1314
          %v1317 = vsel %vm1305, 1, 0
          %v1318 = vsel %vm1306, 1, 0
          %v1319 = vrot.slane %v1317, 1
          %v1320 = vrot.slane %v1318, 1
          %vm1321 = vcmp.ne.s32.totalorder %v1319, 0
          %vm1322 = vcmp.ne.s32.totalorder %v1320, 0
          %vm1323 = vmand %vm1315, %vm1321
          %vm1324 = vmand %vm1316, %vm1322
          %v1325 = vsel %vm1323, %v1289, 0.0
          %v1326 = vsel %vm1324, %v1290, 0.0
          %vm1327 = vcmp.gt.s32.totalorder %v1244, 0
          %v1328 = vsel %vm1327, %v1244, 0
          %vm1329 = vcmp.gt.s32.totalorder %v1245, 0
          %v1330 = vsel %vm1329, %v1245, 0
          %vm1331 = vcmp.lt.s32.totalorder %v1328, 15
          %v1332 = vsel %vm1331, %v1328, 15
          %vm1333 = vcmp.lt.s32.totalorder %v1330, 15
          %v1334 = vsel %vm1333, %v1330, 15
          %v1335 = vmul.u32 %v1332, 16
          %v1336 = vmul.u32 %v1334, 16
          %v1337 = vrot.slane %v1332, 7
          %v1338 = vrot.slane %v1334, 7
          %v1339 = vadd.s32 %v1335, %v1337
          %v1340 = vadd.s32 %v1336, %v1338
          %v1341 = vperm.slane %v1339, 2
          %v1342 = vperm.slane %v1340, 2
          %vm1343 = vcmp.eq.s32.totalorder %v1249, %v1341
          %vm1344 = vcmp.eq.s32.totalorder %v1249, %v1342
          %vm1345 = vcmp.eq.s32.totalorder %v1250, %v1341
          %vm1346 = vcmp.eq.s32.totalorder %v1250, %v1342
          %vm1347 = vcmp.eq.s32.totalorder %v1251, %v1341
          %vm1348 = vcmp.eq.s32.totalorder %v1251, %v1342
          %vm1349 = vcmp.eq.s32.totalorder %v1252, %v1341
          %vm1350 = vcmp.eq.s32.totalorder %v1252, %v1342
          %vm1351 = vcmp.eq.s32.totalorder %v1253, %v1341
          %vm1352 = vcmp.eq.s32.totalorder %v1253, %v1342
          %vm1353 = vcmp.eq.s32.totalorder %v1254, %v1341
          %vm1354 = vcmp.eq.s32.totalorder %v1254, %v1342
          %vm1355 = vcmp.eq.s32.totalorder %v1255, %v1341
          %vm1356 = vcmp.eq.s32.totalorder %v1255, %v1342
          %vm1357 = vcmp.eq.s32.totalorder %v1256, %v1341
          %vm1358 = vcmp.eq.s32.totalorder %v1256, %v1342
          %vm1359 = vcmp.eq.s32.totalorder %v1257, %v1341
          %vm1360 = vcmp.eq.s32.totalorder %v1257, %v1342
          %vm1361 = vcmp.eq.s32.totalorder %v1258, %v1341
          %vm1362 = vcmp.eq.s32.totalorder %v1258, %v1342
          %vm1363 = vcmp.eq.s32.totalorder %v1259, %v1341
          %vm1364 = vcmp.eq.s32.totalorder %v1259, %v1342
          %vm1365 = vcmp.eq.s32.totalorder %v1260, %v1341
          %vm1366 = vcmp.eq.s32.totalorder %v1260, %v1342
          %vm1367 = vcmp.eq.s32.totalorder %v1261, %v1341
          %vm1368 = vcmp.eq.s32.totalorder %v1261, %v1342
          %vm1369 = vcmp.eq.s32.totalorder %v1262, %v1341
          %vm1370 = vcmp.eq.s32.totalorder %v1262, %v1342
          %vm1371 = vcmp.eq.s32.totalorder %v1263, %v1341
          %vm1372 = vcmp.eq.s32.totalorder %v1263, %v1342
          %vm1373 = vcmp.eq.s32.totalorder %v1264, %v1341
          %vm1374 = vcmp.eq.s32.totalorder %v1264, %v1342
          %vm1375 = vcmp.eq.s32.totalorder %v1265, %v1341
          %vm1376 = vcmp.eq.s32.totalorder %v1265, %v1342
          %vm1377 = vcmp.eq.s32.totalorder %v1266, %v1341
          %vm1378 = vcmp.eq.s32.totalorder %v1266, %v1342
          %vm1379 = vcmp.eq.s32.totalorder %v1267, %v1341
          %vm1380 = vcmp.eq.s32.totalorder %v1267, %v1342
          %vm1381 = vcmp.eq.s32.totalorder %v1268, %v1341
          %vm1382 = vcmp.eq.s32.totalorder %v1268, %v1342
          %vm1383 = vcmp.eq.s32.totalorder %v1269, %v1341
          %vm1384 = vcmp.eq.s32.totalorder %v1269, %v1342
          %vm1385 = vcmp.eq.s32.totalorder %v1270, %v1341
          %vm1386 = vcmp.eq.s32.totalorder %v1270, %v1342
          %vm1387 = vcmp.eq.s32.totalorder %v1271, %v1341
          %vm1388 = vcmp.eq.s32.totalorder %v1271, %v1342
          %vm1389 = vcmp.eq.s32.totalorder %v1272, %v1341
          %vm1390 = vcmp.eq.s32.totalorder %v1272, %v1342
          %vm1391 = vcmp.eq.s32.totalorder %v1273, %v1341
          %vm1392 = vcmp.eq.s32.totalorder %v1273, %v1342
          %vm1393 = vcmp.eq.s32.totalorder %v1274, %v1341
          %vm1394 = vcmp.eq.s32.totalorder %v1274, %v1342
          %vm1395 = vcmp.eq.s32.totalorder %v1275, %v1341
          %vm1396 = vcmp.eq.s32.totalorder %v1275, %v1342
          %vm1397 = vcmp.eq.s32.totalorder %v1276, %v1341
          %vm1398 = vcmp.eq.s32.totalorder %v1276, %v1342
          %vm1399 = vcmp.eq.s32.totalorder %v1277, %v1341
          %vm1400 = vcmp.eq.s32.totalorder %v1277, %v1342
          %vm1401 = vcmp.eq.s32.totalorder %v1278, %v1341
          %vm1402 = vcmp.eq.s32.totalorder %v1278, %v1342
          %vm1403 = vcmp.eq.s32.totalorder %v1279, %v1341
          %vm1404 = vcmp.eq.s32.totalorder %v1279, %v1342
          %vm1405 = vcmp.eq.s32.totalorder %v1280, %v1341
          %vm1406 = vcmp.eq.s32.totalorder %v1280, %v1342
          %v1407 = vperm.slane %v1325, 1
          %v1408 = vperm.slane %v1326, 1
          %v1409 = vsel %vm1343, %v1407, 0.0
          %v1410 = vsel %vm1344, %v1408, 0.0
          %v1411 = vsel %vm1345, %v1407, 0.0
          %v1412 = vsel %vm1346, %v1408, 0.0
          %v1413 = vsel %vm1347, %v1407, 0.0
          %v1414 = vsel %vm1348, %v1408, 0.0
          %v1415 = vsel %vm1349, %v1407, 0.0
          %v1416 = vsel %vm1350, %v1408, 0.0
          %v1417 = vsel %vm1351, %v1407, 0.0
          %v1418 = vsel %vm1352, %v1408, 0.0
          %v1419 = vsel %vm1353, %v1407, 0.0
          %v1420 = vsel %vm1354, %v1408, 0.0
          %v1421 = vsel %vm1355, %v1407, 0.0
          %v1422 = vsel %vm1356, %v1408, 0.0
          %v1423 = vsel %vm1357, %v1407, 0.0
          %v1424 = vsel %vm1358, %v1408, 0.0
          %v1425 = vsel %vm1359, %v1407, 0.0
          %v1426 = vsel %vm1360, %v1408, 0.0
          %v1427 = vsel %vm1361, %v1407, 0.0
          %v1428 = vsel %vm1362, %v1408, 0.0
          %v1429 = vsel %vm1363, %v1407, 0.0
          %v1430 = vsel %vm1364, %v1408, 0.0
          %v1431 = vsel %vm1365, %v1407, 0.0
          %v1432 = vsel %vm1366, %v1408, 0.0
          %v1433 = vsel %vm1367, %v1407, 0.0
          %v1434 = vsel %vm1368, %v1408, 0.0
          %v1435 = vsel %vm1369, %v1407, 0.0
          %v1436 = vsel %vm1370, %v1408, 0.0
          %v1437 = vsel %vm1371, %v1407, 0.0
          %v1438 = vsel %vm1372, %v1408, 0.0
          %v1439 = vsel %vm1373, %v1407, 0.0
          %v1440 = vsel %vm1374, %v1408, 0.0
          %v1441 = vsel %vm1375, %v1407, 0.0
          %v1442 = vsel %vm1376, %v1408, 0.0
          %v1443 = vsel %vm1377, %v1407, 0.0
          %v1444 = vsel %vm1378, %v1408, 0.0
          %v1445 = vsel %vm1379, %v1407, 0.0
          %v1446 = vsel %vm1380, %v1408, 0.0
          %v1447 = vsel %vm1381, %v1407, 0.0
          %v1448 = vsel %vm1382, %v1408, 0.0
          %v1449 = vsel %vm1383, %v1407, 0.0
          %v1450 = vsel %vm1384, %v1408, 0.0
          %v1451 = vsel %vm1385, %v1407, 0.0
          %v1452 = vsel %vm1386, %v1408, 0.0
          %v1453 = vsel %vm1387, %v1407, 0.0
          %v1454 = vsel %vm1388, %v1408, 0.0
          %v1455 = vsel %vm1389, %v1407, 0.0
          %v1456 = vsel %vm1390, %v1408, 0.0
          %v1457 = vsel %vm1391, %v1407, 0.0
          %v1458 = vsel %vm1392, %v1408, 0.0
          %v1459 = vsel %vm1393, %v1407, 0.0
          %v1460 = vsel %vm1394, %v1408, 0.0
          %v1461 = vsel %vm1395, %v1407, 0.0
          %v1462 = vsel %vm1396, %v1408, 0.0
          %v1463 = vsel %vm1397, %v1407, 0.0
          %v1464 = vsel %vm1398, %v1408, 0.0
          %v1465 = vsel %vm1399, %v1407, 0.0
          %v1466 = vsel %vm1400, %v1408, 0.0
          %v1467 = vsel %vm1401, %v1407, 0.0
          %v1468 = vsel %vm1402, %v1408, 0.0
          %v1469 = vsel %vm1403, %v1407, 0.0
          %v1470 = vsel %vm1404, %v1408, 0.0
          %v1471 = vsel %vm1405, %v1407, 0.0
          %v1472 = vsel %vm1406, %v1408, 0.0
          %v1473 = vadd.s32 %v1244, 1
          %v1474 = vadd.s32 %v1245, 1
          %vm1475 = vcmp.ge.s32.totalorder %v1473, 0
          %vm1476 = vcmp.ge.s32.totalorder %v1474, 0
          %vm1477 = vcmp.lt.s32.totalorder %v1473, 16
          %vm1478 = vcmp.lt.s32.totalorder %v1474, 16
          %vm1479 = vmand %vm1475, %vm1477
          %vm1480 = vmand %vm1476, %vm1478
          %vm1481 = vmand %vm1479, %vm1313
          %vm1482 = vmand %vm1480, %vm1314
          %vm1483 = vmand %vm1481, %vm1321
          %vm1484 = vmand %vm1482, %vm1322
          %v1485 = vsel %vm1483, %v1291, 0.0
          %v1486 = vsel %vm1484, %v1292, 0.0
          %vm1487 = vcmp.gt.s32.totalorder %v1473, 0
          %v1488 = vsel %vm1487, %v1473, 0
          %vm1489 = vcmp.gt.s32.totalorder %v1474, 0
          %v1490 = vsel %vm1489, %v1474, 0
          %vm1491 = vcmp.lt.s32.totalorder %v1488, 15
          %v1492 = vsel %vm1491, %v1488, 15
          %vm1493 = vcmp.lt.s32.totalorder %v1490, 15
          %v1494 = vsel %vm1493, %v1490, 15
          %v1495 = vrot.slane %v1492, 7
          %v1496 = vrot.slane %v1494, 7
          %v1497 = vadd.s32 %v1335, %v1495
          %v1498 = vadd.s32 %v1336, %v1496
          %v1499 = vperm.slane %v1497, 2
          %v1500 = vperm.slane %v1498, 2
          %vm1501 = vcmp.eq.s32.totalorder %v1249, %v1499
          %vm1502 = vcmp.eq.s32.totalorder %v1249, %v1500
          %vm1503 = vcmp.eq.s32.totalorder %v1250, %v1499
          %vm1504 = vcmp.eq.s32.totalorder %v1250, %v1500
          %vm1505 = vcmp.eq.s32.totalorder %v1251, %v1499
          %vm1506 = vcmp.eq.s32.totalorder %v1251, %v1500
          %vm1507 = vcmp.eq.s32.totalorder %v1252, %v1499
          %vm1508 = vcmp.eq.s32.totalorder %v1252, %v1500
          %vm1509 = vcmp.eq.s32.totalorder %v1253, %v1499
          %vm1510 = vcmp.eq.s32.totalorder %v1253, %v1500
          %vm1511 = vcmp.eq.s32.totalorder %v1254, %v1499
          %vm1512 = vcmp.eq.s32.totalorder %v1254, %v1500
          %vm1513 = vcmp.eq.s32.totalorder %v1255, %v1499
          %vm1514 = vcmp.eq.s32.totalorder %v1255, %v1500
          %vm1515 = vcmp.eq.s32.totalorder %v1256, %v1499
          %vm1516 = vcmp.eq.s32.totalorder %v1256, %v1500
          %vm1517 = vcmp.eq.s32.totalorder %v1257, %v1499
          %vm1518 = vcmp.eq.s32.totalorder %v1257, %v1500
          %vm1519 = vcmp.eq.s32.totalorder %v1258, %v1499
          %vm1520 = vcmp.eq.s32.totalorder %v1258, %v1500
          %vm1521 = vcmp.eq.s32.totalorder %v1259, %v1499
          %vm1522 = vcmp.eq.s32.totalorder %v1259, %v1500
          %vm1523 = vcmp.eq.s32.totalorder %v1260, %v1499
          %vm1524 = vcmp.eq.s32.totalorder %v1260, %v1500
          %vm1525 = vcmp.eq.s32.totalorder %v1261, %v1499
          %vm1526 = vcmp.eq.s32.totalorder %v1261, %v1500
          %vm1527 = vcmp.eq.s32.totalorder %v1262, %v1499
          %vm1528 = vcmp.eq.s32.totalorder %v1262, %v1500
          %vm1529 = vcmp.eq.s32.totalorder %v1263, %v1499
          %vm1530 = vcmp.eq.s32.totalorder %v1263, %v1500
          %vm1531 = vcmp.eq.s32.totalorder %v1264, %v1499
          %vm1532 = vcmp.eq.s32.totalorder %v1264, %v1500
          %vm1533 = vcmp.eq.s32.totalorder %v1265, %v1499
          %vm1534 = vcmp.eq.s32.totalorder %v1265, %v1500
          %vm1535 = vcmp.eq.s32.totalorder %v1266, %v1499
          %vm1536 = vcmp.eq.s32.totalorder %v1266, %v1500
          %vm1537 = vcmp.eq.s32.totalorder %v1267, %v1499
          %vm1538 = vcmp.eq.s32.totalorder %v1267, %v1500
          %vm1539 = vcmp.eq.s32.totalorder %v1268, %v1499
          %vm1540 = vcmp.eq.s32.totalorder %v1268, %v1500
          %vm1541 = vcmp.eq.s32.totalorder %v1269, %v1499
          %vm1542 = vcmp.eq.s32.totalorder %v1269, %v1500
          %vm1543 = vcmp.eq.s32.totalorder %v1270, %v1499
          %vm1544 = vcmp.eq.s32.totalorder %v1270, %v1500
          %vm1545 = vcmp.eq.s32.totalorder %v1271, %v1499
          %vm1546 = vcmp.eq.s32.totalorder %v1271, %v1500
          %vm1547 = vcmp.eq.s32.totalorder %v1272, %v1499
          %vm1548 = vcmp.eq.s32.totalorder %v1272, %v1500
          %vm1549 = vcmp.eq.s32.totalorder %v1273, %v1499
          %vm1550 = vcmp.eq.s32.totalorder %v1273, %v1500
          %vm1551 = vcmp.eq.s32.totalorder %v1274, %v1499
          %vm1552 = vcmp.eq.s32.totalorder %v1274, %v1500
          %vm1553 = vcmp.eq.s32.totalorder %v1275, %v1499
          %vm1554 = vcmp.eq.s32.totalorder %v1275, %v1500
          %vm1555 = vcmp.eq.s32.totalorder %v1276, %v1499
          %vm1556 = vcmp.eq.s32.totalorder %v1276, %v1500
          %vm1557 = vcmp.eq.s32.totalorder %v1277, %v1499
          %vm1558 = vcmp.eq.s32.totalorder %v1277, %v1500
          %vm1559 = vcmp.eq.s32.totalorder %v1278, %v1499
          %vm1560 = vcmp.eq.s32.totalorder %v1278, %v1500
          %vm1561 = vcmp.eq.s32.totalorder %v1279, %v1499
          %vm1562 = vcmp.eq.s32.totalorder %v1279, %v1500
          %vm1563 = vcmp.eq.s32.totalorder %v1280, %v1499
          %vm1564 = vcmp.eq.s32.totalorder %v1280, %v1500
          %v1565 = vperm.slane %v1485, 1
          %v1566 = vperm.slane %v1486, 1
          %v1567 = vsel %vm1501, %v1565, 0.0
          %v1568 = vsel %vm1502, %v1566, 0.0
          %v1569 = vsel %vm1503, %v1565, 0.0
          %v1570 = vsel %vm1504, %v1566, 0.0
          %v1571 = vsel %vm1505, %v1565, 0.0
          %v1572 = vsel %vm1506, %v1566, 0.0
          %v1573 = vsel %vm1507, %v1565, 0.0
          %v1574 = vsel %vm1508, %v1566, 0.0
          %v1575 = vsel %vm1509, %v1565, 0.0
          %v1576 = vsel %vm1510, %v1566, 0.0
          %v1577 = vsel %vm1511, %v1565, 0.0
          %v1578 = vsel %vm1512, %v1566, 0.0
          %v1579 = vsel %vm1513, %v1565, 0.0
          %v1580 = vsel %vm1514, %v1566, 0.0
          %v1581 = vsel %vm1515, %v1565, 0.0
          %v1582 = vsel %vm1516, %v1566, 0.0
          %v1583 = vsel %vm1517, %v1565, 0.0
          %v1584 = vsel %vm1518, %v1566, 0.0
          %v1585 = vsel %vm1519, %v1565, 0.0
          %v1586 = vsel %vm1520, %v1566, 0.0
          %v1587 = vsel %vm1521, %v1565, 0.0
          %v1588 = vsel %vm1522, %v1566, 0.0
          %v1589 = vsel %vm1523, %v1565, 0.0
          %v1590 = vsel %vm1524, %v1566, 0.0
          %v1591 = vsel %vm1525, %v1565, 0.0
          %v1592 = vsel %vm1526, %v1566, 0.0
          %v1593 = vsel %vm1527, %v1565, 0.0
          %v1594 = vsel %vm1528, %v1566, 0.0
          %v1595 = vsel %vm1529, %v1565, 0.0
          %v1596 = vsel %vm1530, %v1566, 0.0
          %v1597 = vsel %vm1531, %v1565, 0.0
          %v1598 = vsel %vm1532, %v1566, 0.0
          %v1599 = vsel %vm1533, %v1565, 0.0
          %v1600 = vsel %vm1534, %v1566, 0.0
          %v1601 = vsel %vm1535, %v1565, 0.0
          %v1602 = vsel %vm1536, %v1566, 0.0
          %v1603 = vsel %vm1537, %v1565, 0.0
          %v1604 = vsel %vm1538, %v1566, 0.0
          %v1605 = vsel %vm1539, %v1565, 0.0
          %v1606 = vsel %vm1540, %v1566, 0.0
          %v1607 = vsel %vm1541, %v1565, 0.0
          %v1608 = vsel %vm1542, %v1566, 0.0
          %v1609 = vsel %vm1543, %v1565, 0.0
          %v1610 = vsel %vm1544, %v1566, 0.0
          %v1611 = vsel %vm1545, %v1565, 0.0
          %v1612 = vsel %vm1546, %v1566, 0.0
          %v1613 = vsel %vm1547, %v1565, 0.0
          %v1614 = vsel %vm1548, %v1566, 0.0
          %v1615 = vsel %vm1549, %v1565, 0.0
          %v1616 = vsel %vm1550, %v1566, 0.0
          %v1617 = vsel %vm1551, %v1565, 0.0
          %v1618 = vsel %vm1552, %v1566, 0.0
          %v1619 = vsel %vm1553, %v1565, 0.0
          %v1620 = vsel %vm1554, %v1566, 0.0
          %v1621 = vsel %vm1555, %v1565, 0.0
          %v1622 = vsel %vm1556, %v1566, 0.0
          %v1623 = vsel %vm1557, %v1565, 0.0
          %v1624 = vsel %vm1558, %v1566, 0.0
          %v1625 = vsel %vm1559, %v1565, 0.0
          %v1626 = vsel %vm1560, %v1566, 0.0
          %v1627 = vsel %vm1561, %v1565, 0.0
          %v1628 = vsel %vm1562, %v1566, 0.0
          %v1629 = vsel %vm1563, %v1565, 0.0
          %v1630 = vsel %vm1564, %v1566, 0.0
          %v1631 = vadd.f32 %v1409, %v1567
          %v1632 = vadd.f32 %v1410, %v1568
          %v1633 = vadd.f32 %v1411, %v1569
          %v1634 = vadd.f32 %v1412, %v1570
          %v1635 = vadd.f32 %v1413, %v1571
          %v1636 = vadd.f32 %v1414, %v1572
          %v1637 = vadd.f32 %v1415, %v1573
          %v1638 = vadd.f32 %v1416, %v1574
          %v1639 = vadd.f32 %v1417, %v1575
          %v1640 = vadd.f32 %v1418, %v1576
          %v1641 = vadd.f32 %v1419, %v1577
          %v1642 = vadd.f32 %v1420, %v1578
          %v1643 = vadd.f32 %v1421, %v1579
          %v1644 = vadd.f32 %v1422, %v1580
          %v1645 = vadd.f32 %v1423, %v1581
          %v1646 = vadd.f32 %v1424, %v1582
          %v1647 = vadd.f32 %v1425, %v1583
          %v1648 = vadd.f32 %v1426, %v1584
          %v1649 = vadd.f32 %v1427, %v1585
          %v1650 = vadd.f32 %v1428, %v1586
          %v1651 = vadd.f32 %v1429, %v1587
          %v1652 = vadd.f32 %v1430, %v1588
          %v1653 = vadd.f32 %v1431, %v1589
          %v1654 = vadd.f32 %v1432, %v1590
          %v1655 = vadd.f32 %v1433, %v1591
          %v1656 = vadd.f32 %v1434, %v1592
          %v1657 = vadd.f32 %v1435, %v1593
          %v1658 = vadd.f32 %v1436, %v1594
          %v1659 = vadd.f32 %v1437, %v1595
          %v1660 = vadd.f32 %v1438, %v1596
          %v1661 = vadd.f32 %v1439, %v1597
          %v1662 = vadd.f32 %v1440, %v1598
          %v1663 = vadd.f32 %v1441, %v1599
          %v1664 = vadd.f32 %v1442, %v1600
          %v1665 = vadd.f32 %v1443, %v1601
          %v1666 = vadd.f32 %v1444, %v1602
          %v1667 = vadd.f32 %v1445, %v1603
          %v1668 = vadd.f32 %v1446, %v1604
          %v1669 = vadd.f32 %v1447, %v1605
          %v1670 = vadd.f32 %v1448, %v1606
          %v1671 = vadd.f32 %v1449, %v1607
          %v1672 = vadd.f32 %v1450, %v1608
          %v1673 = vadd.f32 %v1451, %v1609
          %v1674 = vadd.f32 %v1452, %v1610
          %v1675 = vadd.f32 %v1453, %v1611
          %v1676 = vadd.f32 %v1454, %v1612
          %v1677 = vadd.f32 %v1455, %v1613
          %v1678 = vadd.f32 %v1456, %v1614
          %v1679 = vadd.f32 %v1457, %v1615
          %v1680 = vadd.f32 %v1458, %v1616
          %v1681 = vadd.f32 %v1459, %v1617
          %v1682 = vadd.f32 %v1460, %v1618
          %v1683 = vadd.f32 %v1461, %v1619
          %v1684 = vadd.f32 %v1462, %v1620
          %v1685 = vadd.f32 %v1463, %v1621
          %v1686 = vadd.f32 %v1464, %v1622
          %v1687 = vadd.f32 %v1465, %v1623
          %v1688 = vadd.f32 %v1466, %v1624
          %v1689 = vadd.f32 %v1467, %v1625
          %v1690 = vadd.f32 %v1468, %v1626
          %v1691 = vadd.f32 %v1469, %v1627
          %v1692 = vadd.f32 %v1470, %v1628
          %v1693 = vadd.f32 %v1471, %v1629
          %v1694 = vadd.f32 %v1472, %v1630
          %v1695 = vsel %vm1475, 1, 0
          %v1696 = vsel %vm1476, 1, 0
          %v1697 = vrot.slane %v1695, 1
          %v1698 = vrot.slane %v1696, 1
          %vm1699 = vcmp.ne.s32.totalorder %v1697, 0
          %vm1700 = vcmp.ne.s32.totalorder %v1698, 0
          %vm1701 = vmand %vm1307, %vm1699
          %vm1702 = vmand %vm1308, %vm1700
          %v1703 = vsel %vm1477, 1, 0
          %v1704 = vsel %vm1478, 1, 0
          %v1705 = vrot.slane %v1703, 1
          %v1706 = vrot.slane %v1704, 1
          %vm1707 = vcmp.ne.s32.totalorder %v1705, 0
          %vm1708 = vcmp.ne.s32.totalorder %v1706, 0
          %vm1709 = vmand %vm1701, %vm1707
          %vm1710 = vmand %vm1702, %vm1708
          %v1711 = vsel %vm1709, %v1299, 0.0
          %v1712 = vsel %vm1710, %v1300, 0.0
          %v1713 = vmul.u32 %v1492, 16
          %v1714 = vmul.u32 %v1494, 16
          %v1715 = vadd.s32 %v1713, %v1337
          %v1716 = vadd.s32 %v1714, %v1338
          %v1717 = vperm.slane %v1715, 2
          %v1718 = vperm.slane %v1716, 2
          %vm1719 = vcmp.eq.s32.totalorder %v1249, %v1717
          %vm1720 = vcmp.eq.s32.totalorder %v1249, %v1718
          %vm1721 = vcmp.eq.s32.totalorder %v1250, %v1717
          %vm1722 = vcmp.eq.s32.totalorder %v1250, %v1718
          %vm1723 = vcmp.eq.s32.totalorder %v1251, %v1717
          %vm1724 = vcmp.eq.s32.totalorder %v1251, %v1718
          %vm1725 = vcmp.eq.s32.totalorder %v1252, %v1717
          %vm1726 = vcmp.eq.s32.totalorder %v1252, %v1718
          %vm1727 = vcmp.eq.s32.totalorder %v1253, %v1717
          %vm1728 = vcmp.eq.s32.totalorder %v1253, %v1718
          %vm1729 = vcmp.eq.s32.totalorder %v1254, %v1717
          %vm1730 = vcmp.eq.s32.totalorder %v1254, %v1718
          %vm1731 = vcmp.eq.s32.totalorder %v1255, %v1717
          %vm1732 = vcmp.eq.s32.totalorder %v1255, %v1718
          %vm1733 = vcmp.eq.s32.totalorder %v1256, %v1717
          %vm1734 = vcmp.eq.s32.totalorder %v1256, %v1718
          %vm1735 = vcmp.eq.s32.totalorder %v1257, %v1717
          %vm1736 = vcmp.eq.s32.totalorder %v1257, %v1718
          %vm1737 = vcmp.eq.s32.totalorder %v1258, %v1717
          %vm1738 = vcmp.eq.s32.totalorder %v1258, %v1718
          %vm1739 = vcmp.eq.s32.totalorder %v1259, %v1717
          %vm1740 = vcmp.eq.s32.totalorder %v1259, %v1718
          %vm1741 = vcmp.eq.s32.totalorder %v1260, %v1717
          %vm1742 = vcmp.eq.s32.totalorder %v1260, %v1718
          %vm1743 = vcmp.eq.s32.totalorder %v1261, %v1717
          %vm1744 = vcmp.eq.s32.totalorder %v1261, %v1718
          %vm1745 = vcmp.eq.s32.totalorder %v1262, %v1717
          %vm1746 = vcmp.eq.s32.totalorder %v1262, %v1718
          %vm1747 = vcmp.eq.s32.totalorder %v1263, %v1717
          %vm1748 = vcmp.eq.s32.totalorder %v1263, %v1718
          %vm1749 = vcmp.eq.s32.totalorder %v1264, %v1717
          %vm1750 = vcmp.eq.s32.totalorder %v1264, %v1718
          %vm1751 = vcmp.eq.s32.totalorder %v1265, %v1717
          %vm1752 = vcmp.eq.s32.totalorder %v1265, %v1718
          %vm1753 = vcmp.eq.s32.totalorder %v1266, %v1717
          %vm1754 = vcmp.eq.s32.totalorder %v1266, %v1718
          %vm1755 = vcmp.eq.s32.totalorder %v1267, %v1717
          %vm1756 = vcmp.eq.s32.totalorder %v1267, %v1718
          %vm1757 = vcmp.eq.s32.totalorder %v1268, %v1717
          %vm1758 = vcmp.eq.s32.totalorder %v1268, %v1718
          %vm1759 = vcmp.eq.s32.totalorder %v1269, %v1717
          %vm1760 = vcmp.eq.s32.totalorder %v1269, %v1718
          %vm1761 = vcmp.eq.s32.totalorder %v1270, %v1717
          %vm1762 = vcmp.eq.s32.totalorder %v1270, %v1718
          %vm1763 = vcmp.eq.s32.totalorder %v1271, %v1717
          %vm1764 = vcmp.eq.s32.totalorder %v1271, %v1718
          %vm1765 = vcmp.eq.s32.totalorder %v1272, %v1717
          %vm1766 = vcmp.eq.s32.totalorder %v1272, %v1718
          %vm1767 = vcmp.eq.s32.totalorder %v1273, %v1717
          %vm1768 = vcmp.eq.s32.totalorder %v1273, %v1718
          %vm1769 = vcmp.eq.s32.totalorder %v1274, %v1717
          %vm1770 = vcmp.eq.s32.totalorder %v1274, %v1718
          %vm1771 = vcmp.eq.s32.totalorder %v1275, %v1717
          %vm1772 = vcmp.eq.s32.totalorder %v1275, %v1718
          %vm1773 = vcmp.eq.s32.totalorder %v1276, %v1717
          %vm1774 = vcmp.eq.s32.totalorder %v1276, %v1718
          %vm1775 = vcmp.eq.s32.totalorder %v1277, %v1717
          %vm1776 = vcmp.eq.s32.totalorder %v1277, %v1718
          %vm1777 = vcmp.eq.s32.totalorder %v1278, %v1717
          %vm1778 = vcmp.eq.s32.totalorder %v1278, %v1718
          %vm1779 = vcmp.eq.s32.totalorder %v1279, %v1717
          %vm1780 = vcmp.eq.s32.totalorder %v1279, %v1718
          %vm1781 = vcmp.eq.s32.totalorder %v1280, %v1717
          %vm1782 = vcmp.eq.s32.totalorder %v1280, %v1718
          %v1783 = vperm.slane %v1711, 1
          %v1784 = vperm.slane %v1712, 1
          %v1785 = vsel %vm1719, %v1783, 0.0
          %v1786 = vsel %vm1720, %v1784, 0.0
          %v1787 = vsel %vm1721, %v1783, 0.0
          %v1788 = vsel %vm1722, %v1784, 0.0
          %v1789 = vsel %vm1723, %v1783, 0.0
          %v1790 = vsel %vm1724, %v1784, 0.0
          %v1791 = vsel %vm1725, %v1783, 0.0
          %v1792 = vsel %vm1726, %v1784, 0.0
          %v1793 = vsel %vm1727, %v1783, 0.0
          %v1794 = vsel %vm1728, %v1784, 0.0
          %v1795 = vsel %vm1729, %v1783, 0.0
          %v1796 = vsel %vm1730, %v1784, 0.0
          %v1797 = vsel %vm1731, %v1783, 0.0
          %v1798 = vsel %vm1732, %v1784, 0.0
          %v1799 = vsel %vm1733, %v1783, 0.0
          %v1800 = vsel %vm1734, %v1784, 0.0
          %v1801 = vsel %vm1735, %v1783, 0.0
          %v1802 = vsel %vm1736, %v1784, 0.0
          %v1803 = vsel %vm1737, %v1783, 0.0
          %v1804 = vsel %vm1738, %v1784, 0.0
          %v1805 = vsel %vm1739, %v1783, 0.0
          %v1806 = vsel %vm1740, %v1784, 0.0
          %v1807 = vsel %vm1741, %v1783, 0.0
          %v1808 = vsel %vm1742, %v1784, 0.0
          %v1809 = vsel %vm1743, %v1783, 0.0
          %v1810 = vsel %vm1744, %v1784, 0.0
          %v1811 = vsel %vm1745, %v1783, 0.0
          %v1812 = vsel %vm1746, %v1784, 0.0
          %v1813 = vsel %vm1747, %v1783, 0.0
          %v1814 = vsel %vm1748, %v1784, 0.0
          %v1815 = vsel %vm1749, %v1783, 0.0
          %v1816 = vsel %vm1750, %v1784, 0.0
          %v1817 = vsel %vm1751, %v1783, 0.0
          %v1818 = vsel %vm1752, %v1784, 0.0
          %v1819 = vsel %vm1753, %v1783, 0.0
          %v1820 = vsel %vm1754, %v1784, 0.0
          %v1821 = vsel %vm1755, %v1783, 0.0
          %v1822 = vsel %vm1756, %v1784, 0.0
          %v1823 = vsel %vm1757, %v1783, 0.0
          %v1824 = vsel %vm1758, %v1784, 0.0
          %v1825 = vsel %vm1759, %v1783, 0.0
          %v1826 = vsel %vm1760, %v1784, 0.0
          %v1827 = vsel %vm1761, %v1783, 0.0
          %v1828 = vsel %vm1762, %v1784, 0.0
          %v1829 = vsel %vm1763, %v1783, 0.0
          %v1830 = vsel %vm1764, %v1784, 0.0
          %v1831 = vsel %vm1765, %v1783, 0.0
          %v1832 = vsel %vm1766, %v1784, 0.0
          %v1833 = vsel %vm1767, %v1783, 0.0
          %v1834 = vsel %vm1768, %v1784, 0.0
          %v1835 = vsel %vm1769, %v1783, 0.0
          %v1836 = vsel %vm1770, %v1784, 0.0
          %v1837 = vsel %vm1771, %v1783, 0.0
          %v1838 = vsel %vm1772, %v1784, 0.0
          %v1839 = vsel %vm1773, %v1783, 0.0
          %v1840 = vsel %vm1774, %v1784, 0.0
          %v1841 = vsel %vm1775, %v1783, 0.0
          %v1842 = vsel %vm1776, %v1784, 0.0
          %v1843 = vsel %vm1777, %v1783, 0.0
          %v1844 = vsel %vm1778, %v1784, 0.0
          %v1845 = vsel %vm1779, %v1783, 0.0
          %v1846 = vsel %vm1780, %v1784, 0.0
          %v1847 = vsel %vm1781, %v1783, 0.0
          %v1848 = vsel %vm1782, %v1784, 0.0
          %v1849 = vadd.f32 %v1631, %v1785
          %v1850 = vadd.f32 %v1632, %v1786
          %v1851 = vadd.f32 %v1633, %v1787
          %v1852 = vadd.f32 %v1634, %v1788
          %v1853 = vadd.f32 %v1635, %v1789
          %v1854 = vadd.f32 %v1636, %v1790
          %v1855 = vadd.f32 %v1637, %v1791
          %v1856 = vadd.f32 %v1638, %v1792
          %v1857 = vadd.f32 %v1639, %v1793
          %v1858 = vadd.f32 %v1640, %v1794
          %v1859 = vadd.f32 %v1641, %v1795
          %v1860 = vadd.f32 %v1642, %v1796
          %v1861 = vadd.f32 %v1643, %v1797
          %v1862 = vadd.f32 %v1644, %v1798
          %v1863 = vadd.f32 %v1645, %v1799
          %v1864 = vadd.f32 %v1646, %v1800
          %v1865 = vadd.f32 %v1647, %v1801
          %v1866 = vadd.f32 %v1648, %v1802
          %v1867 = vadd.f32 %v1649, %v1803
          %v1868 = vadd.f32 %v1650, %v1804
          %v1869 = vadd.f32 %v1651, %v1805
          %v1870 = vadd.f32 %v1652, %v1806
          %v1871 = vadd.f32 %v1653, %v1807
          %v1872 = vadd.f32 %v1654, %v1808
          %v1873 = vadd.f32 %v1655, %v1809
          %v1874 = vadd.f32 %v1656, %v1810
          %v1875 = vadd.f32 %v1657, %v1811
          %v1876 = vadd.f32 %v1658, %v1812
          %v1877 = vadd.f32 %v1659, %v1813
          %v1878 = vadd.f32 %v1660, %v1814
          %v1879 = vadd.f32 %v1661, %v1815
          %v1880 = vadd.f32 %v1662, %v1816
          %v1881 = vadd.f32 %v1663, %v1817
          %v1882 = vadd.f32 %v1664, %v1818
          %v1883 = vadd.f32 %v1665, %v1819
          %v1884 = vadd.f32 %v1666, %v1820
          %v1885 = vadd.f32 %v1667, %v1821
          %v1886 = vadd.f32 %v1668, %v1822
          %v1887 = vadd.f32 %v1669, %v1823
          %v1888 = vadd.f32 %v1670, %v1824
          %v1889 = vadd.f32 %v1671, %v1825
          %v1890 = vadd.f32 %v1672, %v1826
          %v1891 = vadd.f32 %v1673, %v1827
          %v1892 = vadd.f32 %v1674, %v1828
          %v1893 = vadd.f32 %v1675, %v1829
          %v1894 = vadd.f32 %v1676, %v1830
          %v1895 = vadd.f32 %v1677, %v1831
          %v1896 = vadd.f32 %v1678, %v1832
          %v1897 = vadd.f32 %v1679, %v1833
          %v1898 = vadd.f32 %v1680, %v1834
          %v1899 = vadd.f32 %v1681, %v1835
          %v1900 = vadd.f32 %v1682, %v1836
          %v1901 = vadd.f32 %v1683, %v1837
          %v1902 = vadd.f32 %v1684, %v1838
          %v1903 = vadd.f32 %v1685, %v1839
          %v1904 = vadd.f32 %v1686, %v1840
          %v1905 = vadd.f32 %v1687, %v1841
          %v1906 = vadd.f32 %v1688, %v1842
          %v1907 = vadd.f32 %v1689, %v1843
          %v1908 = vadd.f32 %v1690, %v1844
          %v1909 = vadd.f32 %v1691, %v1845
          %v1910 = vadd.f32 %v1692, %v1846
          %v1911 = vadd.f32 %v1693, %v1847
          %v1912 = vadd.f32 %v1694, %v1848
          %vm1913 = vmand %vm1479, %vm1699
          %vm1914 = vmand %vm1480, %vm1700
          %vm1915 = vmand %vm1913, %vm1707
          %vm1916 = vmand %vm1914, %vm1708
          %v1917 = vsel %vm1915, %v1301, 0.0
          %v1918 = vsel %vm1916, %v1302, 0.0
          %v1919 = vadd.s32 %v1713, %v1495
          %v1920 = vadd.s32 %v1714, %v1496
          %v1921 = vperm.slane %v1919, 2
          %v1922 = vperm.slane %v1920, 2
          %vm1923 = vcmp.eq.s32.totalorder %v1249, %v1921
          %vm1924 = vcmp.eq.s32.totalorder %v1249, %v1922
          %vm1925 = vcmp.eq.s32.totalorder %v1250, %v1921
          %vm1926 = vcmp.eq.s32.totalorder %v1250, %v1922
          %vm1927 = vcmp.eq.s32.totalorder %v1251, %v1921
          %vm1928 = vcmp.eq.s32.totalorder %v1251, %v1922
          %vm1929 = vcmp.eq.s32.totalorder %v1252, %v1921
          %vm1930 = vcmp.eq.s32.totalorder %v1252, %v1922
          %vm1931 = vcmp.eq.s32.totalorder %v1253, %v1921
          %vm1932 = vcmp.eq.s32.totalorder %v1253, %v1922
          %vm1933 = vcmp.eq.s32.totalorder %v1254, %v1921
          %vm1934 = vcmp.eq.s32.totalorder %v1254, %v1922
          %vm1935 = vcmp.eq.s32.totalorder %v1255, %v1921
          %vm1936 = vcmp.eq.s32.totalorder %v1255, %v1922
          %vm1937 = vcmp.eq.s32.totalorder %v1256, %v1921
          %vm1938 = vcmp.eq.s32.totalorder %v1256, %v1922
          %vm1939 = vcmp.eq.s32.totalorder %v1257, %v1921
          %vm1940 = vcmp.eq.s32.totalorder %v1257, %v1922
          %vm1941 = vcmp.eq.s32.totalorder %v1258, %v1921
          %vm1942 = vcmp.eq.s32.totalorder %v1258, %v1922
          %vm1943 = vcmp.eq.s32.totalorder %v1259, %v1921
          %vm1944 = vcmp.eq.s32.totalorder %v1259, %v1922
          %vm1945 = vcmp.eq.s32.totalorder %v1260, %v1921
          %vm1946 = vcmp.eq.s32.totalorder %v1260, %v1922
          %vm1947 = vcmp.eq.s32.totalorder %v1261, %v1921
          %vm1948 = vcmp.eq.s32.totalorder %v1261, %v1922
          %vm1949 = vcmp.eq.s32.totalorder %v1262, %v1921
          %vm1950 = vcmp.eq.s32.totalorder %v1262, %v1922
          %vm1951 = vcmp.eq.s32.totalorder %v1263, %v1921
          %vm1952 = vcmp.eq.s32.totalorder %v1263, %v1922
          %vm1953 = vcmp.eq.s32.totalorder %v1264, %v1921
          %vm1954 = vcmp.eq.s32.totalorder %v1264, %v1922
          %vm1955 = vcmp.eq.s32.totalorder %v1265, %v1921
          %vm1956 = vcmp.eq.s32.totalorder %v1265, %v1922
          %vm1957 = vcmp.eq.s32.totalorder %v1266, %v1921
          %vm1958 = vcmp.eq.s32.totalorder %v1266, %v1922
          %vm1959 = vcmp.eq.s32.totalorder %v1267, %v1921
          %vm1960 = vcmp.eq.s32.totalorder %v1267, %v1922
          %vm1961 = vcmp.eq.s32.totalorder %v1268, %v1921
          %vm1962 = vcmp.eq.s32.totalorder %v1268, %v1922
          %vm1963 = vcmp.eq.s32.totalorder %v1269, %v1921
          %vm1964 = vcmp.eq.s32.totalorder %v1269, %v1922
          %vm1965 = vcmp.eq.s32.totalorder %v1270, %v1921
          %vm1966 = vcmp.eq.s32.totalorder %v1270, %v1922
          %vm1967 = vcmp.eq.s32.totalorder %v1271, %v1921
          %vm1968 = vcmp.eq.s32.totalorder %v1271, %v1922
          %vm1969 = vcmp.eq.s32.totalorder %v1272, %v1921
          %vm1970 = vcmp.eq.s32.totalorder %v1272, %v1922
          %vm1971 = vcmp.eq.s32.totalorder %v1273, %v1921
          %vm1972 = vcmp.eq.s32.totalorder %v1273, %v1922
          %vm1973 = vcmp.eq.s32.totalorder %v1274, %v1921
          %vm1974 = vcmp.eq.s32.totalorder %v1274, %v1922
          %vm1975 = vcmp.eq.s32.totalorder %v1275, %v1921
          %vm1976 = vcmp.eq.s32.totalorder %v1275, %v1922
          %vm1977 = vcmp.eq.s32.totalorder %v1276, %v1921
          %vm1978 = vcmp.eq.s32.totalorder %v1276, %v1922
          %vm1979 = vcmp.eq.s32.totalorder %v1277, %v1921
          %vm1980 = vcmp.eq.s32.totalorder %v1277, %v1922
          %vm1981 = vcmp.eq.s32.totalorder %v1278, %v1921
          %vm1982 = vcmp.eq.s32.totalorder %v1278, %v1922
          %vm1983 = vcmp.eq.s32.totalorder %v1279, %v1921
          %vm1984 = vcmp.eq.s32.totalorder %v1279, %v1922
          %vm1985 = vcmp.eq.s32.totalorder %v1280, %v1921
          %vm1986 = vcmp.eq.s32.totalorder %v1280, %v1922
          %v1987 = vperm.slane %v1917, 1
          %v1988 = vperm.slane %v1918, 1
          %v1989 = vsel %vm1923, %v1987, 0.0
          %v1990 = vsel %vm1924, %v1988, 0.0
          %v1991 = vsel %vm1925, %v1987, 0.0
          %v1992 = vsel %vm1926, %v1988, 0.0
          %v1993 = vsel %vm1927, %v1987, 0.0
          %v1994 = vsel %vm1928, %v1988, 0.0
          %v1995 = vsel %vm1929, %v1987, 0.0
          %v1996 = vsel %vm1930, %v1988, 0.0
          %v1997 = vsel %vm1931, %v1987, 0.0
          %v1998 = vsel %vm1932, %v1988, 0.0
          %v1999 = vsel %vm1933, %v1987, 0.0
          %v2000 = vsel %vm1934, %v1988, 0.0
          %v2001 = vsel %vm1935, %v1987, 0.0
          %v2002 = vsel %vm1936, %v1988, 0.0
          %v2003 = vsel %vm1937, %v1987, 0.0
          %v2004 = vsel %vm1938, %v1988, 0.0
          %v2005 = vsel %vm1939, %v1987, 0.0
          %v2006 = vsel %vm1940, %v1988, 0.0
          %v2007 = vsel %vm1941, %v1987, 0.0
          %v2008 = vsel %vm1942, %v1988, 0.0
          %v2009 = vsel %vm1943, %v1987, 0.0
          %v2010 = vsel %vm1944, %v1988, 0.0
          %v2011 = vsel %vm1945, %v1987, 0.0
          %v2012 = vsel %vm1946, %v1988, 0.0
          %v2013 = vsel %vm1947, %v1987, 0.0
          %v2014 = vsel %vm1948, %v1988, 0.0
          %v2015 = vsel %vm1949, %v1987, 0.0
          %v2016 = vsel %vm1950, %v1988, 0.0
          %v2017 = vsel %vm1951, %v1987, 0.0
          %v2018 = vsel %vm1952, %v1988, 0.0
          %v2019 = vsel %vm1953, %v1987, 0.0
          %v2020 = vsel %vm1954, %v1988, 0.0
          %v2021 = vsel %vm1955, %v1987, 0.0
          %v2022 = vsel %vm1956, %v1988, 0.0
          %v2023 = vsel %vm1957, %v1987, 0.0
          %v2024 = vsel %vm1958, %v1988, 0.0
          %v2025 = vsel %vm1959, %v1987, 0.0
          %v2026 = vsel %vm1960, %v1988, 0.0
          %v2027 = vsel %vm1961, %v1987, 0.0
          %v2028 = vsel %vm1962, %v1988, 0.0
          %v2029 = vsel %vm1963, %v1987, 0.0
          %v2030 = vsel %vm1964, %v1988, 0.0
          %v2031 = vsel %vm1965, %v1987, 0.0
          %v2032 = vsel %vm1966, %v1988, 0.0
          %v2033 = vsel %vm1967, %v1987, 0.0
          %v2034 = vsel %vm1968, %v1988, 0.0
          %v2035 = vsel %vm1969, %v1987, 0.0
          %v2036 = vsel %vm1970, %v1988, 0.0
          %v2037 = vsel %vm1971, %v1987, 0.0
          %v2038 = vsel %vm1972, %v1988, 0.0
          %v2039 = vsel %vm1973, %v1987, 0.0
          %v2040 = vsel %vm1974, %v1988, 0.0
          %v2041 = vsel %vm1975, %v1987, 0.0
          %v2042 = vsel %vm1976, %v1988, 0.0
          %v2043 = vsel %vm1977, %v1987, 0.0
          %v2044 = vsel %vm1978, %v1988, 0.0
          %v2045 = vsel %vm1979, %v1987, 0.0
          %v2046 = vsel %vm1980, %v1988, 0.0
          %v2047 = vsel %vm1981, %v1987, 0.0
          %v2048 = vsel %vm1982, %v1988, 0.0
          %v2049 = vsel %vm1983, %v1987, 0.0
          %v2050 = vsel %vm1984, %v1988, 0.0
          %v2051 = vsel %vm1985, %v1987, 0.0
          %v2052 = vsel %vm1986, %v1988, 0.0
          %v2053 = vadd.f32 %v1849, %v1989
          %v2054 = vadd.f32 %v1850, %v1990
          %v2055 = vadd.f32 %v1851, %v1991
          %v2056 = vadd.f32 %v1852, %v1992
          %v2057 = vadd.f32 %v1853, %v1993
          %v2058 = vadd.f32 %v1854, %v1994
          %v2059 = vadd.f32 %v1855, %v1995
          %v2060 = vadd.f32 %v1856, %v1996
          %v2061 = vadd.f32 %v1857, %v1997
          %v2062 = vadd.f32 %v1858, %v1998
          %v2063 = vadd.f32 %v1859, %v1999
          %v2064 = vadd.f32 %v1860, %v2000
          %v2065 = vadd.f32 %v1861, %v2001
          %v2066 = vadd.f32 %v1862, %v2002
          %v2067 = vadd.f32 %v1863, %v2003
          %v2068 = vadd.f32 %v1864, %v2004
          %v2069 = vadd.f32 %v1865, %v2005
          %v2070 = vadd.f32 %v1866, %v2006
          %v2071 = vadd.f32 %v1867, %v2007
          %v2072 = vadd.f32 %v1868, %v2008
          %v2073 = vadd.f32 %v1869, %v2009
          %v2074 = vadd.f32 %v1870, %v2010
          %v2075 = vadd.f32 %v1871, %v2011
          %v2076 = vadd.f32 %v1872, %v2012
          %v2077 = vadd.f32 %v1873, %v2013
          %v2078 = vadd.f32 %v1874, %v2014
          %v2079 = vadd.f32 %v1875, %v2015
          %v2080 = vadd.f32 %v1876, %v2016
          %v2081 = vadd.f32 %v1877, %v2017
          %v2082 = vadd.f32 %v1878, %v2018
          %v2083 = vadd.f32 %v1879, %v2019
          %v2084 = vadd.f32 %v1880, %v2020
          %v2085 = vadd.f32 %v1881, %v2021
          %v2086 = vadd.f32 %v1882, %v2022
          %v2087 = vadd.f32 %v1883, %v2023
          %v2088 = vadd.f32 %v1884, %v2024
          %v2089 = vadd.f32 %v1885, %v2025
          %v2090 = vadd.f32 %v1886, %v2026
          %v2091 = vadd.f32 %v1887, %v2027
          %v2092 = vadd.f32 %v1888, %v2028
          %v2093 = vadd.f32 %v1889, %v2029
          %v2094 = vadd.f32 %v1890, %v2030
          %v2095 = vadd.f32 %v1891, %v2031
          %v2096 = vadd.f32 %v1892, %v2032
          %v2097 = vadd.f32 %v1893, %v2033
          %v2098 = vadd.f32 %v1894, %v2034
          %v2099 = vadd.f32 %v1895, %v2035
          %v2100 = vadd.f32 %v1896, %v2036
          %v2101 = vadd.f32 %v1897, %v2037
          %v2102 = vadd.f32 %v1898, %v2038
          %v2103 = vadd.f32 %v1899, %v2039
          %v2104 = vadd.f32 %v1900, %v2040
          %v2105 = vadd.f32 %v1901, %v2041
          %v2106 = vadd.f32 %v1902, %v2042
          %v2107 = vadd.f32 %v1903, %v2043
          %v2108 = vadd.f32 %v1904, %v2044
          %v2109 = vadd.f32 %v1905, %v2045
          %v2110 = vadd.f32 %v1906, %v2046
          %v2111 = vadd.f32 %v1907, %v2047
          %v2112 = vadd.f32 %v1908, %v2048
          %v2113 = vadd.f32 %v1909, %v2049
          %v2114 = vadd.f32 %v1910, %v2050
          %v2115 = vadd.f32 %v1911, %v2051
          %v2116 = vadd.f32 %v1912, %v2052
          %v2117 = vpack.c.bf16 %v2055, %v2053
          %v2118 = vpack.c.bf16 %v2056, %v2054
          %v2119 = vpack.c.bf16 %v2059, %v2057
          %v2120 = vpack.c.bf16 %v2060, %v2058
          %v2121 = vpack.c.bf16 %v2063, %v2061
          %v2122 = vpack.c.bf16 %v2064, %v2062
          %v2123 = vpack.c.bf16 %v2067, %v2065
          %v2124 = vpack.c.bf16 %v2068, %v2066
          %v2125 = vpack.c.bf16 %v2071, %v2069
          %v2126 = vpack.c.bf16 %v2072, %v2070
          %v2127 = vpack.c.bf16 %v2075, %v2073
          %v2128 = vpack.c.bf16 %v2076, %v2074
          %v2129 = vpack.c.bf16 %v2079, %v2077
          %v2130 = vpack.c.bf16 %v2080, %v2078
          %v2131 = vpack.c.bf16 %v2083, %v2081
          %v2132 = vpack.c.bf16 %v2084, %v2082
          %v2133 = vpack.c.bf16 %v2087, %v2085
          %v2134 = vpack.c.bf16 %v2088, %v2086
          %v2135 = vpack.c.bf16 %v2091, %v2089
          %v2136 = vpack.c.bf16 %v2092, %v2090
          %v2137 = vpack.c.bf16 %v2095, %v2093
          %v2138 = vpack.c.bf16 %v2096, %v2094
          %v2139 = vpack.c.bf16 %v2099, %v2097
          %v2140 = vpack.c.bf16 %v2100, %v2098
          %v2141 = vpack.c.bf16 %v2103, %v2101
          %v2142 = vpack.c.bf16 %v2104, %v2102
          %v2143 = vpack.c.bf16 %v2107, %v2105
          %v2144 = vpack.c.bf16 %v2108, %v2106
          %v2145 = vpack.c.bf16 %v2111, %v2109
          %v2146 = vpack.c.bf16 %v2112, %v2110
          %v2147 = vpack.c.bf16 %v2115, %v2113
          %v2148 = vpack.c.bf16 %v2116, %v2114
          %2149 = vmatpush.bf16.msra.mxu0 %v2131
          %2150 = vmatpush.bf16.msra.mxu0 %v2129
          %2151 = vmatpush.bf16.msra.mxu0 %v2127
          %2152 = vmatpush.bf16.msra.mxu0 %v2125
          %2153 = vmatpush.bf16.msra.mxu0 %v2123
          %2154 = vmatpush.bf16.msra.mxu0 %v2121
          %2155 = vmatpush.bf16.msra.mxu0 %v2119
          %2156 = vmatpush.bf16.msra.mxu0 %v2117
          %2157 = vmatmul.bf16.gmra.mxu0 %v1246
          %v2158 = vpop.f32.mrf.mxu0
          %v2159 = vadd.f32 0.0, %v2158
          %v2160 = vpop.f32.mrf.mxu0
          %v2161 = vadd.f32 0.0, %v2160
          %2162 = vdwg.mxu0
          %2163 = vmatpush.bf16.msra.mxu0 %v2147
          %2164 = vmatpush.bf16.msra.mxu0 %v2145
          %2165 = vmatpush.bf16.msra.mxu0 %v2143
          %2166 = vmatpush.bf16.msra.mxu0 %v2141
          %2167 = vmatpush.bf16.msra.mxu0 %v2139
          %2168 = vmatpush.bf16.msra.mxu0 %v2137
          %2169 = vmatpush.bf16.msra.mxu0 %v2135
          %2170 = vmatpush.bf16.msra.mxu0 %v2133
          %2171 = vmatmul.bf16.gmra.mxu0 %v1247
          %v2172 = vpop.f32.mrf.mxu0
          %v2173 = vadd.f32 %v2159, %v2172
          %v2174 = vpop.f32.mrf.mxu0
          %v2175 = vadd.f32 %v2161, %v2174
          %2176 = vdwg.mxu0
          %2177 = vmatpush.bf16.msra.mxu0 %v2132
          %2178 = vmatpush.bf16.msra.mxu0 %v2130
          %2179 = vmatpush.bf16.msra.mxu0 %v2128
          %2180 = vmatpush.bf16.msra.mxu0 %v2126
          %2181 = vmatpush.bf16.msra.mxu0 %v2124
          %2182 = vmatpush.bf16.msra.mxu0 %v2122
          %2183 = vmatpush.bf16.msra.mxu0 %v2120
          %2184 = vmatpush.bf16.msra.mxu0 %v2118
          %2185 = vmatmul.bf16.gmra.mxu0 %v1246
          %v2186 = vpop.f32.mrf.mxu0
          %v2187 = vadd.f32 0.0, %v2186
          %v2188 = vpop.f32.mrf.mxu0
          %v2189 = vadd.f32 0.0, %v2188
          %2190 = vdwg.mxu0
          %2191 = vmatpush.bf16.msra.mxu0 %v2148
          %2192 = vmatpush.bf16.msra.mxu0 %v2146
          %2193 = vmatpush.bf16.msra.mxu0 %v2144
          %2194 = vmatpush.bf16.msra.mxu0 %v2142
          %2195 = vmatpush.bf16.msra.mxu0 %v2140
          %2196 = vmatpush.bf16.msra.mxu0 %v2138
          %2197 = vmatpush.bf16.msra.mxu0 %v2136
          %2198 = vmatpush.bf16.msra.mxu0 %v2134
          %2199 = vmatmul.bf16.gmra.mxu0 %v1247
          %v2200 = vpop.f32.mrf.mxu0
          %v2201 = vadd.f32 %v2187, %v2200
          %v2202 = vpop.f32.mrf.mxu0
          %v2203 = vadd.f32 %v2189, %v2202
          %2204 = vdwg.mxu0
          %2205 = vrot.lane.b32.xlu0 %v2173, 17
          %v2206 = vpop.permute.xlu0 %2205
          %2207 = vrot.lane.b32.xlu0 %v2175, 17
          %v2208 = vpop.permute.xlu0 %2207
          %2209 = vrot.lane.b32.xlu0 %v2201, 17
          %v2210 = vpop.permute.xlu0 %2209
          %2211 = vrot.lane.b32.xlu0 %v2203, 17
          %v2212 = vpop.permute.xlu0 %2211
          %v2213 = vsel %vm577, %v2206, %v2210
          %v2214 = vsel %vm577, %v2208, %v2212
          %v2215 = vsel %vm577, %v2210, %v2206
          %v2216 = vsel %vm577, %v2212, %v2208
          %v2217 = vmul.f32 %v2215, %v582
          %v2218 = vmul.f32 %v2213, %v583
          %v2219 = vmul.f32 %v2216, %v582
          %v2220 = vmul.f32 %v2214, %v583
          %v2221 = vpack.c.bf16 %v2218, %v2217
          %v2222 = vpack.c.bf16 %v2220, %v2219
          %2223 = vrot.lane.b32.xlu0 %v2173, 16
          %v2224 = vpop.permute.xlu0 %2223
          %2225 = vrot.lane.b32.xlu0 %v2175, 16
          %v2226 = vpop.permute.xlu0 %2225
          %2227 = vrot.lane.b32.xlu0 %v2201, 16
          %v2228 = vpop.permute.xlu0 %2227
          %2229 = vrot.lane.b32.xlu0 %v2203, 16
          %v2230 = vpop.permute.xlu0 %2229
          %v2231 = vsel %vm598, %v2224, %v2228
          %v2232 = vsel %vm598, %v2226, %v2230
          %v2233 = vsel %vm598, %v2228, %v2224
          %v2234 = vsel %vm598, %v2230, %v2226
          %v2235 = vmul.f32 %v2233, %v603
          %v2236 = vmul.f32 %v2231, %v604
          %v2237 = vmul.f32 %v2234, %v603
          %v2238 = vmul.f32 %v2232, %v604
          %v2239 = vpack.c.bf16 %v2236, %v2235
          %v2240 = vpack.c.bf16 %v2238, %v2237
          %2241 = vrot.lane.b32.xlu0 %v2173, 15
          %v2242 = vpop.permute.xlu0 %2241
          %2243 = vrot.lane.b32.xlu0 %v2175, 15
          %v2244 = vpop.permute.xlu0 %2243
          %2245 = vrot.lane.b32.xlu0 %v2201, 15
          %v2246 = vpop.permute.xlu0 %2245
          %2247 = vrot.lane.b32.xlu0 %v2203, 15
          %v2248 = vpop.permute.xlu0 %2247
          %v2249 = vsel %vm619, %v2242, %v2246
          %v2250 = vsel %vm619, %v2244, %v2248
          %v2251 = vsel %vm619, %v2246, %v2242
          %v2252 = vsel %vm619, %v2248, %v2244
          %v2253 = vmul.f32 %v2251, %v624
          %v2254 = vmul.f32 %v2249, %v625
          %v2255 = vmul.f32 %v2252, %v624
          %v2256 = vmul.f32 %v2250, %v625
          %v2257 = vpack.c.bf16 %v2254, %v2253
          %v2258 = vpack.c.bf16 %v2256, %v2255
          %2259 = vrot.lane.b32.xlu0 %v2173, 1
          %v2260 = vpop.permute.xlu0 %2259
          %2261 = vrot.lane.b32.xlu0 %v2175, 1
          %v2262 = vpop.permute.xlu0 %2261
          %2263 = vrot.lane.b32.xlu0 %v2201, 1
          %v2264 = vpop.permute.xlu0 %2263
          %2265 = vrot.lane.b32.xlu0 %v2203, 1
          %v2266 = vpop.permute.xlu0 %2265
          %v2267 = vsel %vm640, %v2260, %v2264
          %v2268 = vsel %vm640, %v2262, %v2266
          %v2269 = vsel %vm640, %v2264, %v2260
          %v2270 = vsel %vm640, %v2266, %v2262
          %v2271 = vmul.f32 %v2269, %v645
          %v2272 = vmul.f32 %v2267, %v646
          %v2273 = vmul.f32 %v2270, %v645
          %v2274 = vmul.f32 %v2268, %v646
          %v2275 = vpack.c.bf16 %v2272, %v2271
          %v2276 = vpack.c.bf16 %v2274, %v2273
          %v2277 = vmul.f32 %v2173, %v653
          %v2278 = vmul.f32 %v2201, %v654
          %v2279 = vmul.f32 %v2175, %v653
          %v2280 = vmul.f32 %v2203, %v654
          %v2281 = vpack.c.bf16 %v2278, %v2277
          %v2282 = vpack.c.bf16 %v2280, %v2279
          %2283 = vrot.lane.b32.xlu0 %v2173, 127
          %v2284 = vpop.permute.xlu0 %2283
          %2285 = vrot.lane.b32.xlu0 %v2175, 127
          %v2286 = vpop.permute.xlu0 %2285
          %2287 = vrot.lane.b32.xlu0 %v2201, 127
          %v2288 = vpop.permute.xlu0 %2287
          %2289 = vrot.lane.b32.xlu0 %v2203, 127
          %v2290 = vpop.permute.xlu0 %2289
          %v2291 = vsel %vm669, %v2284, %v2288
          %v2292 = vsel %vm669, %v2286, %v2290
          %v2293 = vsel %vm669, %v2288, %v2284
          %v2294 = vsel %vm669, %v2290, %v2286
          %v2295 = vmul.f32 %v2291, %v674
          %v2296 = vmul.f32 %v2293, %v675
          %v2297 = vmul.f32 %v2292, %v674
          %v2298 = vmul.f32 %v2294, %v675
          %v2299 = vpack.c.bf16 %v2296, %v2295
          %v2300 = vpack.c.bf16 %v2298, %v2297
          %2301 = vrot.lane.b32.xlu0 %v2173, 113
          %v2302 = vpop.permute.xlu0 %2301
          %2303 = vrot.lane.b32.xlu0 %v2175, 113
          %v2304 = vpop.permute.xlu0 %2303
          %2305 = vrot.lane.b32.xlu0 %v2201, 113
          %v2306 = vpop.permute.xlu0 %2305
          %2307 = vrot.lane.b32.xlu0 %v2203, 113
          %v2308 = vpop.permute.xlu0 %2307
          %v2309 = vsel %vm690, %v2302, %v2306
          %v2310 = vsel %vm690, %v2304, %v2308
          %v2311 = vsel %vm690, %v2306, %v2302
          %v2312 = vsel %vm690, %v2308, %v2304
          %v2313 = vmul.f32 %v2309, %v695
          %v2314 = vmul.f32 %v2311, %v696
          %v2315 = vmul.f32 %v2310, %v695
          %v2316 = vmul.f32 %v2312, %v696
          %v2317 = vpack.c.bf16 %v2314, %v2313
          %v2318 = vpack.c.bf16 %v2316, %v2315
          %2319 = vrot.lane.b32.xlu0 %v2173, 112
          %v2320 = vpop.permute.xlu0 %2319
          %2321 = vrot.lane.b32.xlu0 %v2175, 112
          %v2322 = vpop.permute.xlu0 %2321
          %2323 = vrot.lane.b32.xlu0 %v2201, 112
          %v2324 = vpop.permute.xlu0 %2323
          %2325 = vrot.lane.b32.xlu0 %v2203, 112
          %v2326 = vpop.permute.xlu0 %2325
          %v2327 = vsel %vm711, %v2320, %v2324
          %v2328 = vsel %vm711, %v2322, %v2326
          %v2329 = vsel %vm711, %v2324, %v2320
          %v2330 = vsel %vm711, %v2326, %v2322
          %v2331 = vmul.f32 %v2327, %v716
          %v2332 = vmul.f32 %v2329, %v717
          %v2333 = vmul.f32 %v2328, %v716
          %v2334 = vmul.f32 %v2330, %v717
          %v2335 = vpack.c.bf16 %v2332, %v2331
          %v2336 = vpack.c.bf16 %v2334, %v2333
          %2337 = vrot.lane.b32.xlu0 %v2173, 111
          %v2338 = vpop.permute.xlu0 %2337
          %2339 = vrot.lane.b32.xlu0 %v2175, 111
          %v2340 = vpop.permute.xlu0 %2339
          %2341 = vrot.lane.b32.xlu0 %v2201, 111
          %v2342 = vpop.permute.xlu0 %2341
          %2343 = vrot.lane.b32.xlu0 %v2203, 111
          %v2344 = vpop.permute.xlu0 %2343
          %v2345 = vsel %vm732, %v2338, %v2342
          %v2346 = vsel %vm732, %v2340, %v2344
          %v2347 = vsel %vm732, %v2342, %v2338
          %v2348 = vsel %vm732, %v2344, %v2340
          %v2349 = vmul.f32 %v2345, %v737
          %v2350 = vmul.f32 %v2347, %v738
          %v2351 = vmul.f32 %v2346, %v737
          %v2352 = vmul.f32 %v2348, %v738
          %v2353 = vpack.c.bf16 %v2350, %v2349
          %v2354 = vpack.c.bf16 %v2352, %v2351
          %v2357 = vunpack.c.l.b16 %v2221
          %v2358 = vunpack.c.h.b16 %v2221
          %v2359 = vunpack.c.l.b16 %v2222
          %v2360 = vunpack.c.h.b16 %v2222
          %v2361 = vpack.c.b16 %v2359, %v2357
          %v2362 = vpack.c.b16 %v2360, %v2358
          %v2367 = vunpack.c.l.b16 %v2239
          %v2368 = vunpack.c.h.b16 %v2239
          %v2369 = vunpack.c.l.b16 %v2240
          %v2370 = vunpack.c.h.b16 %v2240
          %v2371 = vpack.c.b16 %v2369, %v2367
          %v2372 = vpack.c.b16 %v2370, %v2368
          %v2377 = vunpack.c.l.b16 %v2257
          %v2378 = vunpack.c.h.b16 %v2257
          %v2379 = vunpack.c.l.b16 %v2258
          %v2380 = vunpack.c.h.b16 %v2258
          %v2381 = vpack.c.b16 %v2379, %v2377
          %v2382 = vpack.c.b16 %v2380, %v2378
          %v2387 = vunpack.c.l.b16 %v2275
          %v2388 = vunpack.c.h.b16 %v2275
          %v2389 = vunpack.c.l.b16 %v2276
          %v2390 = vunpack.c.h.b16 %v2276
          %v2391 = vpack.c.b16 %v2389, %v2387
          %v2392 = vpack.c.b16 %v2390, %v2388
          %v2397 = vunpack.c.l.b16 %v2281
          %v2398 = vunpack.c.h.b16 %v2281
          %v2399 = vunpack.c.l.b16 %v2282
          %v2400 = vunpack.c.h.b16 %v2282
          %v2401 = vpack.c.b16 %v2399, %v2397
          %v2402 = vpack.c.b16 %v2400, %v2398
          %v2407 = vunpack.c.l.b16 %v2299
          %v2408 = vunpack.c.h.b16 %v2299
          %v2409 = vunpack.c.l.b16 %v2300
          %v2410 = vunpack.c.h.b16 %v2300
          %v2411 = vpack.c.b16 %v2409, %v2407
          %v2412 = vpack.c.b16 %v2410, %v2408
          %v2417 = vunpack.c.l.b16 %v2317
          %v2418 = vunpack.c.h.b16 %v2317
          %v2419 = vunpack.c.l.b16 %v2318
          %v2420 = vunpack.c.h.b16 %v2318
          %v2421 = vpack.c.b16 %v2419, %v2417
          %v2422 = vpack.c.b16 %v2420, %v2418
          %v2427 = vunpack.c.l.b16 %v2335
          %v2428 = vunpack.c.h.b16 %v2335
          %v2429 = vunpack.c.l.b16 %v2336
          %v2430 = vunpack.c.h.b16 %v2336
          %v2431 = vpack.c.b16 %v2429, %v2427
          %v2432 = vpack.c.b16 %v2430, %v2428
          %v2437 = vunpack.c.l.b16 %v2353
          %v2438 = vunpack.c.h.b16 %v2353
          %v2439 = vunpack.c.l.b16 %v2354
          %v2440 = vunpack.c.h.b16 %v2354
          %v2441 = vpack.c.b16 %v2439, %v2437
          %v2442 = vpack.c.b16 %v2440, %v2438
          %v2445 = vld [vmem:[%s11 + $0x8] sm:$0x1f]
          %v2446 = vld [vmem:[%s6] sm:$0x77]
          %s2447 = scalar_lea.vmem %s6, 8
          %v2448 = vld [vmem:[%s2447] sm:$0x77]
          %v2450 = vunpack.c.l.b16 %v2448
          %v2451 = vunpack.c.h.b16 %v2448
          %v2452 = vpack.c.b16 %v2450, %v2450
          %v2453 = vpack.c.b16 %v2451, %v2451
          %v2456 = vsel %vm495, %v2453, 0
          %2458 = vmatpush.bf16.msra.mxu0 %v2431
          %2459 = vmatpush.bf16.msra.mxu0 %v2421
          %2460 = vmatpush.bf16.msra.mxu0 %v2411
          %2461 = vmatpush.bf16.msra.mxu0 %v2401
          %2462 = vmatpush.bf16.msra.mxu0 %v2391
          %2463 = vmatpush.bf16.msra.mxu0 %v2381
          %2464 = vmatpush.bf16.msra.mxu0 %v2371
          %2465 = vmatpush.bf16.msra.mxu0 %v2361
          %2466 = vmatmul.bf16.gmra.mxu0 %v2452
          %v2467 = vpop.f32.mrf.mxu0
          %v2468 = vadd.f32 0.0, %v2467
          %v2469 = vpop.f32.mrf.mxu0
          %2470 = vdwg.mxu0
          %2471 = vmatpush.bf16.msra.mxu0 0
          %2472 = vmatpush.bf16.msra.mxu0 0
          %2473 = vmatpush.bf16.msra.mxu0 0
          %2474 = vmatpush.bf16.msra.mxu0 0
          %2475 = vmatpush.bf16.msra.mxu0 0
          %2476 = vmatpush.bf16.msra.mxu0 0
          %2477 = vmatpush.bf16.msra.mxu0 0
          %2478 = vmatpush.bf16.msra.mxu0 %v2441
          %2479 = vmatmul.bf16.gmra.mxu0 %v2456
          %v2480 = vpop.f32.mrf.mxu0
          %v2481 = vadd.f32 %v2468, %v2480
          %v2482 = vpop.f32.mrf.mxu0
          %2483 = vdwg.mxu0
          %2484 = vmatpush.bf16.msra.mxu0 %v2432
          %2485 = vmatpush.bf16.msra.mxu0 %v2422
          %2486 = vmatpush.bf16.msra.mxu0 %v2412
          %2487 = vmatpush.bf16.msra.mxu0 %v2402
          %2488 = vmatpush.bf16.msra.mxu0 %v2392
          %2489 = vmatpush.bf16.msra.mxu0 %v2382
          %2490 = vmatpush.bf16.msra.mxu0 %v2372
          %2491 = vmatpush.bf16.msra.mxu0 %v2362
          %2492 = vmatmul.bf16.gmra.mxu0 %v2452
          %v2493 = vpop.f32.mrf.mxu0
          %v2494 = vadd.f32 0.0, %v2493
          %v2495 = vpop.f32.mrf.mxu0
          %2496 = vdwg.mxu0
          %2497 = vmatpush.bf16.msra.mxu0 0
          %2498 = vmatpush.bf16.msra.mxu0 0
          %2499 = vmatpush.bf16.msra.mxu0 0
          %2500 = vmatpush.bf16.msra.mxu0 0
          %2501 = vmatpush.bf16.msra.mxu0 0
          %2502 = vmatpush.bf16.msra.mxu0 0
          %2503 = vmatpush.bf16.msra.mxu0 0
          %2504 = vmatpush.bf16.msra.mxu0 %v2442
          %2505 = vmatmul.bf16.gmra.mxu0 %v2456
          %v2506 = vpop.f32.mrf.mxu0
          %v2507 = vadd.f32 %v2494, %v2506
          %v2508 = vpop.f32.mrf.mxu0
          %2509 = vdwg.mxu0
          %v2511 = vunpack.c.l.b16 %v2446
          %v2512 = vunpack.c.h.b16 %v2446
          %v2513 = vpack.c.b16 %v2511, %v2511
          %v2514 = vpack.c.b16 %v2512, %v2512
          %v2517 = vsel %vm495, %v2514, 0
          %2519 = vmatpush.bf16.msra.mxu0 %v821
          %2520 = vmatpush.bf16.msra.mxu0 %v811
          %2521 = vmatpush.bf16.msra.mxu0 %v801
          %2522 = vmatpush.bf16.msra.mxu0 %v791
          %2523 = vmatpush.bf16.msra.mxu0 %v781
          %2524 = vmatpush.bf16.msra.mxu0 %v771
          %2525 = vmatpush.bf16.msra.mxu0 %v761
          %2526 = vmatpush.bf16.msra.mxu0 %v751
          %2527 = vmatmul.bf16.gmra.mxu0 %v2513
          %v2528 = vpop.f32.mrf.mxu0
          %v2529 = vadd.f32 %v2481, %v2528
          %v2530 = vpop.f32.mrf.mxu0
          %2531 = vdwg.mxu0
          %2532 = vmatpush.bf16.msra.mxu0 0
          %2533 = vmatpush.bf16.msra.mxu0 0
          %2534 = vmatpush.bf16.msra.mxu0 0
          %2535 = vmatpush.bf16.msra.mxu0 0
          %2536 = vmatpush.bf16.msra.mxu0 0
          %2537 = vmatpush.bf16.msra.mxu0 0
          %2538 = vmatpush.bf16.msra.mxu0 0
          %2539 = vmatpush.bf16.msra.mxu0 %v831
          %2540 = vmatmul.bf16.gmra.mxu0 %v2517
          %v2541 = vpop.f32.mrf.mxu0
          %v2542 = vadd.f32 %v2529, %v2541
          %v2543 = vpop.f32.mrf.mxu0
          %2544 = vdwg.mxu0
          %2545 = vmatpush.bf16.msra.mxu0 %v822
          %2546 = vmatpush.bf16.msra.mxu0 %v812
          %2547 = vmatpush.bf16.msra.mxu0 %v802
          %2548 = vmatpush.bf16.msra.mxu0 %v792
          %2549 = vmatpush.bf16.msra.mxu0 %v782
          %2550 = vmatpush.bf16.msra.mxu0 %v772
          %2551 = vmatpush.bf16.msra.mxu0 %v762
          %2552 = vmatpush.bf16.msra.mxu0 %v752
          %2553 = vmatmul.bf16.gmra.mxu0 %v2513
          %v2554 = vpop.f32.mrf.mxu0
          %v2555 = vadd.f32 %v2507, %v2554
          %v2556 = vpop.f32.mrf.mxu0
          %2557 = vdwg.mxu0
          %2558 = vmatpush.bf16.msra.mxu0 0
          %2559 = vmatpush.bf16.msra.mxu0 0
          %2560 = vmatpush.bf16.msra.mxu0 0
          %2561 = vmatpush.bf16.msra.mxu0 0
          %2562 = vmatpush.bf16.msra.mxu0 0
          %2563 = vmatpush.bf16.msra.mxu0 0
          %2564 = vmatpush.bf16.msra.mxu0 0
          %2565 = vmatpush.bf16.msra.mxu0 %v832
          %2566 = vmatmul.bf16.gmra.mxu0 %v2517
          %v2567 = vpop.f32.mrf.mxu0
          %v2568 = vadd.f32 %v2555, %v2567
          %v2569 = vpop.f32.mrf.mxu0
          %2570 = vdwg.mxu0
          %2572 = vset.pattern.permute.xlu0 0
          %2573 = vperm.xlu0 %2572, %v2445
          %v2574 = vpop.permute.xlu0 %2573
          %v2576 = vadd.f32 %v2542, %v2574
          %v2577 = vadd.f32 %v2568, %v2574
          %v2578 = vld [vmem:[%s7] sm:$0x7]
          %v2579 = vpack.c.bf16 %v511, %v509
          %v2580 = vpack.c.bf16 %v525, %v523
          %v2581 = vpack.c.bf16 %v2175, %v2173
          %v2582 = vpack.c.bf16 %v2203, %v2201
          %v2583 = vld [vmem:[%s11 + $0x10] sm:$0x1f]
          %2585 = vset.pattern.permute.xlu0 0
          %2586 = vperm.xlu0 %2585, %v2583
          %v2587 = vpop.permute.xlu0 %2586
          %vm2589 = vcmask 261120
          %v2591 = vsel %vm2589, %v2578, 0
          %2593 = vmatpush.bf16.msra.mxu0 0
          %2594 = vmatpush.bf16.msra.mxu0 0
          %2595 = vmatpush.bf16.msra.mxu0 0
          %2596 = vmatpush.bf16.msra.mxu0 0
          %2597 = vmatpush.bf16.msra.mxu0 0
          %2598 = vmatpush.bf16.msra.mxu0 0
          %2599 = vmatpush.bf16.msra.mxu0 %v2581
          %2600 = vmatpush.bf16.msra.mxu0 %v2579
          %2601 = vmatmul.bf16.gmra.mxu0 %v2591
          %v2602 = vpop.f32.mrf.mxu0
          %v2603 = vadd.f32 %v2587, %v2602
          %v2604 = vpop.f32.mrf.mxu0
          %2605 = vdwg.mxu0
          %2606 = vmatpush.bf16.msra.mxu0 0
          %2607 = vmatpush.bf16.msra.mxu0 0
          %2608 = vmatpush.bf16.msra.mxu0 0
          %2609 = vmatpush.bf16.msra.mxu0 0
          %2610 = vmatpush.bf16.msra.mxu0 0
          %2611 = vmatpush.bf16.msra.mxu0 0
          %2612 = vmatpush.bf16.msra.mxu0 %v2582
          %2613 = vmatpush.bf16.msra.mxu0 %v2580
          %2614 = vmatmul.bf16.gmra.mxu0 %v2591
          %v2615 = vpop.f32.mrf.mxu0
          %v2616 = vadd.f32 %v2587, %v2615
          %v2617 = vpop.f32.mrf.mxu0
          %2618 = vdwg.mxu0
          %v2619 = vadd.f32 %v2576, %v2603
          %v2620 = vadd.f32 %v2577, %v2616
          %vm2621 = vcmp.ge.f32.partialorder %v2619, 0.0
          %vm2622 = vcmp.ge.f32.partialorder %v2620, 0.0
          %v2623 = vmul.f32 %v2619, 0.01
          %v2624 = vmul.f32 %v2620, 0.01
          %v2625 = vsel %vm2621, %v2619, %v2623
          %v2626 = vsel %vm2622, %v2620, %v2624
          %v2627 = vmax.f32 %v509, %v2173
          %v2628 = vmax.f32 %v511, %v2175
          %v2629 = vmax.f32 %v2627, %v2628
          %v2630 = vrot.slane %v2629, 4
          %v2631 = vmax.f32 %v2629, %v2630
          %v2632 = vrot.slane %v2631, 2
          %v2633 = vmax.f32 %v2631, %v2632
          %v2634 = vrot.slane %v2633, 1
          %v2635 = vmax.f32 %v2633, %v2634
          %v2636 = vmax.f32 %v523, %v2201
          %v2637 = vmax.f32 %v525, %v2203
          %v2638 = vmax.f32 %v2636, %v2637
          %v2639 = vrot.slane %v2638, 4
          %v2640 = vmax.f32 %v2638, %v2639
          %v2641 = vrot.slane %v2640, 2
          %v2642 = vmax.f32 %v2640, %v2641
          %v2643 = vrot.slane %v2642, 1
          %v2644 = vmax.f32 %v2642, %v2643
          %v2645 = vadd.f32 %v2619, %v2635
          %v2646 = vadd.f32 %v2620, %v2644
          %v2647 = vld [vmem:[%s8] sm:$0xf]
          %v2648 = vld [vmem:[%s8 + $0x4] sm:$0xf]
          %v2649 = vld [vmem:[%s8 + $0x8] sm:$0xf]
          %v2650 = vld [vmem:[%s8 + $0xc] sm:$0xf]
          %v2651 = vld [vmem:[%s8 + $0x10] sm:$0xf]
          %v2652 = vld [vmem:[%s8 + $0x14] sm:$0xf]
          %v2653 = vld [vmem:[%s8 + $0x18] sm:$0xf]
          %v2654 = vld [vmem:[%s8 + $0x1c] sm:$0xf]
          %v2655 = vpack.c.bf16 %v2625, %v2625
          %v2656 = vpack.c.bf16 %v2626, %v2626
          %v2657 = vld [vmem:[%s11 + $0x18] sm:$0xff]
          %v2658 = vld [vmem:[%s11 + $0x20] sm:$0xff]
          %v2659 = vld [vmem:[%s11 + $0x28] sm:$0xff]
          %v2660 = vld [vmem:[%s11 + $0x30] sm:$0xff]
          %v2661 = vld [vmem:[%s11 + $0x38] sm:$0xff]
          %v2662 = vld [vmem:[%s11 + $0x40] sm:$0xff]
          %v2663 = vld [vmem:[%s11 + $0x48] sm:$0xff]
          %v2664 = vld [vmem:[%s11 + $0x50] sm:$0xff]
          %2666 = vset.pattern.permute.xlu0 0
          %2667 = vperm.xlu0 %2666, %v2657
          %v2668 = vpop.permute.xlu0 %2667
          %2671 = vset.pattern.permute.xlu0 0
          %2672 = vperm.xlu0 %2671, %v2658
          %v2673 = vpop.permute.xlu0 %2672
          %2676 = vset.pattern.permute.xlu0 0
          %2677 = vperm.xlu0 %2676, %v2659
          %v2678 = vpop.permute.xlu0 %2677
          %2681 = vset.pattern.permute.xlu0 0
          %2682 = vperm.xlu0 %2681, %v2660
          %v2683 = vpop.permute.xlu0 %2682
          %2686 = vset.pattern.permute.xlu0 0
          %2687 = vperm.xlu0 %2686, %v2661
          %v2688 = vpop.permute.xlu0 %2687
          %2691 = vset.pattern.permute.xlu0 0
          %2692 = vperm.xlu0 %2691, %v2662
          %v2693 = vpop.permute.xlu0 %2692
          %2696 = vset.pattern.permute.xlu0 0
          %2697 = vperm.xlu0 %2696, %v2663
          %v2698 = vpop.permute.xlu0 %2697
          %2701 = vset.pattern.permute.xlu0 0
          %2702 = vperm.xlu0 %2701, %v2664
          %v2703 = vpop.permute.xlu0 %2702
          %v2713 = vunpack.c.l.b16 %v2647
          %v2714 = vunpack.c.l.b16 %v2648
          %v2715 = vunpack.c.l.b16 %v2649
          %v2716 = vunpack.c.l.b16 %v2650
          %v2717 = vunpack.c.l.b16 %v2651
          %v2718 = vunpack.c.l.b16 %v2652
          %v2719 = vunpack.c.l.b16 %v2653
          %v2720 = vunpack.c.l.b16 %v2654
          %v2721 = vpack.c.b16 %v2714, %v2713
          %v2722 = vpack.c.b16 %v2716, %v2715
          %v2723 = vpack.c.b16 %v2718, %v2717
          %v2724 = vpack.c.b16 %v2720, %v2719
          %vm2725 = vcmask 31744
          %v2727 = vsel %vm2725, %v2721, 0
          %v2730 = vsel %vm2725, %v2722, 0
          %v2733 = vsel %vm2725, %v2723, 0
          %v2736 = vsel %vm2725, %v2724, 0
          %vm2738 = vcmask 1041408
          %v2740 = vsel %vm2738, %v2655, 0
          %v2743 = vsel %vm2738, %v2656, 0
          %2745 = vmatpush.bf16.msra.mxu0 0
          %2746 = vmatpush.bf16.msra.mxu0 0
          %2747 = vmatpush.bf16.msra.mxu0 0
          %2748 = vmatpush.bf16.msra.mxu0 0
          %2749 = vmatpush.bf16.msra.mxu0 0
          %2750 = vmatpush.bf16.msra.mxu0 0
          %2751 = vmatpush.bf16.msra.mxu0 0
          %2752 = vmatpush.bf16.msra.mxu0 %v2740
          %2753 = vmatmul.bf16.gmra.mxu0 %v2727
          %v2754 = vpop.f32.mrf.mxu0
          %v2755 = vadd.f32 %v2668, %v2754
          %v2756 = vpop.f32.mrf.mxu0
          %v2757 = vadd.f32 %v2673, %v2756
          %2758 = vmatmul.bf16.gmra.mxu0 %v2730
          %v2759 = vpop.f32.mrf.mxu0
          %v2760 = vadd.f32 %v2678, %v2759
          %v2761 = vpop.f32.mrf.mxu0
          %v2762 = vadd.f32 %v2683, %v2761
          %2763 = vmatmul.bf16.gmra.mxu0 %v2733
          %v2764 = vpop.f32.mrf.mxu0
          %v2765 = vadd.f32 %v2688, %v2764
          %v2766 = vpop.f32.mrf.mxu0
          %v2767 = vadd.f32 %v2693, %v2766
          %2768 = vmatmul.bf16.gmra.mxu0 %v2736
          %v2769 = vpop.f32.mrf.mxu0
          %v2770 = vadd.f32 %v2698, %v2769
          %v2771 = vpop.f32.mrf.mxu0
          %v2772 = vadd.f32 %v2703, %v2771
          %2773 = vdwg.mxu0
          %2774 = vmatpush.bf16.msra.mxu0 0
          %2775 = vmatpush.bf16.msra.mxu0 0
          %2776 = vmatpush.bf16.msra.mxu0 0
          %2777 = vmatpush.bf16.msra.mxu0 0
          %2778 = vmatpush.bf16.msra.mxu0 0
          %2779 = vmatpush.bf16.msra.mxu0 0
          %2780 = vmatpush.bf16.msra.mxu0 0
          %2781 = vmatpush.bf16.msra.mxu0 %v2743
          %2782 = vmatmul.bf16.gmra.mxu0 %v2727
          %v2783 = vpop.f32.mrf.mxu0
          %v2784 = vadd.f32 %v2668, %v2783
          %v2785 = vpop.f32.mrf.mxu0
          %v2786 = vadd.f32 %v2673, %v2785
          %2787 = vmatmul.bf16.gmra.mxu0 %v2730
          %v2788 = vpop.f32.mrf.mxu0
          %v2789 = vadd.f32 %v2678, %v2788
          %v2790 = vpop.f32.mrf.mxu0
          %v2791 = vadd.f32 %v2683, %v2790
          %2792 = vmatmul.bf16.gmra.mxu0 %v2733
          %v2793 = vpop.f32.mrf.mxu0
          %v2794 = vadd.f32 %v2688, %v2793
          %v2795 = vpop.f32.mrf.mxu0
          %v2796 = vadd.f32 %v2693, %v2795
          %2797 = vmatmul.bf16.gmra.mxu0 %v2736
          %v2798 = vpop.f32.mrf.mxu0
          %v2799 = vadd.f32 %v2698, %v2798
          %v2800 = vpop.f32.mrf.mxu0
          %v2801 = vadd.f32 %v2703, %v2800
          %2802 = vdwg.mxu0
          %v2803 = vmax.f32 %v2755, %v2765
          %v2804 = vmax.f32 %v2784, %v2794
          %v2805 = vmax.f32 %v2757, %v2767
          %v2806 = vmax.f32 %v2786, %v2796
          %v2807 = vmax.f32 %v2760, %v2770
          %v2808 = vmax.f32 %v2789, %v2799
          %v2809 = vmax.f32 %v2762, %v2772
          %v2810 = vmax.f32 %v2791, %v2801
          %v2811 = vsub.f32 %v2755, %v2803
          %v2812 = vsub.f32 %v2784, %v2804
          %v2813 = vsub.f32 %v2757, %v2805
          %v2814 = vsub.f32 %v2786, %v2806
          %v2815 = vsub.f32 %v2760, %v2807
          %v2816 = vsub.f32 %v2789, %v2808
          %v2817 = vsub.f32 %v2762, %v2809
          %v2818 = vsub.f32 %v2791, %v2810
          %v2819 = vmul.f32 %v2811, 1.442695
          %v2820 = vpow.pop %v2819
          %v2821 = vmul.f32 %v2812, 1.442695
          %v2822 = vpow.pop %v2821
          %v2823 = vmul.f32 %v2813, 1.442695
          %v2824 = vpow.pop %v2823
          %v2825 = vmul.f32 %v2814, 1.442695
          %v2826 = vpow.pop %v2825
          %v2827 = vmul.f32 %v2815, 1.442695
          %v2828 = vpow.pop %v2827
          %v2829 = vmul.f32 %v2816, 1.442695
          %v2830 = vpow.pop %v2829
          %v2831 = vmul.f32 %v2817, 1.442695
          %v2832 = vpow.pop %v2831
          %v2833 = vmul.f32 %v2818, 1.442695
          %v2834 = vpow.pop %v2833
          %v2835 = vld [vmem:[%s9] sm:$0xf]
          %v2836 = vld [vmem:[%s9 + $0x4] sm:$0xf]
          %v2837 = vld [vmem:[%s9 + $0x8] sm:$0xf]
          %v2838 = vld [vmem:[%s9 + $0xc] sm:$0xf]
          %v2839 = vpack.c.bf16 %v2824, %v2820
          %v2840 = vpack.c.bf16 %v2826, %v2822
          %v2841 = vpack.c.bf16 %v2832, %v2828
          %v2842 = vpack.c.bf16 %v2834, %v2830
          %v2847 = vunpack.c.l.b16 %v2835
          %v2848 = vunpack.c.l.b16 %v2836
          %v2849 = vunpack.c.l.b16 %v2837
          %v2850 = vunpack.c.l.b16 %v2838
          %v2851 = vpack.c.b16 %v2848, %v2847
          %v2852 = vpack.c.b16 %v2850, %v2849
          %v2854 = vsel %vm2589, %v2851, 0
          %v2857 = vsel %vm2589, %v2852, 0
          %2859 = vmatpush.bf16.msra.mxu0 0
          %2860 = vmatpush.bf16.msra.mxu0 0
          %2861 = vmatpush.bf16.msra.mxu0 0
          %2862 = vmatpush.bf16.msra.mxu0 0
          %2863 = vmatpush.bf16.msra.mxu0 0
          %2864 = vmatpush.bf16.msra.mxu0 0
          %2865 = vmatpush.bf16.msra.mxu0 %v2841
          %2866 = vmatpush.bf16.msra.mxu0 %v2839
          %2867 = vmatmul.bf16.gmra.mxu0 %v2854
          %v2868 = vpop.f32.mrf.mxu0
          %v2869 = vadd.f32 0.0, %v2868
          %v2870 = vpop.f32.mrf.mxu0
          %v2871 = vadd.f32 0.0, %v2870
          %2872 = vmatmul.bf16.gmra.mxu0 %v2857
          %v2873 = vpop.f32.mrf.mxu0
          %v2874 = vadd.f32 0.0, %v2873
          %v2875 = vpop.f32.mrf.mxu0
          %v2876 = vadd.f32 0.0, %v2875
          %2877 = vdwg.mxu0
          %2878 = vmatpush.bf16.msra.mxu0 0
          %2879 = vmatpush.bf16.msra.mxu0 0
          %2880 = vmatpush.bf16.msra.mxu0 0
          %2881 = vmatpush.bf16.msra.mxu0 0
          %2882 = vmatpush.bf16.msra.mxu0 0
          %2883 = vmatpush.bf16.msra.mxu0 0
          %2884 = vmatpush.bf16.msra.mxu0 %v2842
          %2885 = vmatpush.bf16.msra.mxu0 %v2840
          %2886 = vmatmul.bf16.gmra.mxu0 %v2854
          %v2887 = vpop.f32.mrf.mxu0
          %v2888 = vadd.f32 0.0, %v2887
          %v2889 = vpop.f32.mrf.mxu0
          %v2890 = vadd.f32 0.0, %v2889
          %2891 = vmatmul.bf16.gmra.mxu0 %v2857
          %v2892 = vpop.f32.mrf.mxu0
          %v2893 = vadd.f32 0.0, %v2892
          %v2894 = vpop.f32.mrf.mxu0
          %v2895 = vadd.f32 0.0, %v2894
          %2896 = vdwg.mxu0
          %v2897 = vadd.f32 %v2820, %v2869
          %v2898 = vadd.f32 %v2822, %v2888
          %v2899 = vadd.f32 %v2824, %v2871
          %v2900 = vadd.f32 %v2826, %v2890
          %v2901 = vadd.f32 %v2828, %v2874
          %v2902 = vadd.f32 %v2830, %v2893
          %v2903 = vadd.f32 %v2832, %v2876
          %v2904 = vadd.f32 %v2834, %v2895
          %v2905 = vrcp.pop %v2897
          %v2906 = vrcp.pop %v2898
          %v2907 = vrcp.pop %v2899
          %v2908 = vrcp.pop %v2900
          %v2909 = vrcp.pop %v2901
          %v2910 = vrcp.pop %v2902
          %v2911 = vrcp.pop %v2903
          %v2912 = vrcp.pop %v2904
          %v2913 = vmul.f32 %v2820, %v2905
          %v2914 = vmul.f32 %v2822, %v2906
          %v2915 = vmul.f32 %v2824, %v2907
          %v2916 = vmul.f32 %v2826, %v2908
          %v2917 = vmul.f32 %v2828, %v2909
          %v2918 = vmul.f32 %v2830, %v2910
          %v2919 = vmul.f32 %v2832, %v2911
          %v2920 = vmul.f32 %v2834, %v2912
          %v2921 = vperm.slane %v2645, 4
          %v2922 = vperm.slane %v2646, 4
          %v2923 = vmul.f32 %v2913, %v2921
          %v2924 = vmul.f32 %v2914, %v2922
          %v2925 = vmul.f32 %v2915, %v2921
          %v2926 = vmul.f32 %v2916, %v2922
          %v2927 = vmul.f32 %v2917, %v2921
          %v2928 = vmul.f32 %v2918, %v2922
          %v2929 = vmul.f32 %v2919, %v2921
          %v2930 = vmul.f32 %v2920, %v2922
          %v2931 = vmul.f32 %v2923, %v509
          %v2932 = vmul.f32 %v2924, %v523
          %v2933 = vmul.f32 %v2925, %v511
          %v2934 = vmul.f32 %v2926, %v525
          %v2935 = vmul.f32 %v2927, %v2173
          %v2936 = vmul.f32 %v2928, %v2201
          %v2937 = vmul.f32 %v2929, %v2175
          %v2938 = vmul.f32 %v2930, %v2203
          %v2939 = vld [vmem:[%s10] sm:$0xf]
          %v2940 = vld [vmem:[%s10 + $0x4] sm:$0xf]
          %v2941 = vpack.c.bf16 %v2933, %v2931
          %v2942 = vpack.c.bf16 %v2934, %v2932
          %v2943 = vpack.c.bf16 %v2937, %v2935
          %v2944 = vpack.c.bf16 %v2938, %v2936
          %v2945 = vld [vmem:[%s11 + $0x58] sm:$0xff]
          %v2946 = vld [vmem:[%s11 + $0x60] sm:$0xff]
          %2948 = vset.pattern.permute.xlu0 0
          %2949 = vperm.xlu0 %2948, %v2945
          %v2950 = vpop.permute.xlu0 %2949
          %2953 = vset.pattern.permute.xlu0 0
          %2954 = vperm.xlu0 %2953, %v2946
          %v2955 = vpop.permute.xlu0 %2954
          %v2959 = vunpack.c.l.b16 %v2939
          %v2960 = vunpack.c.l.b16 %v2940
          %v2961 = vpack.c.b16 %v2960, %v2959
          %v2963 = vsel %vm2589, %v2961, 0
          %2965 = vmatpush.bf16.msra.mxu0 0
          %2966 = vmatpush.bf16.msra.mxu0 0
          %2967 = vmatpush.bf16.msra.mxu0 0
          %2968 = vmatpush.bf16.msra.mxu0 0
          %2969 = vmatpush.bf16.msra.mxu0 0
          %2970 = vmatpush.bf16.msra.mxu0 0
          %2971 = vmatpush.bf16.msra.mxu0 %v2943
          %2972 = vmatpush.bf16.msra.mxu0 %v2941
          %2973 = vmatmul.bf16.gmra.mxu0 %v2963
          %v2974 = vpop.f32.mrf.mxu0
          %v2975 = vadd.f32 %v2950, %v2974
          %v2976 = vpop.f32.mrf.mxu0
          %v2977 = vadd.f32 %v2955, %v2976
          %2978 = vdwg.mxu0
          %2979 = vmatpush.bf16.msra.mxu0 0
          %2980 = vmatpush.bf16.msra.mxu0 0
          %2981 = vmatpush.bf16.msra.mxu0 0
          %2982 = vmatpush.bf16.msra.mxu0 0
          %2983 = vmatpush.bf16.msra.mxu0 0
          %2984 = vmatpush.bf16.msra.mxu0 0
          %2985 = vmatpush.bf16.msra.mxu0 %v2944
          %2986 = vmatpush.bf16.msra.mxu0 %v2942
          %2987 = vmatmul.bf16.gmra.mxu0 %v2963
          %v2988 = vpop.f32.mrf.mxu0
          %v2989 = vadd.f32 %v2950, %v2988
          %v2990 = vpop.f32.mrf.mxu0
          %v2991 = vadd.f32 %v2955, %v2990
          %2992 = vdwg.mxu0
          %vm2993 = vcmp.ge.f32.partialorder %v2975, 0.0
          %vm2994 = vcmp.ge.f32.partialorder %v2989, 0.0
          %vm2995 = vcmp.ge.f32.partialorder %v2977, 0.0
          %vm2996 = vcmp.ge.f32.partialorder %v2991, 0.0
          %v2997 = vmul.f32 %v2975, 0.01
          %v2998 = vmul.f32 %v2989, 0.01
          %v2999 = vmul.f32 %v2977, 0.01
          %v3000 = vmul.f32 %v2991, 0.01
          %v3001 = vsel %vm2993, %v2975, %v2997
          %v3002 = vsel %vm2994, %v2989, %v2998
          %v3003 = vsel %vm2995, %v2977, %v2999
          %v3004 = vsel %vm2996, %v2991, %v3000
          %3005 = vst [vmem:[%s455] sm:$0xff] %v3001
          %3006 = vst [vmem:[%s455 + $0x8] sm:$0xff] %v3002
          %3007 = vst [vmem:[%s455 + $0x10] sm:$0xff] %v3003
          %3008 = vst [vmem:[%s455 + $0x18] sm:$0xff] %v3004
        $region72: #{tpu_custom_call.1} parent=63 // pred_fallthru
          _
        %p3009 = scmp.le.s32.totalorder %s469, 1
        // Predicated region
        $region73: #{tpu_custom_call.1} parent=63 // pred_check
          %p3010 = pneg %p3009
        $region74: #{tpu_custom_call.1} parent=63 // pred_check_branch
          %3012 = sbr.rel (%p3010) target = $region76
        $region75: #{tpu_custom_call.1} parent=63 // pred_region
          %v3013 = vld [vmem:[%s462] sm:$0xff]
          %v3014 = vld [vmem:[%s462 + $0x8] sm:$0xff]
          %v3015 = vld [vmem:[%s462 + $0x10] sm:$0xff]
          %v3016 = vld [vmem:[%s462 + $0x18] sm:$0xff]
          %3017 = vst [vmem:[%s455] sm:$0xff] %v3013
          %3018 = vst [vmem:[%s455 + $0x8] sm:$0xff] %v3014
          %3019 = vst [vmem:[%s455 + $0x10] sm:$0xff] %v3015
          %3020 = vst [vmem:[%s455 + $0x18] sm:$0xff] %v3016
        $region76: #{tpu_custom_call.1} parent=63 // pred_fallthru
          _
        %s3021 = sand.u32 %s302, 1
        %s3022 = scalar_lea.sflag [#allocation7], %s3021
        %s3023 = sand.u32 %s302, 1
        %s3024 = smul.addr %s3023, 32
        %s3025 = scalar_lea.vmem [#allocation8], %s3024
        // Predicated region
        $region77: #{tpu_custom_call.1} parent=63 // pred_check
          %p3026 = pneg %p312
        $region78: #{tpu_custom_call.1} parent=63 // pred_check_branch
          %3028 = sbr.rel (%p3026) target = $region80
        $region79: #{tpu_custom_call.1} parent=63 // pred_region
          %3030 = vsyncadd %s3022, 0
          %s3031 = smul.addr %s43, 4
          %s3032 = smul.addr %s3031, 8
          %s3033 = scalar_lea.hbm %s13, %s3032
          %s3034 = sshll.u32 %s3025, 4
          %s3035 = int_to_ptr.vmem [resolvable:$true] %s3034
          %s3036 = sshll.u32 %s3033, 4
          %s3037 = int_to_ptr.hbm [resolvable:$true] %s3036
          %3042 = dma.vmem_to_hbm [thread:$0]  %s3035, 512, %s3037, %s3022, 256, 256, 16
        $region80: #{tpu_custom_call.1} parent=63 // pred_fallthru
          _
      $region64: #{tpu_custom_call.1} parent=5 // pred_fallthru
        _
      %p3043 = scmp.le.s32.totalorder 2, %s38
      // Predicated region
      $region81: #{tpu_custom_call.1} parent=5 // pred_check
        %p3044 = pneg %p3043
      $region82: #{tpu_custom_call.1} parent=5 // pred_check_branch
        %3046 = sbr.rel (%p3044) target = $region84
      $region83: #{tpu_custom_call.1} parent=5 // pred_region
        %s3047 = ssub.s32 %s38, 2
        // Predicated region
        $region85: #{tpu_custom_call.1} parent=83 // pred_check
          %p3048 = pneg %p318
        $region86: #{tpu_custom_call.1} parent=83 // pred_check_branch
          %3050 = sbr.rel (%p3048) target = $region88
        $region87: #{tpu_custom_call.1} parent=83 // pred_region
          %s3051 = sand.u32 %s303, 1
          %s3052 = scalar_lea.sflag [#allocation7], %s3051
          %s3053 = sand.u32 %s303, 1
          %s3054 = smul.addr %s3053, 32
          %s3055 = scalar_lea.vmem [#allocation8], %s3054
          %3057 = dma.done %s3052, 512
        $region88: #{tpu_custom_call.1} parent=83 // pred_fallthru
          _
      $region84: #{tpu_custom_call.1} parent=5 // pred_fallthru
        _
    $region6: #{tpu_custom_call.1} parent=1 // loop_footer
      %s42 = sadd.s32 1, %s38
    $region7: #{tpu_custom_call.1} parent=1 // loop_footer_branch
      %37 = sbr.rel target = $region3
    $region8: #{tpu_custom_call.1} parent=1 // loop_exit
      _
    %3058 = vsyncpa [#allocation6], 1
    %s3059 = scalar_lea.sflag [#allocation6], 1
    %3060 = vsyncpa %s3059, 1
    %3061 = vsyncpa [#allocation7], 1
    %s3062 = scalar_lea.sflag [#allocation7], 1
    %3063 = vsyncpa %s3062, 1

</llo_original>
